<compile_context>
chip_gen: v7x
topology: tpu7x:2x2x1
jax: 0.10.0
libtpu: 0.0.40
codegen_flags: <defaults>
</compile_context>

<pallas_src>
import functools

import jax
import jax.numpy as jnp
from jax import lax
from jax.experimental import pallas as pl
from jax.experimental.pallas import tpu as pltpu


# --------------------------------------------------------------------------------------
# Kernels
# --------------------------------------------------------------------------------------

def _fused_unpool_kernel(x_ref, idx_ref, o_ref, *, stride, padding, chunk_w):
    """Write the interleaved output slab directly.

    x_ref, idx_ref: (TILE_R, W)           W = fold * L_in (lane-dense)
    o_ref:          (TILE_R, W * stride)
    Output column j holds the value for output position (j % chunk_w) - padding of the
    length chunk j // chunk_w, where chunk_w = L_in * stride.
    """
    x = x_ref[...]
    idx = idx_ref[...]
    x_rep = jnp.repeat(x, stride, axis=1)            # x_rep[:, j]  = x[:, j // stride]
    idx_rep = jnp.repeat(idx, stride, axis=1)
    lane = lax.broadcasted_iota(jnp.int32, idx_rep.shape, 1)
    pos = lane % chunk_w - padding                   # absolute output position of column j
    o_ref[...] = jnp.where(idx_rep == pos, x_rep, jnp.zeros_like(x_rep))


def _planes_unpool_kernel(x_ref, idx_ref, o_ref, *, stride, padding, l_in):
    """Fallback: one dense plane per window offset; interleaved afterwards in XLA."""
    x = x_ref[...]
    idx = idx_ref[...]
    lane = lax.broadcasted_iota(jnp.int32, x.shape, 1)
    base = (lane % l_in) * stride - padding
    rel = idx - base                                  # window-relative offset, in [0, kernel)
    zeros = jnp.zeros_like(x)
    for s in range(stride):                           # tiny static unroll (stride == 2 default)
        o_ref[s] = jnp.where(rel == s, x, zeros)


# --------------------------------------------------------------------------------------
# Tiling / call helpers
# --------------------------------------------------------------------------------------

def _tile_rows_and_vmem(r_rows, w, itemsize, stride):
    """Row tile sized from a per-generation VMEM budget (double-buffered in+out blocks)."""
    row_bytes = w * (itemsize + 4) + w * stride * itemsize      # x + int32 idx + out slab
    try:
        vmem_cap = pltpu.get_tpu_info().vmem_capacity_bytes
    except Exception:
        vmem_cap = 64 * 1024 * 1024                             # conservative default (v7x-safe)
    if vmem_cap <= 64 * 1024 * 1024:        # v7x-class: 64 MiB VMEM per TensorCore
        block_budget, vmem_limit = 8 * 1024 * 1024, 40 * 1024 * 1024
    else:                                    # v5e / v6e: 128 MiB VMEM
        block_budget, vmem_limit = 16 * 1024 * 1024, 80 * 1024 * 1024
    tile = max(8, (block_budget // max(row_bytes, 1)) // 8 * 8)
    # Keep >= 2 grid steps (rows shard across v7x's two TensorCores), ideally >= 4 so
    # BlockSpec double-buffering actually overlaps DMA with compute.
    if r_rows >= 32:
        target = pl.cdiv(r_rows, 4)
    elif r_rows >= 16:
        target = pl.cdiv(r_rows, 2)
    else:
        target = r_rows
    tile = min(tile, max(8, pl.cdiv(target, 8) * 8))
    tile = min(tile, pl.cdiv(r_rows, 8) * 8)
    return tile, vmem_limit


def _unpool_interleaved(x2, idx2, *, stride, padding, chunk_w, tile_r, vmem_limit, fused):
    """x2, idx2: (R, W) with R % tile_r == 0.  Returns the interleaved (R, W*stride) slab."""
    r_rows, w = x2.shape
    grid = (r_rows // tile_r,)
    in_specs = [pl.BlockSpec((tile_r, w), lambda r: (r, 0)),
                pl.BlockSpec((tile_r, w), lambda r: (r, 0))]
    bytes_accessed = (x2.size * x2.dtype.itemsize + idx2.size * 4
                      + r_rows * w * stride * x2.dtype.itemsize)
    cost = pl.CostEstimate(flops=4 * r_rows * w * stride, transcendentals=0,
                           bytes_accessed=bytes_accessed)
    params = pltpu.CompilerParams(dimension_semantics=("parallel",),
                                  vmem_limit_bytes=vmem_limit)
    if fused:
        return pl.pallas_call(
            functools.partial(_fused_unpool_kernel, stride=stride, padding=padding,
                              chunk_w=chunk_w),
            out_shape=jax.ShapeDtypeStruct((r_rows, w * stride), x2.dtype),
            grid=grid, in_specs=in_specs,
            out_specs=pl.BlockSpec((tile_r, w * stride), lambda r: (r, 0)),
            compiler_params=params, cost_estimate=cost,
        )(x2, idx2)
    out3 = pl.pallas_call(
        functools.partial(_planes_unpool_kernel, stride=stride, padding=padding,
                          l_in=chunk_w // stride),
        out_shape=jax.ShapeDtypeStruct((stride, r_rows, w), x2.dtype),
        grid=grid, in_specs=in_specs,
        out_specs=pl.BlockSpec((stride, tile_r, w), lambda r: (0, r, 0)),
        compiler_params=params, cost_estimate=cost,
    )(x2, idx2)
    # Interleave the per-offset planes (layout plumbing in XLA; fallback path only).
    return jnp.transpose(out3, (1, 2, 0)).reshape(r_rows, w * stride)


_FUSED_OK = None


def _fused_path_available():
    """One-time probe: does the in-kernel lane repeat lower on this TPU, and is it exact?"""
    global _FUSED_OK
    if _FUSED_OK is None:
        try:
            r, w, stride = 8, 128, 2
            xp = (jnp.arange(r * w, dtype=jnp.float32) + 1.0).reshape(r, w)
            ip = (jnp.arange(w, dtype=jnp.int32) * stride)[None, :] + \
                 (jnp.arange(r, dtype=jnp.int32) % stride)[:, None]
            got = _unpool_interleaved(xp, ip, stride=stride, padding=0, chunk_w=w * stride,
                                      tile_r=8, vmem_limit=32 * 1024 * 1024, fused=True)
            got = jax.block_until_ready(got)
            ref = jnp.zeros((r, w * stride), jnp.float32).at[
                jnp.arange(r)[:, None], ip].set(xp)
            _FUSED_OK = bool(jnp.allclose(got, ref))
        except Exception:
            _FUSED_OK = False
    return _FUSED_OK


# --------------------------------------------------------------------------------------
# Public wrapper (forward of nn.MaxUnpool1d)
# --------------------------------------------------------------------------------------

def max_unpool1d(x, indices, kernel_size, stride, padding):
    """x: (N, C, L_in) pooled values; indices: (N, C, L_in) PyTorch-style flat indices
    into the unpooled length axis.  Returns (N, C, L_out)."""
    if kernel_size > stride:
        # TODO(synk): overlapping windows (kernel > stride) need last-writer-wins scatter.
        raise NotImplementedError("max_unpool1d assumes non-overlapping pooling (kernel <= stride)")

    n, c, l_in = x.shape
    l_out = (l_in - 1) * stride - 2 * padding + kernel_size
    chunk_w = l_in * stride                      # output columns produced per input chunk
    rows = n * c

    x2 = x.reshape(rows, l_in)
    idx2 = indices.reshape(rows, l_in)
    if idx2.dtype != jnp.int32:
        # TODO(synk): have the pooling counterpart emit int32 (or int8 window offsets)
        # directly; this cast is an extra full HBM pass over the index stream.
        idx2 = idx2.astype(jnp.int32)

    # Lane density: fold several length chunks into one lane row when L_in is short.
    fold = max(1, min(128 // max(l_in, 1), rows)) if l_in < 128 else 1
    w = fold * l_in

    r_f = pl.cdiv(rows, fold)                    # folded rows actually needed
    tile_r, vmem_limit = _tile_rows_and_vmem(r_f, w, x.dtype.itemsize, stride)
    r_f_p = pl.cdiv(r_f, tile_r) * tile_r
    rows_pad = r_f_p * fold
    if rows_pad != rows:
        x2 = jnp.pad(x2, ((0, rows_pad - rows), (0, 0)))
        idx2 = jnp.pad(idx2, ((0, rows_pad - rows), (0, 0)))
    x2 = x2.reshape(r_f_p, w)
    idx2 = idx2.reshape(r_f_p, w)

    fused = _fused_path_available()
    try:
        full = _unpool_interleaved(x2, idx2, stride=stride, padding=padding,
                                   chunk_w=chunk_w, tile_r=tile_r,
                                   vmem_limit=vmem_limit, fused=fused)
    except Exception:
        if not fused:
            raise
        full = _unpool_interleaved(x2, idx2, stride=stride, padding=padding,
                                   chunk_w=chunk_w, tile_r=tile_r,
                                   vmem_limit=vmem_limit, fused=False)

    # Un-fold (free row-major reshape) and trim the halo / row padding.
    out = full.reshape(rows_pad, chunk_w)[:rows, padding:padding + l_out]
    return out.reshape(n, c, l_out)


# --------------------------------------------------------------------------------------
# Demo / self-test
# --------------------------------------------------------------------------------------

def _maxpool1d_with_indices(y, kernel_size, stride):
    """Plain-JAX glue standing in for PoolingLayer('max_indices') (the counterpart).
    Non-overlapping case (stride == kernel_size, padding == 0), matching the module
    default padding = (pool_kernel - 1) // 2 == 0 for pool_kernel == 2."""
    n, c, l = y.shape
    l_pooled = l // stride
    yw = y[:, :, : l_pooled * stride].reshape(n, c, l_pooled, kernel_size)
    pooled = yw.max(axis=-1)
    arg = jnp.argmax(yw, axis=-1)
    base = (jnp.arange(l_pooled, dtype=jnp.int32) * stride)[None, None, :]
    return pooled, (base + arg).astype(jnp.int32)   # PyTorch-style flat indices (int32)


if __name__ == "__main__":
    # Module config: pool_kernel=2, pool_stride=2 -> padding = (2 - 1) // 2 = 0
    pool_kernel, pool_stride, padding = 2, 2, 0

    # Small deterministic example: N=2, C=4, L=16 -> pooled L_in=8, unpooled L_out=16
    key = jax.random.PRNGKey(0)
    y = jax.random.normal(key, (2, 4, 16), dtype=jnp.float32)

    # Counterpart MaxPool1d(return_indices=True) forward (glue, plain JAX)
    x_pooled, indices = _maxpool1d_with_indices(y, pool_kernel, pool_stride)

    # MaxUnPool1d forward (Pallas kernel)
    out = max_unpool1d(x_pooled, indices, pool_kernel, pool_stride, padding)
    out = jax.block_until_ready(out)

    # Reference scatter in plain JAX for verification
    n, c, l_in = x_pooled.shape
    l_out = (l_in - 1) * pool_stride - 2 * padding + pool_kernel
    rows = n * c
    ref = (jnp.zeros((rows, l_out), jnp.float32)
           .at[jnp.arange(rows)[:, None], indices.reshape(rows, l_in)]
           .set(x_pooled.reshape(rows, l_in))
           .reshape(n, c, l_out))

    assert out.shape == (2, 4, 16), out.shape
    assert jnp.allclose(out, ref, atol=1e-6), "mismatch vs reference scatter"
    print("KERNEL_OK")
</pallas_src>

<mosaic_0001>
module attributes {stable_mosaic.version = 11 : i64} {
  func.func @_fused_unpool_kernel(%arg0: i32, %arg1: memref<8x128xf32, #tpu.memory_space<vmem>>, %arg2: memref<8x128xi32, #tpu.memory_space<vmem>>, %arg3: memref<8x256xf32, #tpu.memory_space<vmem>>) attributes {dimension_semantics = [#tpu.dimension_semantics<parallel>], iteration_bounds = array<i64: 1>, scalar_prefetch = 0 : i64, scratch_operands = 0 : i64, tpu.core_type = #tpu.core_type<tc>, window_params = [{transform_indices = @transform_0, window_bounds = array<i64: 8, 128>}, {transform_indices = @transform_1, window_bounds = array<i64: 8, 128>}, {transform_indices = @transform_2, window_bounds = array<i64: 8, 256>}]} {
    %c0 = arith.constant 0 : index
    %c0_0 = arith.constant 0 : index
    %0 = vector.load %arg1[%c0, %c0_0] : memref<8x128xf32, #tpu.memory_space<vmem>>, vector<8x128xf32>
    %c0_1 = arith.constant 0 : index
    %c0_2 = arith.constant 0 : index
    %1 = vector.load %arg2[%c0_1, %c0_2] : memref<8x128xi32, #tpu.memory_space<vmem>>, vector<8x128xi32>
    %2 = vector.shape_cast %0 : vector<8x128xf32> to vector<8x128x1xf32>
    %3 = vector.broadcast %2 : vector<8x128x1xf32> to vector<8x128x2xf32>
    %4 = vector.shape_cast %3 : vector<8x128x2xf32> to vector<8x256xf32>
    %5 = vector.shape_cast %1 : vector<8x128xi32> to vector<8x128x1xi32>
    %6 = vector.broadcast %5 : vector<8x128x1xi32> to vector<8x128x2xi32>
    %7 = vector.shape_cast %6 : vector<8x128x2xi32> to vector<8x256xi32>
    %8 = tpu.iota {dimensions = array<i32: 1>} : vector<8x256xi32>
    %c256_i32 = arith.constant 256 : i32
    %c0_i32 = arith.constant 0 : i32
    %9 = arith.cmpi eq, %c256_i32, %c0_i32 : i32
    %c1_i32 = arith.constant 1 : i32
    %10 = arith.select %9, %c1_i32, %c256_i32 : i32
    %11 = vector.broadcast %10 : i32 to vector<8x256xi32>
    %12 = arith.remsi %8, %11 : vector<8x256xi32>
    %c0_i32_3 = arith.constant 0 : i32
    %13 = vector.broadcast %c0_i32_3 : i32 to vector<8x256xi32>
    %14 = arith.cmpi ne, %12, %13 : vector<8x256xi32>
    %c0_i32_4 = arith.constant 0 : i32
    %15 = vector.broadcast %c0_i32_4 : i32 to vector<8x256xi32>
    %16 = arith.cmpi slt, %12, %15 : vector<8x256xi32>
    %c0_i32_5 = arith.constant 0 : i32
    %17 = arith.cmpi slt, %10, %c0_i32_5 : i32
    %18 = vector.broadcast %17 : i1 to vector<8x256xi1>
    %19 = vector.broadcast %18 : vector<8x256xi1> to vector<8x256xi1>
    %20 = arith.xori %16, %19 : vector<8x256xi1>
    %21 = arith.andi %20, %14 : vector<8x256xi1>
    %22 = vector.broadcast %10 : i32 to vector<8x256xi32>
    %23 = arith.addi %12, %22 : vector<8x256xi32>
    %24 = arith.select %21, %23, %12 : vector<8x256xi1>, vector<8x256xi32>
    %c0_i32_6 = arith.constant 0 : i32
    %25 = vector.broadcast %c0_i32_6 : i32 to vector<8x256xi32>
    %26 = arith.subi %24, %25 : vector<8x256xi32>
    %27 = arith.cmpi eq, %7, %26 : vector<8x256xi32>
    %cst = arith.constant 0.000000e+00 : f32
    %28 = vector.broadcast %cst : f32 to vector<8x256xf32>
    %29 = arith.select %27, %4, %28 : vector<8x256xi1>, vector<8x256xf32>
    %c0_7 = arith.constant 0 : index
    %c0_8 = arith.constant 0 : index
    %30 = vector.load %arg3[%c0_7, %c0_8] : memref<8x256xf32, #tpu.memory_space<vmem>>, vector<8x256xf32>
    tpu.vector_store %arg3[%c0_7, %c0_8], %29 {strides = array<i32>} : memref<8x256xf32, #tpu.memory_space<vmem>>, vector<8x256xf32>,
    return
  }
  func.func @transform_0(%arg0: i32) -> (i32, i32) {
    %c0_i32 = arith.constant 0 : i32
    %c0_i32_0 = arith.constant 0 : i32
    return %arg0, %c0_i32 : i32, i32
  }
  func.func @transform_1(%arg0: i32) -> (i32, i32) {
    %c0_i32 = arith.constant 0 : i32
    %c0_i32_0 = arith.constant 0 : i32
    return %arg0, %c0_i32 : i32, i32
  }
  func.func @transform_2(%arg0: i32) -> (i32, i32) {
    %c0_i32 = arith.constant 0 : i32
    %c0_i32_0 = arith.constant 0 : i32
    return %arg0, %c0_i32 : i32, i32
  }
}

module attributes {stable_mosaic.version = 11 : i64} {
  func.func @_planes_unpool_kernel(%arg0: i32, %arg1: memref<8x64xf32, #tpu.memory_space<vmem>>, %arg2: memref<8x64xi32, #tpu.memory_space<vmem>>, %arg3: memref<2x8x64xf32, #tpu.memory_space<vmem>>) attributes {dimension_semantics = [#tpu.dimension_semantics<parallel>], iteration_bounds = array<i64: 1>, scalar_prefetch = 0 : i64, scratch_operands = 0 : i64, tpu.core_type = #tpu.core_type<tc>, window_params = [{transform_indices = @transform_0, window_bounds = array<i64: 8, 64>}, {transform_indices = @transform_1, window_bounds = array<i64: 8, 64>}, {transform_indices = @transform_2, window_bounds = array<i64: 2, 8, 64>}]} {
    %c0 = arith.constant 0 : index
    %c0_0 = arith.constant 0 : index
    %0 = vector.load %arg1[%c0, %c0_0] : memref<8x64xf32, #tpu.memory_space<vmem>>, vector<8x64xf32>
    %c0_1 = arith.constant 0 : index
    %c0_2 = arith.constant 0 : index
    %1 = vector.load %arg2[%c0_1, %c0_2] : memref<8x64xi32, #tpu.memory_space<vmem>>, vector<8x64xi32>
    %2 = tpu.iota {dimensions = array<i32: 1>} : vector<8x64xi32>
    %c8_i32 = arith.constant 8 : i32
    %c0_i32 = arith.constant 0 : i32
    %3 = arith.cmpi eq, %c8_i32, %c0_i32 : i32
    %c1_i32 = arith.constant 1 : i32
    %4 = arith.select %3, %c1_i32, %c8_i32 : i32
    %5 = vector.broadcast %4 : i32 to vector<8x64xi32>
    %6 = arith.remsi %2, %5 : vector<8x64xi32>
    %c0_i32_3 = arith.constant 0 : i32
    %7 = vector.broadcast %c0_i32_3 : i32 to vector<8x64xi32>
    %8 = arith.cmpi ne, %6, %7 : vector<8x64xi32>
    %c0_i32_4 = arith.constant 0 : i32
    %9 = vector.broadcast %c0_i32_4 : i32 to vector<8x64xi32>
    %10 = arith.cmpi slt, %6, %9 : vector<8x64xi32>
    %c0_i32_5 = arith.constant 0 : i32
    %11 = arith.cmpi slt, %4, %c0_i32_5 : i32
    %12 = vector.broadcast %11 : i1 to vector<8x64xi1>
    %13 = vector.broadcast %12 : vector<8x64xi1> to vector<8x64xi1>
    %14 = arith.xori %10, %13 : vector<8x64xi1>
    %15 = arith.andi %14, %8 : vector<8x64xi1>
    %16 = vector.broadcast %4 : i32 to vector<8x64xi32>
    %17 = arith.addi %6, %16 : vector<8x64xi32>
    %18 = arith.select %15, %17, %6 : vector<8x64xi1>, vector<8x64xi32>
    %c2_i32 = arith.constant 2 : i32
    %19 = vector.broadcast %c2_i32 : i32 to vector<8x64xi32>
    %20 = arith.muli %18, %19 : vector<8x64xi32>
    %c0_i32_6 = arith.constant 0 : i32
    %21 = vector.broadcast %c0_i32_6 : i32 to vector<8x64xi32>
    %22 = arith.subi %20, %21 : vector<8x64xi32>
    %23 = arith.subi %1, %22 : vector<8x64xi32>
    %cst = arith.constant 0.000000e+00 : f32
    %24 = vector.broadcast %cst : f32 to vector<8x64xf32>
    %c0_i32_7 = arith.constant 0 : i32
    %25 = vector.broadcast %c0_i32_7 : i32 to vector<8x64xi32>
    %26 = arith.cmpi eq, %23, %25 : vector<8x64xi32>
    %27 = arith.select %26, %0, %24 : vector<8x64xi1>, vector<8x64xf32>
    %c0_8 = arith.constant 0 : index
    %c0_9 = arith.constant 0 : index
    %c0_10 = arith.constant 0 : index
    %28 = vector.load %arg3[%c0_8, %c0_9, %c0_10] : memref<2x8x64xf32, #tpu.memory_space<vmem>>, vector<1x8x64xf32>
    %29 = vector.shape_cast %28 : vector<1x8x64xf32> to vector<8x64xf32>
    %30 = vector.shape_cast %27 : vector<8x64xf32> to vector<1x8x64xf32>
    tpu.vector_store %arg3[%c0_8, %c0_9, %c0_10], %30 {strides = array<i32>} : memref<2x8x64xf32, #tpu.memory_space<vmem>>, vector<1x8x64xf32>,
    %c1_i32_11 = arith.constant 1 : i32
    %31 = vector.broadcast %c1_i32_11 : i32 to vector<8x64xi32>
    %32 = arith.cmpi eq, %23, %31 : vector<8x64xi32>
    %33 = arith.select %32, %0, %24 : vector<8x64xi1>, vector<8x64xf32>
    %c1 = arith.constant 1 : index
    %c0_12 = arith.constant 0 : index
    %c0_13 = arith.constant 0 : index
    %34 = vector.load %arg3[%c1, %c0_12, %c0_13] : memref<2x8x64xf32, #tpu.memory_space<vmem>>, vector<1x8x64xf32>
    %35 = vector.shape_cast %34 : vector<1x8x64xf32> to vector<8x64xf32>
    %36 = vector.shape_cast %33 : vector<8x64xf32> to vector<1x8x64xf32>
    tpu.vector_store %arg3[%c1, %c0_12, %c0_13], %36 {strides = array<i32>} : memref<2x8x64xf32, #tpu.memory_space<vmem>>, vector<1x8x64xf32>,
    return
  }
  func.func @transform_0(%arg0: i32) -> (i32, i32) {
    %c0_i32 = arith.constant 0 : i32
    %c0_i32_0 = arith.constant 0 : i32
    return %arg0, %c0_i32 : i32, i32
  }
  func.func @transform_1(%arg0: i32) -> (i32, i32) {
    %c0_i32 = arith.constant 0 : i32
    %c0_i32_0 = arith.constant 0 : i32
    return %arg0, %c0_i32 : i32, i32
  }
  func.func @transform_2(%arg0: i32) -> (i32, i32, i32) {
    %c0_i32 = arith.constant 0 : i32
    %c0_i32_0 = arith.constant 0 : i32
    %c0_i32_1 = arith.constant 0 : i32
    return %c0_i32, %arg0, %c0_i32_0 : i32, i32, i32
  }
}

</mosaic_0001>

<llo_original>
// kernel: tpu_custom_call.1
$region0: #{tpu_custom_call.1}
  #allocation0 [shape = 'u32[]', space=smem, size = 0x4, offset = 0x4, fixed_abs, tag = 'smem constant byte address 0x4 - core index']
  #allocation1 [shape = 'u32[144,128]{1,0:T(1,128)}', space=vmem, size = 0x12000, scoped, tag = 'internal scratch']
  %s0 = inlined_call_operand.hbm [shape: f32[8,128], index: 0, kind: input, shape index: {}]
  %s1 = inlined_call_operand.hbm [shape: s32[8,128], index: 1, kind: input, shape index: {}]
  %s2 = inlined_call_operand.hbm [shape: f32[8,256], index: 2, kind: output, shape index: {}]
  %s3 = sld [smem:[#allocation0]]
  $region26: #{tpu_custom_call.1} parent=0
    _
  %s5 = ssub.s32 1, %s3
  %s6 = scalar_select 0, %s5, %s3
  $region1: #{tpu_custom_call.1} parent=0
    #allocation2 [shape = 'u8[4096]{0}', space=vmem, size = 0x1000, scoped, tag = 'input window, operand 0, single buffered']
    #allocation3 [shape = 's32[1]{0}', space=sflag, size = 0x4, scoped, tag = 'scoped memory for tpu_custom_call.1']
    #allocation4 [shape = 's32[1]{0}', space=sflag, size = 0x4, scoped, tag = 'scoped memory for tpu_custom_call.1']
    #allocation5 [shape = 'u8[4096]{0}', space=vmem, size = 0x1000, scoped, tag = 'input window, operand 1, single buffered']
    #allocation6 [shape = 's32[1]{0}', space=sflag, size = 0x4, scoped, tag = 'scoped memory for tpu_custom_call.1']
    #allocation7 [shape = 'u8[8192]{0}', space=vmem, size = 0x2000, scoped, tag = 'output window, operand 0, single buffered']
    %7 = vsyncpa [#allocation3], 0
    %8 = vsyncpa [#allocation6], 0
    %9 = vsyncpa [#allocation4], 0
    // Predicated region
    $region2: #{tpu_custom_call.1} parent=1 // pred_check
      _
    $region3: #{tpu_custom_call.1} parent=1 // pred_check_branch
      %11 = sbr.rel (0) target = $region5
    $region4: #{tpu_custom_call.1} parent=1 // pred_region
      %s13 = ssub.s32 128, 128
      %14 = vsyncadd [#allocation3], %s13
      %s16 = sshll.u32 [#allocation2], 4
      %s17 = int_to_ptr.vmem [resolvable:$true] %s16
      %19 = dma.hbm_to_vmem [thread:$0]  %s0, 128, %s17, [#allocation3]
    $region5: #{tpu_custom_call.1} parent=1 // pred_fallthru
      _
    // Predicated region
    $region6: #{tpu_custom_call.1} parent=1 // pred_check
      _
    $region7: #{tpu_custom_call.1} parent=1 // pred_check_branch
      %21 = sbr.rel (0) target = $region9
    $region8: #{tpu_custom_call.1} parent=1 // pred_region
      %s23 = ssub.s32 128, 128
      %24 = vsyncadd [#allocation6], %s23
      %s26 = sshll.u32 [#allocation5], 4
      %s27 = int_to_ptr.vmem [resolvable:$true] %s26
      %29 = dma.hbm_to_vmem [thread:$0]  %s1, 128, %s27, [#allocation6]
    $region9: #{tpu_custom_call.1} parent=1 // pred_fallthru
      _
    // Predicated region
    $region10: #{tpu_custom_call.1} parent=1 // pred_check
      _
    $region11: #{tpu_custom_call.1} parent=1 // pred_check_branch
      %31 = sbr.rel (0) target = $region13
    $region12: #{tpu_custom_call.1} parent=1 // pred_region
      %32 = dma.done [#allocation3], 128
    $region13: #{tpu_custom_call.1} parent=1 // pred_fallthru
      _
    // Predicated region
    $region14: #{tpu_custom_call.1} parent=1 // pred_check
      _
    $region15: #{tpu_custom_call.1} parent=1 // pred_check_branch
      %34 = sbr.rel (0) target = $region17
    $region16: #{tpu_custom_call.1} parent=1 // pred_region
      %35 = dma.done [#allocation6], 128
    $region17: #{tpu_custom_call.1} parent=1 // pred_fallthru
      _
    %v36 = vld [vmem:[#allocation2] sm:$0xff]
    %v37 = vld [vmem:[#allocation5] sm:$0xff]
    %v38 = vlaneseq
    %v39 = vshrl.u32 %v38, 7
    %v40 = vsub.s32 0, %v39
    %v41 = vrot.slane %v36, %v40
    %43 = vbcast.lane.b32.xlu0 %v41, 256
    %v44 = vpop.permute.xlu0 %43
    %s46 = sor.u32 256, 8
    %47 = vbcast.lane.b32.xlu0 %v41, %s46
    %v48 = vpop.permute.xlu0 %47
    %s50 = sor.u32 256, 16
    %51 = vbcast.lane.b32.xlu0 %v41, %s50
    %v52 = vpop.permute.xlu0 %51
    %s54 = sor.u32 256, 24
    %55 = vbcast.lane.b32.xlu0 %v41, %s54
    %v56 = vpop.permute.xlu0 %55
    %s58 = sor.u32 256, 32
    %59 = vbcast.lane.b32.xlu0 %v41, %s58
    %v60 = vpop.permute.xlu0 %59
    %s62 = sor.u32 256, 40
    %63 = vbcast.lane.b32.xlu0 %v41, %s62
    %v64 = vpop.permute.xlu0 %63
    %s66 = sor.u32 256, 48
    %67 = vbcast.lane.b32.xlu0 %v41, %s66
    %v68 = vpop.permute.xlu0 %67
    %s70 = sor.u32 256, 56
    %71 = vbcast.lane.b32.xlu0 %v41, %s70
    %v72 = vpop.permute.xlu0 %71
    %s74 = sor.u32 256, 64
    %75 = vbcast.lane.b32.xlu0 %v41, %s74
    %v76 = vpop.permute.xlu0 %75
    %s78 = sor.u32 256, 72
    %79 = vbcast.lane.b32.xlu0 %v41, %s78
    %v80 = vpop.permute.xlu0 %79
    %s82 = sor.u32 256, 80
    %83 = vbcast.lane.b32.xlu0 %v41, %s82
    %v84 = vpop.permute.xlu0 %83
    %s86 = sor.u32 256, 88
    %87 = vbcast.lane.b32.xlu0 %v41, %s86
    %v88 = vpop.permute.xlu0 %87
    %s90 = sor.u32 256, 96
    %91 = vbcast.lane.b32.xlu0 %v41, %s90
    %v92 = vpop.permute.xlu0 %91
    %s94 = sor.u32 256, 104
    %95 = vbcast.lane.b32.xlu0 %v41, %s94
    %v96 = vpop.permute.xlu0 %95
    %s98 = sor.u32 256, 112
    %99 = vbcast.lane.b32.xlu0 %v41, %s98
    %v100 = vpop.permute.xlu0 %99
    %s102 = sor.u32 256, 120
    %103 = vbcast.lane.b32.xlu0 %v41, %s102
    %v104 = vpop.permute.xlu0 %103
    %v105 = vlaneseq
    %v106 = vshrl.u32 %v105, 7
    %v107 = vsub.s32 1, %v106
    %v108 = vrot.slane %v36, %v107
    %110 = vbcast.lane.b32.xlu0 %v108, 256
    %v111 = vpop.permute.xlu0 %110
    %s113 = sor.u32 256, 8
    %114 = vbcast.lane.b32.xlu0 %v108, %s113
    %v115 = vpop.permute.xlu0 %114
    %s117 = sor.u32 256, 16
    %118 = vbcast.lane.b32.xlu0 %v108, %s117
    %v119 = vpop.permute.xlu0 %118
    %s121 = sor.u32 256, 24
    %122 = vbcast.lane.b32.xlu0 %v108, %s121
    %v123 = vpop.permute.xlu0 %122
    %s125 = sor.u32 256, 32
    %126 = vbcast.lane.b32.xlu0 %v108, %s125
    %v127 = vpop.permute.xlu0 %126
    %s129 = sor.u32 256, 40
    %130 = vbcast.lane.b32.xlu0 %v108, %s129
    %v131 = vpop.permute.xlu0 %130
    %s133 = sor.u32 256, 48
    %134 = vbcast.lane.b32.xlu0 %v108, %s133
    %v135 = vpop.permute.xlu0 %134
    %s137 = sor.u32 256, 56
    %138 = vbcast.lane.b32.xlu0 %v108, %s137
    %v139 = vpop.permute.xlu0 %138
    %s141 = sor.u32 256, 64
    %142 = vbcast.lane.b32.xlu0 %v108, %s141
    %v143 = vpop.permute.xlu0 %142
    %s145 = sor.u32 256, 72
    %146 = vbcast.lane.b32.xlu0 %v108, %s145
    %v147 = vpop.permute.xlu0 %146
    %s149 = sor.u32 256, 80
    %150 = vbcast.lane.b32.xlu0 %v108, %s149
    %v151 = vpop.permute.xlu0 %150
    %s153 = sor.u32 256, 88
    %154 = vbcast.lane.b32.xlu0 %v108, %s153
    %v155 = vpop.permute.xlu0 %154
    %s157 = sor.u32 256, 96
    %158 = vbcast.lane.b32.xlu0 %v108, %s157
    %v159 = vpop.permute.xlu0 %158
    %s161 = sor.u32 256, 104
    %162 = vbcast.lane.b32.xlu0 %v108, %s161
    %v163 = vpop.permute.xlu0 %162
    %s165 = sor.u32 256, 112
    %166 = vbcast.lane.b32.xlu0 %v108, %s165
    %v167 = vpop.permute.xlu0 %166
    %s169 = sor.u32 256, 120
    %170 = vbcast.lane.b32.xlu0 %v108, %s169
    %v171 = vpop.permute.xlu0 %170
    %v172 = vlaneseq
    %v173 = vshrl.u32 %v172, 7
    %v174 = vsub.s32 2, %v173
    %v175 = vrot.slane %v36, %v174
    %177 = vbcast.lane.b32.xlu0 %v175, 256
    %v178 = vpop.permute.xlu0 %177
    %s180 = sor.u32 256, 8
    %181 = vbcast.lane.b32.xlu0 %v175, %s180
    %v182 = vpop.permute.xlu0 %181
    %s184 = sor.u32 256, 16
    %185 = vbcast.lane.b32.xlu0 %v175, %s184
    %v186 = vpop.permute.xlu0 %185
    %s188 = sor.u32 256, 24
    %189 = vbcast.lane.b32.xlu0 %v175, %s188
    %v190 = vpop.permute.xlu0 %189
    %s192 = sor.u32 256, 32
    %193 = vbcast.lane.b32.xlu0 %v175, %s192
    %v194 = vpop.permute.xlu0 %193
    %s196 = sor.u32 256, 40
    %197 = vbcast.lane.b32.xlu0 %v175, %s196
    %v198 = vpop.permute.xlu0 %197
    %s200 = sor.u32 256, 48
    %201 = vbcast.lane.b32.xlu0 %v175, %s200
    %v202 = vpop.permute.xlu0 %201
    %s204 = sor.u32 256, 56
    %205 = vbcast.lane.b32.xlu0 %v175, %s204
    %v206 = vpop.permute.xlu0 %205
    %s208 = sor.u32 256, 64
    %209 = vbcast.lane.b32.xlu0 %v175, %s208
    %v210 = vpop.permute.xlu0 %209
    %s212 = sor.u32 256, 72
    %213 = vbcast.lane.b32.xlu0 %v175, %s212
    %v214 = vpop.permute.xlu0 %213
    %s216 = sor.u32 256, 80
    %217 = vbcast.lane.b32.xlu0 %v175, %s216
    %v218 = vpop.permute.xlu0 %217
    %s220 = sor.u32 256, 88
    %221 = vbcast.lane.b32.xlu0 %v175, %s220
    %v222 = vpop.permute.xlu0 %221
    %s224 = sor.u32 256, 96
    %225 = vbcast.lane.b32.xlu0 %v175, %s224
    %v226 = vpop.permute.xlu0 %225
    %s228 = sor.u32 256, 104
    %229 = vbcast.lane.b32.xlu0 %v175, %s228
    %v230 = vpop.permute.xlu0 %229
    %s232 = sor.u32 256, 112
    %233 = vbcast.lane.b32.xlu0 %v175, %s232
    %v234 = vpop.permute.xlu0 %233
    %s236 = sor.u32 256, 120
    %237 = vbcast.lane.b32.xlu0 %v175, %s236
    %v238 = vpop.permute.xlu0 %237
    %v239 = vlaneseq
    %v240 = vshrl.u32 %v239, 7
    %v241 = vsub.s32 3, %v240
    %v242 = vrot.slane %v36, %v241
    %244 = vbcast.lane.b32.xlu0 %v242, 256
    %v245 = vpop.permute.xlu0 %244
    %s247 = sor.u32 256, 8
    %248 = vbcast.lane.b32.xlu0 %v242, %s247
    %v249 = vpop.permute.xlu0 %248
    %s251 = sor.u32 256, 16
    %252 = vbcast.lane.b32.xlu0 %v242, %s251
    %v253 = vpop.permute.xlu0 %252
    %s255 = sor.u32 256, 24
    %256 = vbcast.lane.b32.xlu0 %v242, %s255
    %v257 = vpop.permute.xlu0 %256
    %s259 = sor.u32 256, 32
    %260 = vbcast.lane.b32.xlu0 %v242, %s259
    %v261 = vpop.permute.xlu0 %260
    %s263 = sor.u32 256, 40
    %264 = vbcast.lane.b32.xlu0 %v242, %s263
    %v265 = vpop.permute.xlu0 %264
    %s267 = sor.u32 256, 48
    %268 = vbcast.lane.b32.xlu0 %v242, %s267
    %v269 = vpop.permute.xlu0 %268
    %s271 = sor.u32 256, 56
    %272 = vbcast.lane.b32.xlu0 %v242, %s271
    %v273 = vpop.permute.xlu0 %272
    %s275 = sor.u32 256, 64
    %276 = vbcast.lane.b32.xlu0 %v242, %s275
    %v277 = vpop.permute.xlu0 %276
    %s279 = sor.u32 256, 72
    %280 = vbcast.lane.b32.xlu0 %v242, %s279
    %v281 = vpop.permute.xlu0 %280
    %s283 = sor.u32 256, 80
    %284 = vbcast.lane.b32.xlu0 %v242, %s283
    %v285 = vpop.permute.xlu0 %284
    %s287 = sor.u32 256, 88
    %288 = vbcast.lane.b32.xlu0 %v242, %s287
    %v289 = vpop.permute.xlu0 %288
    %s291 = sor.u32 256, 96
    %292 = vbcast.lane.b32.xlu0 %v242, %s291
    %v293 = vpop.permute.xlu0 %292
    %s295 = sor.u32 256, 104
    %296 = vbcast.lane.b32.xlu0 %v242, %s295
    %v297 = vpop.permute.xlu0 %296
    %s299 = sor.u32 256, 112
    %300 = vbcast.lane.b32.xlu0 %v242, %s299
    %v301 = vpop.permute.xlu0 %300
    %s303 = sor.u32 256, 120
    %304 = vbcast.lane.b32.xlu0 %v242, %s303
    %v305 = vpop.permute.xlu0 %304
    %v306 = vlaneseq
    %v307 = vshrl.u32 %v306, 7
    %v308 = vsub.s32 4, %v307
    %v309 = vrot.slane %v36, %v308
    %311 = vbcast.lane.b32.xlu0 %v309, 256
    %v312 = vpop.permute.xlu0 %311
    %s314 = sor.u32 256, 8
    %315 = vbcast.lane.b32.xlu0 %v309, %s314
    %v316 = vpop.permute.xlu0 %315
    %s318 = sor.u32 256, 16
    %319 = vbcast.lane.b32.xlu0 %v309, %s318
    %v320 = vpop.permute.xlu0 %319
    %s322 = sor.u32 256, 24
    %323 = vbcast.lane.b32.xlu0 %v309, %s322
    %v324 = vpop.permute.xlu0 %323
    %s326 = sor.u32 256, 32
    %327 = vbcast.lane.b32.xlu0 %v309, %s326
    %v328 = vpop.permute.xlu0 %327
    %s330 = sor.u32 256, 40
    %331 = vbcast.lane.b32.xlu0 %v309, %s330
    %v332 = vpop.permute.xlu0 %331
    %s334 = sor.u32 256, 48
    %335 = vbcast.lane.b32.xlu0 %v309, %s334
    %v336 = vpop.permute.xlu0 %335
    %s338 = sor.u32 256, 56
    %339 = vbcast.lane.b32.xlu0 %v309, %s338
    %v340 = vpop.permute.xlu0 %339
    %s342 = sor.u32 256, 64
    %343 = vbcast.lane.b32.xlu0 %v309, %s342
    %v344 = vpop.permute.xlu0 %343
    %s346 = sor.u32 256, 72
    %347 = vbcast.lane.b32.xlu0 %v309, %s346
    %v348 = vpop.permute.xlu0 %347
    %s350 = sor.u32 256, 80
    %351 = vbcast.lane.b32.xlu0 %v309, %s350
    %v352 = vpop.permute.xlu0 %351
    %s354 = sor.u32 256, 88
    %355 = vbcast.lane.b32.xlu0 %v309, %s354
    %v356 = vpop.permute.xlu0 %355
    %s358 = sor.u32 256, 96
    %359 = vbcast.lane.b32.xlu0 %v309, %s358
    %v360 = vpop.permute.xlu0 %359
    %s362 = sor.u32 256, 104
    %363 = vbcast.lane.b32.xlu0 %v309, %s362
    %v364 = vpop.permute.xlu0 %363
    %s366 = sor.u32 256, 112
    %367 = vbcast.lane.b32.xlu0 %v309, %s366
    %v368 = vpop.permute.xlu0 %367
    %s370 = sor.u32 256, 120
    %371 = vbcast.lane.b32.xlu0 %v309, %s370
    %v372 = vpop.permute.xlu0 %371
    %v373 = vlaneseq
    %v374 = vshrl.u32 %v373, 7
    %v375 = vsub.s32 5, %v374
    %v376 = vrot.slane %v36, %v375
    %378 = vbcast.lane.b32.xlu0 %v376, 256
    %v379 = vpop.permute.xlu0 %378
    %s381 = sor.u32 256, 8
    %382 = vbcast.lane.b32.xlu0 %v376, %s381
    %v383 = vpop.permute.xlu0 %382
    %s385 = sor.u32 256, 16
    %386 = vbcast.lane.b32.xlu0 %v376, %s385
    %v387 = vpop.permute.xlu0 %386
    %s389 = sor.u32 256, 24
    %390 = vbcast.lane.b32.xlu0 %v376, %s389
    %v391 = vpop.permute.xlu0 %390
    %s393 = sor.u32 256, 32
    %394 = vbcast.lane.b32.xlu0 %v376, %s393
    %v395 = vpop.permute.xlu0 %394
    %s397 = sor.u32 256, 40
    %398 = vbcast.lane.b32.xlu0 %v376, %s397
    %v399 = vpop.permute.xlu0 %398
    %s401 = sor.u32 256, 48
    %402 = vbcast.lane.b32.xlu0 %v376, %s401
    %v403 = vpop.permute.xlu0 %402
    %s405 = sor.u32 256, 56
    %406 = vbcast.lane.b32.xlu0 %v376, %s405
    %v407 = vpop.permute.xlu0 %406
    %s409 = sor.u32 256, 64
    %410 = vbcast.lane.b32.xlu0 %v376, %s409
    %v411 = vpop.permute.xlu0 %410
    %s413 = sor.u32 256, 72
    %414 = vbcast.lane.b32.xlu0 %v376, %s413
    %v415 = vpop.permute.xlu0 %414
    %s417 = sor.u32 256, 80
    %418 = vbcast.lane.b32.xlu0 %v376, %s417
    %v419 = vpop.permute.xlu0 %418
    %s421 = sor.u32 256, 88
    %422 = vbcast.lane.b32.xlu0 %v376, %s421
    %v423 = vpop.permute.xlu0 %422
    %s425 = sor.u32 256, 96
    %426 = vbcast.lane.b32.xlu0 %v376, %s425
    %v427 = vpop.permute.xlu0 %426
    %s429 = sor.u32 256, 104
    %430 = vbcast.lane.b32.xlu0 %v376, %s429
    %v431 = vpop.permute.xlu0 %430
    %s433 = sor.u32 256, 112
    %434 = vbcast.lane.b32.xlu0 %v376, %s433
    %v435 = vpop.permute.xlu0 %434
    %s437 = sor.u32 256, 120
    %438 = vbcast.lane.b32.xlu0 %v376, %s437
    %v439 = vpop.permute.xlu0 %438
    %v440 = vlaneseq
    %v441 = vshrl.u32 %v440, 7
    %v442 = vsub.s32 6, %v441
    %v443 = vrot.slane %v36, %v442
    %445 = vbcast.lane.b32.xlu0 %v443, 256
    %v446 = vpop.permute.xlu0 %445
    %s448 = sor.u32 256, 8
    %449 = vbcast.lane.b32.xlu0 %v443, %s448
    %v450 = vpop.permute.xlu0 %449
    %s452 = sor.u32 256, 16
    %453 = vbcast.lane.b32.xlu0 %v443, %s452
    %v454 = vpop.permute.xlu0 %453
    %s456 = sor.u32 256, 24
    %457 = vbcast.lane.b32.xlu0 %v443, %s456
    %v458 = vpop.permute.xlu0 %457
    %s460 = sor.u32 256, 32
    %461 = vbcast.lane.b32.xlu0 %v443, %s460
    %v462 = vpop.permute.xlu0 %461
    %s464 = sor.u32 256, 40
    %465 = vbcast.lane.b32.xlu0 %v443, %s464
    %v466 = vpop.permute.xlu0 %465
    %s468 = sor.u32 256, 48
    %469 = vbcast.lane.b32.xlu0 %v443, %s468
    %v470 = vpop.permute.xlu0 %469
    %s472 = sor.u32 256, 56
    %473 = vbcast.lane.b32.xlu0 %v443, %s472
    %v474 = vpop.permute.xlu0 %473
    %s476 = sor.u32 256, 64
    %477 = vbcast.lane.b32.xlu0 %v443, %s476
    %v478 = vpop.permute.xlu0 %477
    %s480 = sor.u32 256, 72
    %481 = vbcast.lane.b32.xlu0 %v443, %s480
    %v482 = vpop.permute.xlu0 %481
    %s484 = sor.u32 256, 80
    %485 = vbcast.lane.b32.xlu0 %v443, %s484
    %v486 = vpop.permute.xlu0 %485
    %s488 = sor.u32 256, 88
    %489 = vbcast.lane.b32.xlu0 %v443, %s488
    %v490 = vpop.permute.xlu0 %489
    %s492 = sor.u32 256, 96
    %493 = vbcast.lane.b32.xlu0 %v443, %s492
    %v494 = vpop.permute.xlu0 %493
    %s496 = sor.u32 256, 104
    %497 = vbcast.lane.b32.xlu0 %v443, %s496
    %v498 = vpop.permute.xlu0 %497
    %s500 = sor.u32 256, 112
    %501 = vbcast.lane.b32.xlu0 %v443, %s500
    %v502 = vpop.permute.xlu0 %501
    %s504 = sor.u32 256, 120
    %505 = vbcast.lane.b32.xlu0 %v443, %s504
    %v506 = vpop.permute.xlu0 %505
    %v507 = vlaneseq
    %v508 = vshrl.u32 %v507, 7
    %v509 = vsub.s32 7, %v508
    %v510 = vrot.slane %v36, %v509
    %512 = vbcast.lane.b32.xlu0 %v510, 256
    %v513 = vpop.permute.xlu0 %512
    %s515 = sor.u32 256, 8
    %516 = vbcast.lane.b32.xlu0 %v510, %s515
    %v517 = vpop.permute.xlu0 %516
    %s519 = sor.u32 256, 16
    %520 = vbcast.lane.b32.xlu0 %v510, %s519
    %v521 = vpop.permute.xlu0 %520
    %s523 = sor.u32 256, 24
    %524 = vbcast.lane.b32.xlu0 %v510, %s523
    %v525 = vpop.permute.xlu0 %524
    %s527 = sor.u32 256, 32
    %528 = vbcast.lane.b32.xlu0 %v510, %s527
    %v529 = vpop.permute.xlu0 %528
    %s531 = sor.u32 256, 40
    %532 = vbcast.lane.b32.xlu0 %v510, %s531
    %v533 = vpop.permute.xlu0 %532
    %s535 = sor.u32 256, 48
    %536 = vbcast.lane.b32.xlu0 %v510, %s535
    %v537 = vpop.permute.xlu0 %536
    %s539 = sor.u32 256, 56
    %540 = vbcast.lane.b32.xlu0 %v510, %s539
    %v541 = vpop.permute.xlu0 %540
    %s543 = sor.u32 256, 64
    %544 = vbcast.lane.b32.xlu0 %v510, %s543
    %v545 = vpop.permute.xlu0 %544
    %s547 = sor.u32 256, 72
    %548 = vbcast.lane.b32.xlu0 %v510, %s547
    %v549 = vpop.permute.xlu0 %548
    %s551 = sor.u32 256, 80
    %552 = vbcast.lane.b32.xlu0 %v510, %s551
    %v553 = vpop.permute.xlu0 %552
    %s555 = sor.u32 256, 88
    %556 = vbcast.lane.b32.xlu0 %v510, %s555
    %v557 = vpop.permute.xlu0 %556
    %s559 = sor.u32 256, 96
    %560 = vbcast.lane.b32.xlu0 %v510, %s559
    %v561 = vpop.permute.xlu0 %560
    %s563 = sor.u32 256, 104
    %564 = vbcast.lane.b32.xlu0 %v510, %s563
    %v565 = vpop.permute.xlu0 %564
    %s567 = sor.u32 256, 112
    %568 = vbcast.lane.b32.xlu0 %v510, %s567
    %v569 = vpop.permute.xlu0 %568
    %s571 = sor.u32 256, 120
    %572 = vbcast.lane.b32.xlu0 %v510, %s571
    %v573 = vpop.permute.xlu0 %572
    %v574 = vcombine.low %v44, %v178
    %v575 = vcombine.high %v44, %v178
    %v577 = vunpack.c.l.s4 1983009808
    %v578 = vunpack.c.0.s8 %v577
    %v579 = vlaneseq
    %v580 = vshrl.u32 %v579, 7
    %v581 = vsub.s32 %v578, %v580
    %v582 = vrot.slane %v574, %v581
    %v584 = vunpack.c.l.s4 1983009808
    %v585 = vunpack.c.0.s8 %v584
    %v586 = vlaneseq
    %v587 = vshrl.u32 %v586, 7
    %v588 = vsub.s32 %v585, %v587
    %v589 = vrot.slane %v575, %v588
    %v590 = vcombine.low %v111, %v245
    %v591 = vcombine.high %v111, %v245
    %v593 = vunpack.c.l.s4 1983009808
    %v594 = vunpack.c.0.s8 %v593
    %v595 = vlaneseq
    %v596 = vshrl.u32 %v595, 7
    %v597 = vsub.s32 %v594, %v596
    %v598 = vrot.slane %v590, %v597
    %v600 = vunpack.c.l.s4 1983009808
    %v601 = vunpack.c.0.s8 %v600
    %v602 = vlaneseq
    %v603 = vshrl.u32 %v602, 7
    %v604 = vsub.s32 %v601, %v603
    %v605 = vrot.slane %v591, %v604
    %v606 = vcombine.low %v312, %v446
    %v607 = vcombine.high %v312, %v446
    %v609 = vunpack.c.l.s4 1983009808
    %v610 = vunpack.c.0.s8 %v609
    %v611 = vlaneseq
    %v612 = vshrl.u32 %v611, 7
    %v613 = vsub.s32 %v610, %v612
    %v614 = vrot.slane %v606, %v613
    %v616 = vunpack.c.l.s4 1983009808
    %v617 = vunpack.c.0.s8 %v616
    %v618 = vlaneseq
    %v619 = vshrl.u32 %v618, 7
    %v620 = vsub.s32 %v617, %v619
    %v621 = vrot.slane %v607, %v620
    %v622 = vcombine.low %v379, %v513
    %v623 = vcombine.high %v379, %v513
    %v625 = vunpack.c.l.s4 1983009808
    %v626 = vunpack.c.0.s8 %v625
    %v627 = vlaneseq
    %v628 = vshrl.u32 %v627, 7
    %v629 = vsub.s32 %v626, %v628
    %v630 = vrot.slane %v622, %v629
    %v632 = vunpack.c.l.s4 1983009808
    %v633 = vunpack.c.0.s8 %v632
    %v634 = vlaneseq
    %v635 = vshrl.u32 %v634, 7
    %v636 = vsub.s32 %v633, %v635
    %v637 = vrot.slane %v623, %v636
    %v638 = vcombine.low %v582, %v598
    %v639 = vcombine.high %v582, %v598
    %v641 = vunpack.c.l.s4 1934713408
    %v642 = vunpack.c.0.s8 %v641
    %v643 = vlaneseq
    %v644 = vshrl.u32 %v643, 7
    %v645 = vsub.s32 %v642, %v644
    %v646 = vrot.slane %v638, %v645
    %v648 = vunpack.c.l.s4 1934713408
    %v649 = vunpack.c.0.s8 %v648
    %v650 = vlaneseq
    %v651 = vshrl.u32 %v650, 7
    %v652 = vsub.s32 %v649, %v651
    %v653 = vrot.slane %v639, %v652
    %v654 = vcombine.low %v589, %v605
    %v655 = vcombine.high %v589, %v605
    %v657 = vunpack.c.l.s4 1934713408
    %v658 = vunpack.c.0.s8 %v657
    %v659 = vlaneseq
    %v660 = vshrl.u32 %v659, 7
    %v661 = vsub.s32 %v658, %v660
    %v662 = vrot.slane %v654, %v661
    %v664 = vunpack.c.l.s4 1934713408
    %v665 = vunpack.c.0.s8 %v664
    %v666 = vlaneseq
    %v667 = vshrl.u32 %v666, 7
    %v668 = vsub.s32 %v665, %v667
    %v669 = vrot.slane %v655, %v668
    %v670 = vcombine.low %v614, %v630
    %v671 = vcombine.high %v614, %v630
    %v673 = vunpack.c.l.s4 1934713408
    %v674 = vunpack.c.0.s8 %v673
    %v675 = vlaneseq
    %v676 = vshrl.u32 %v675, 7
    %v677 = vsub.s32 %v674, %v676
    %v678 = vrot.slane %v670, %v677
    %v680 = vunpack.c.l.s4 1934713408
    %v681 = vunpack.c.0.s8 %v680
    %v682 = vlaneseq
    %v683 = vshrl.u32 %v682, 7
    %v684 = vsub.s32 %v681, %v683
    %v685 = vrot.slane %v671, %v684
    %v686 = vcombine.low %v621, %v637
    %v687 = vcombine.high %v621, %v637
    %v689 = vunpack.c.l.s4 1934713408
    %v690 = vunpack.c.0.s8 %v689
    %v691 = vlaneseq
    %v692 = vshrl.u32 %v691, 7
    %v693 = vsub.s32 %v690, %v692
    %v694 = vrot.slane %v686, %v693
    %v696 = vunpack.c.l.s4 1934713408
    %v697 = vunpack.c.0.s8 %v696
    %v698 = vlaneseq
    %v699 = vshrl.u32 %v698, 7
    %v700 = vsub.s32 %v697, %v699
    %v701 = vrot.slane %v687, %v700
    %v702 = vcombine.low %v646, %v678
    %v703 = vcombine.high %v646, %v678
    %v704 = vcombine.low %v653, %v685
    %v705 = vcombine.high %v653, %v685
    %v706 = vcombine.low %v662, %v694
    %v707 = vcombine.high %v662, %v694
    %v708 = vcombine.low %v669, %v701
    %v709 = vcombine.high %v669, %v701
    %v710 = vcombine.low %v48, %v182
    %v711 = vcombine.high %v48, %v182
    %v713 = vunpack.c.l.s4 1983009808
    %v714 = vunpack.c.0.s8 %v713
    %v715 = vlaneseq
    %v716 = vshrl.u32 %v715, 7
    %v717 = vsub.s32 %v714, %v716
    %v718 = vrot.slane %v710, %v717
    %v720 = vunpack.c.l.s4 1983009808
    %v721 = vunpack.c.0.s8 %v720
    %v722 = vlaneseq
    %v723 = vshrl.u32 %v722, 7
    %v724 = vsub.s32 %v721, %v723
    %v725 = vrot.slane %v711, %v724
    %v726 = vcombine.low %v115, %v249
    %v727 = vcombine.high %v115, %v249
    %v729 = vunpack.c.l.s4 1983009808
    %v730 = vunpack.c.0.s8 %v729
    %v731 = vlaneseq
    %v732 = vshrl.u32 %v731, 7
    %v733 = vsub.s32 %v730, %v732
    %v734 = vrot.slane %v726, %v733
    %v736 = vunpack.c.l.s4 1983009808
    %v737 = vunpack.c.0.s8 %v736
    %v738 = vlaneseq
    %v739 = vshrl.u32 %v738, 7
    %v740 = vsub.s32 %v737, %v739
    %v741 = vrot.slane %v727, %v740
    %v742 = vcombine.low %v316, %v450
    %v743 = vcombine.high %v316, %v450
    %v745 = vunpack.c.l.s4 1983009808
    %v746 = vunpack.c.0.s8 %v745
    %v747 = vlaneseq
    %v748 = vshrl.u32 %v747, 7
    %v749 = vsub.s32 %v746, %v748
    %v750 = vrot.slane %v742, %v749
    %v752 = vunpack.c.l.s4 1983009808
    %v753 = vunpack.c.0.s8 %v752
    %v754 = vlaneseq
    %v755 = vshrl.u32 %v754, 7
    %v756 = vsub.s32 %v753, %v755
    %v757 = vrot.slane %v743, %v756
    %v758 = vcombine.low %v383, %v517
    %v759 = vcombine.high %v383, %v517
    %v761 = vunpack.c.l.s4 1983009808
    %v762 = vunpack.c.0.s8 %v761
    %v763 = vlaneseq
    %v764 = vshrl.u32 %v763, 7
    %v765 = vsub.s32 %v762, %v764
    %v766 = vrot.slane %v758, %v765
    %v768 = vunpack.c.l.s4 1983009808
    %v769 = vunpack.c.0.s8 %v768
    %v770 = vlaneseq
    %v771 = vshrl.u32 %v770, 7
    %v772 = vsub.s32 %v769, %v771
    %v773 = vrot.slane %v759, %v772
    %v774 = vcombine.low %v718, %v734
    %v775 = vcombine.high %v718, %v734
    %v777 = vunpack.c.l.s4 1934713408
    %v778 = vunpack.c.0.s8 %v777
    %v779 = vlaneseq
    %v780 = vshrl.u32 %v779, 7
    %v781 = vsub.s32 %v778, %v780
    %v782 = vrot.slane %v774, %v781
    %v784 = vunpack.c.l.s4 1934713408
    %v785 = vunpack.c.0.s8 %v784
    %v786 = vlaneseq
    %v787 = vshrl.u32 %v786, 7
    %v788 = vsub.s32 %v785, %v787
    %v789 = vrot.slane %v775, %v788
    %v790 = vcombine.low %v725, %v741
    %v791 = vcombine.high %v725, %v741
    %v793 = vunpack.c.l.s4 1934713408
    %v794 = vunpack.c.0.s8 %v793
    %v795 = vlaneseq
    %v796 = vshrl.u32 %v795, 7
    %v797 = vsub.s32 %v794, %v796
    %v798 = vrot.slane %v790, %v797
    %v800 = vunpack.c.l.s4 1934713408
    %v801 = vunpack.c.0.s8 %v800
    %v802 = vlaneseq
    %v803 = vshrl.u32 %v802, 7
    %v804 = vsub.s32 %v801, %v803
    %v805 = vrot.slane %v791, %v804
    %v806 = vcombine.low %v750, %v766
    %v807 = vcombine.high %v750, %v766
    %v809 = vunpack.c.l.s4 1934713408
    %v810 = vunpack.c.0.s8 %v809
    %v811 = vlaneseq
    %v812 = vshrl.u32 %v811, 7
    %v813 = vsub.s32 %v810, %v812
    %v814 = vrot.slane %v806, %v813
    %v816 = vunpack.c.l.s4 1934713408
    %v817 = vunpack.c.0.s8 %v816
    %v818 = vlaneseq
    %v819 = vshrl.u32 %v818, 7
    %v820 = vsub.s32 %v817, %v819
    %v821 = vrot.slane %v807, %v820
    %v822 = vcombine.low %v757, %v773
    %v823 = vcombine.high %v757, %v773
    %v825 = vunpack.c.l.s4 1934713408
    %v826 = vunpack.c.0.s8 %v825
    %v827 = vlaneseq
    %v828 = vshrl.u32 %v827, 7
    %v829 = vsub.s32 %v826, %v828
    %v830 = vrot.slane %v822, %v829
    %v832 = vunpack.c.l.s4 1934713408
    %v833 = vunpack.c.0.s8 %v832
    %v834 = vlaneseq
    %v835 = vshrl.u32 %v834, 7
    %v836 = vsub.s32 %v833, %v835
    %v837 = vrot.slane %v823, %v836
    %v838 = vcombine.low %v782, %v814
    %v839 = vcombine.high %v782, %v814
    %v840 = vcombine.low %v789, %v821
    %v841 = vcombine.high %v789, %v821
    %v842 = vcombine.low %v798, %v830
    %v843 = vcombine.high %v798, %v830
    %v844 = vcombine.low %v805, %v837
    %v845 = vcombine.high %v805, %v837
    %v846 = vcombine.low %v52, %v186
    %v847 = vcombine.high %v52, %v186
    %v849 = vunpack.c.l.s4 1983009808
    %v850 = vunpack.c.0.s8 %v849
    %v851 = vlaneseq
    %v852 = vshrl.u32 %v851, 7
    %v853 = vsub.s32 %v850, %v852
    %v854 = vrot.slane %v846, %v853
    %v856 = vunpack.c.l.s4 1983009808
    %v857 = vunpack.c.0.s8 %v856
    %v858 = vlaneseq
    %v859 = vshrl.u32 %v858, 7
    %v860 = vsub.s32 %v857, %v859
    %v861 = vrot.slane %v847, %v860
    %v862 = vcombine.low %v119, %v253
    %v863 = vcombine.high %v119, %v253
    %v865 = vunpack.c.l.s4 1983009808
    %v866 = vunpack.c.0.s8 %v865
    %v867 = vlaneseq
    %v868 = vshrl.u32 %v867, 7
    %v869 = vsub.s32 %v866, %v868
    %v870 = vrot.slane %v862, %v869
    %v872 = vunpack.c.l.s4 1983009808
    %v873 = vunpack.c.0.s8 %v872
    %v874 = vlaneseq
    %v875 = vshrl.u32 %v874, 7
    %v876 = vsub.s32 %v873, %v875
    %v877 = vrot.slane %v863, %v876
    %v878 = vcombine.low %v320, %v454
    %v879 = vcombine.high %v320, %v454
    %v881 = vunpack.c.l.s4 1983009808
    %v882 = vunpack.c.0.s8 %v881
    %v883 = vlaneseq
    %v884 = vshrl.u32 %v883, 7
    %v885 = vsub.s32 %v882, %v884
    %v886 = vrot.slane %v878, %v885
    %v888 = vunpack.c.l.s4 1983009808
    %v889 = vunpack.c.0.s8 %v888
    %v890 = vlaneseq
    %v891 = vshrl.u32 %v890, 7
    %v892 = vsub.s32 %v889, %v891
    %v893 = vrot.slane %v879, %v892
    %v894 = vcombine.low %v387, %v521
    %v895 = vcombine.high %v387, %v521
    %v897 = vunpack.c.l.s4 1983009808
    %v898 = vunpack.c.0.s8 %v897
    %v899 = vlaneseq
    %v900 = vshrl.u32 %v899, 7
    %v901 = vsub.s32 %v898, %v900
    %v902 = vrot.slane %v894, %v901
    %v904 = vunpack.c.l.s4 1983009808
    %v905 = vunpack.c.0.s8 %v904
    %v906 = vlaneseq
    %v907 = vshrl.u32 %v906, 7
    %v908 = vsub.s32 %v905, %v907
    %v909 = vrot.slane %v895, %v908
    %v910 = vcombine.low %v854, %v870
    %v911 = vcombine.high %v854, %v870
    %v913 = vunpack.c.l.s4 1934713408
    %v914 = vunpack.c.0.s8 %v913
    %v915 = vlaneseq
    %v916 = vshrl.u32 %v915, 7
    %v917 = vsub.s32 %v914, %v916
    %v918 = vrot.slane %v910, %v917
    %v920 = vunpack.c.l.s4 1934713408
    %v921 = vunpack.c.0.s8 %v920
    %v922 = vlaneseq
    %v923 = vshrl.u32 %v922, 7
    %v924 = vsub.s32 %v921, %v923
    %v925 = vrot.slane %v911, %v924
    %v926 = vcombine.low %v861, %v877
    %v927 = vcombine.high %v861, %v877
    %v929 = vunpack.c.l.s4 1934713408
    %v930 = vunpack.c.0.s8 %v929
    %v931 = vlaneseq
    %v932 = vshrl.u32 %v931, 7
    %v933 = vsub.s32 %v930, %v932
    %v934 = vrot.slane %v926, %v933
    %v936 = vunpack.c.l.s4 1934713408
    %v937 = vunpack.c.0.s8 %v936
    %v938 = vlaneseq
    %v939 = vshrl.u32 %v938, 7
    %v940 = vsub.s32 %v937, %v939
    %v941 = vrot.slane %v927, %v940
    %v942 = vcombine.low %v886, %v902
    %v943 = vcombine.high %v886, %v902
    %v945 = vunpack.c.l.s4 1934713408
    %v946 = vunpack.c.0.s8 %v945
    %v947 = vlaneseq
    %v948 = vshrl.u32 %v947, 7
    %v949 = vsub.s32 %v946, %v948
    %v950 = vrot.slane %v942, %v949
    %v952 = vunpack.c.l.s4 1934713408
    %v953 = vunpack.c.0.s8 %v952
    %v954 = vlaneseq
    %v955 = vshrl.u32 %v954, 7
    %v956 = vsub.s32 %v953, %v955
    %v957 = vrot.slane %v943, %v956
    %v958 = vcombine.low %v893, %v909
    %v959 = vcombine.high %v893, %v909
    %v961 = vunpack.c.l.s4 1934713408
    %v962 = vunpack.c.0.s8 %v961
    %v963 = vlaneseq
    %v964 = vshrl.u32 %v963, 7
    %v965 = vsub.s32 %v962, %v964
    %v966 = vrot.slane %v958, %v965
    %v968 = vunpack.c.l.s4 1934713408
    %v969 = vunpack.c.0.s8 %v968
    %v970 = vlaneseq
    %v971 = vshrl.u32 %v970, 7
    %v972 = vsub.s32 %v969, %v971
    %v973 = vrot.slane %v959, %v972
    %v974 = vcombine.low %v918, %v950
    %v975 = vcombine.high %v918, %v950
    %v976 = vcombine.low %v925, %v957
    %v977 = vcombine.high %v925, %v957
    %v978 = vcombine.low %v934, %v966
    %v979 = vcombine.high %v934, %v966
    %v980 = vcombine.low %v941, %v973
    %v981 = vcombine.high %v941, %v973
    %v982 = vcombine.low %v56, %v190
    %v983 = vcombine.high %v56, %v190
    %v985 = vunpack.c.l.s4 1983009808
    %v986 = vunpack.c.0.s8 %v985
    %v987 = vlaneseq
    %v988 = vshrl.u32 %v987, 7
    %v989 = vsub.s32 %v986, %v988
    %v990 = vrot.slane %v982, %v989
    %v992 = vunpack.c.l.s4 1983009808
    %v993 = vunpack.c.0.s8 %v992
    %v994 = vlaneseq
    %v995 = vshrl.u32 %v994, 7
    %v996 = vsub.s32 %v993, %v995
    %v997 = vrot.slane %v983, %v996
    %v998 = vcombine.low %v123, %v257
    %v999 = vcombine.high %v123, %v257
    %v1001 = vunpack.c.l.s4 1983009808
    %v1002 = vunpack.c.0.s8 %v1001
    %v1003 = vlaneseq
    %v1004 = vshrl.u32 %v1003, 7
    %v1005 = vsub.s32 %v1002, %v1004
    %v1006 = vrot.slane %v998, %v1005
    %v1008 = vunpack.c.l.s4 1983009808
    %v1009 = vunpack.c.0.s8 %v1008
    %v1010 = vlaneseq
    %v1011 = vshrl.u32 %v1010, 7
    %v1012 = vsub.s32 %v1009, %v1011
    %v1013 = vrot.slane %v999, %v1012
    %v1014 = vcombine.low %v324, %v458
    %v1015 = vcombine.high %v324, %v458
    %v1017 = vunpack.c.l.s4 1983009808
    %v1018 = vunpack.c.0.s8 %v1017
    %v1019 = vlaneseq
    %v1020 = vshrl.u32 %v1019, 7
    %v1021 = vsub.s32 %v1018, %v1020
    %v1022 = vrot.slane %v1014, %v1021
    %v1024 = vunpack.c.l.s4 1983009808
    %v1025 = vunpack.c.0.s8 %v1024
    %v1026 = vlaneseq
    %v1027 = vshrl.u32 %v1026, 7
    %v1028 = vsub.s32 %v1025, %v1027
    %v1029 = vrot.slane %v1015, %v1028
    %v1030 = vcombine.low %v391, %v525
    %v1031 = vcombine.high %v391, %v525
    %v1033 = vunpack.c.l.s4 1983009808
    %v1034 = vunpack.c.0.s8 %v1033
    %v1035 = vlaneseq
    %v1036 = vshrl.u32 %v1035, 7
    %v1037 = vsub.s32 %v1034, %v1036
    %v1038 = vrot.slane %v1030, %v1037
    %v1040 = vunpack.c.l.s4 1983009808
    %v1041 = vunpack.c.0.s8 %v1040
    %v1042 = vlaneseq
    %v1043 = vshrl.u32 %v1042, 7
    %v1044 = vsub.s32 %v1041, %v1043
    %v1045 = vrot.slane %v1031, %v1044
    %v1046 = vcombine.low %v990, %v1006
    %v1047 = vcombine.high %v990, %v1006
    %v1049 = vunpack.c.l.s4 1934713408
    %v1050 = vunpack.c.0.s8 %v1049
    %v1051 = vlaneseq
    %v1052 = vshrl.u32 %v1051, 7
    %v1053 = vsub.s32 %v1050, %v1052
    %v1054 = vrot.slane %v1046, %v1053
    %v1056 = vunpack.c.l.s4 1934713408
    %v1057 = vunpack.c.0.s8 %v1056
    %v1058 = vlaneseq
    %v1059 = vshrl.u32 %v1058, 7
    %v1060 = vsub.s32 %v1057, %v1059
    %v1061 = vrot.slane %v1047, %v1060
    %v1062 = vcombine.low %v997, %v1013
    %v1063 = vcombine.high %v997, %v1013
    %v1065 = vunpack.c.l.s4 1934713408
    %v1066 = vunpack.c.0.s8 %v1065
    %v1067 = vlaneseq
    %v1068 = vshrl.u32 %v1067, 7
    %v1069 = vsub.s32 %v1066, %v1068
    %v1070 = vrot.slane %v1062, %v1069
    %v1072 = vunpack.c.l.s4 1934713408
    %v1073 = vunpack.c.0.s8 %v1072
    %v1074 = vlaneseq
    %v1075 = vshrl.u32 %v1074, 7
    %v1076 = vsub.s32 %v1073, %v1075
    %v1077 = vrot.slane %v1063, %v1076
    %v1078 = vcombine.low %v1022, %v1038
    %v1079 = vcombine.high %v1022, %v1038
    %v1081 = vunpack.c.l.s4 1934713408
    %v1082 = vunpack.c.0.s8 %v1081
    %v1083 = vlaneseq
    %v1084 = vshrl.u32 %v1083, 7
    %v1085 = vsub.s32 %v1082, %v1084
    %v1086 = vrot.slane %v1078, %v1085
    %v1088 = vunpack.c.l.s4 1934713408
    %v1089 = vunpack.c.0.s8 %v1088
    %v1090 = vlaneseq
    %v1091 = vshrl.u32 %v1090, 7
    %v1092 = vsub.s32 %v1089, %v1091
    %v1093 = vrot.slane %v1079, %v1092
    %v1094 = vcombine.low %v1029, %v1045
    %v1095 = vcombine.high %v1029, %v1045
    %v1097 = vunpack.c.l.s4 1934713408
    %v1098 = vunpack.c.0.s8 %v1097
    %v1099 = vlaneseq
    %v1100 = vshrl.u32 %v1099, 7
    %v1101 = vsub.s32 %v1098, %v1100
    %v1102 = vrot.slane %v1094, %v1101
    %v1104 = vunpack.c.l.s4 1934713408
    %v1105 = vunpack.c.0.s8 %v1104
    %v1106 = vlaneseq
    %v1107 = vshrl.u32 %v1106, 7
    %v1108 = vsub.s32 %v1105, %v1107
    %v1109 = vrot.slane %v1095, %v1108
    %v1110 = vcombine.low %v1054, %v1086
    %v1111 = vcombine.high %v1054, %v1086
    %v1112 = vcombine.low %v1061, %v1093
    %v1113 = vcombine.high %v1061, %v1093
    %v1114 = vcombine.low %v1070, %v1102
    %v1115 = vcombine.high %v1070, %v1102
    %v1116 = vcombine.low %v1077, %v1109
    %v1117 = vcombine.high %v1077, %v1109
    %v1118 = vcombine.low %v60, %v194
    %v1119 = vcombine.high %v60, %v194
    %v1121 = vunpack.c.l.s4 1983009808
    %v1122 = vunpack.c.0.s8 %v1121
    %v1123 = vlaneseq
    %v1124 = vshrl.u32 %v1123, 7
    %v1125 = vsub.s32 %v1122, %v1124
    %v1126 = vrot.slane %v1118, %v1125
    %v1128 = vunpack.c.l.s4 1983009808
    %v1129 = vunpack.c.0.s8 %v1128
    %v1130 = vlaneseq
    %v1131 = vshrl.u32 %v1130, 7
    %v1132 = vsub.s32 %v1129, %v1131
    %v1133 = vrot.slane %v1119, %v1132
    %v1134 = vcombine.low %v127, %v261
    %v1135 = vcombine.high %v127, %v261
    %v1137 = vunpack.c.l.s4 1983009808
    %v1138 = vunpack.c.0.s8 %v1137
    %v1139 = vlaneseq
    %v1140 = vshrl.u32 %v1139, 7
    %v1141 = vsub.s32 %v1138, %v1140
    %v1142 = vrot.slane %v1134, %v1141
    %v1144 = vunpack.c.l.s4 1983009808
    %v1145 = vunpack.c.0.s8 %v1144
    %v1146 = vlaneseq
    %v1147 = vshrl.u32 %v1146, 7
    %v1148 = vsub.s32 %v1145, %v1147
    %v1149 = vrot.slane %v1135, %v1148
    %v1150 = vcombine.low %v328, %v462
    %v1151 = vcombine.high %v328, %v462
    %v1153 = vunpack.c.l.s4 1983009808
    %v1154 = vunpack.c.0.s8 %v1153
    %v1155 = vlaneseq
    %v1156 = vshrl.u32 %v1155, 7
    %v1157 = vsub.s32 %v1154, %v1156
    %v1158 = vrot.slane %v1150, %v1157
    %v1160 = vunpack.c.l.s4 1983009808
    %v1161 = vunpack.c.0.s8 %v1160
    %v1162 = vlaneseq
    %v1163 = vshrl.u32 %v1162, 7
    %v1164 = vsub.s32 %v1161, %v1163
    %v1165 = vrot.slane %v1151, %v1164
    %v1166 = vcombine.low %v395, %v529
    %v1167 = vcombine.high %v395, %v529
    %v1169 = vunpack.c.l.s4 1983009808
    %v1170 = vunpack.c.0.s8 %v1169
    %v1171 = vlaneseq
    %v1172 = vshrl.u32 %v1171, 7
    %v1173 = vsub.s32 %v1170, %v1172
    %v1174 = vrot.slane %v1166, %v1173
    %v1176 = vunpack.c.l.s4 1983009808
    %v1177 = vunpack.c.0.s8 %v1176
    %v1178 = vlaneseq
    %v1179 = vshrl.u32 %v1178, 7
    %v1180 = vsub.s32 %v1177, %v1179
    %v1181 = vrot.slane %v1167, %v1180
    %v1182 = vcombine.low %v1126, %v1142
    %v1183 = vcombine.high %v1126, %v1142
    %v1185 = vunpack.c.l.s4 1934713408
    %v1186 = vunpack.c.0.s8 %v1185
    %v1187 = vlaneseq
    %v1188 = vshrl.u32 %v1187, 7
    %v1189 = vsub.s32 %v1186, %v1188
    %v1190 = vrot.slane %v1182, %v1189
    %v1192 = vunpack.c.l.s4 1934713408
    %v1193 = vunpack.c.0.s8 %v1192
    %v1194 = vlaneseq
    %v1195 = vshrl.u32 %v1194, 7
    %v1196 = vsub.s32 %v1193, %v1195
    %v1197 = vrot.slane %v1183, %v1196
    %v1198 = vcombine.low %v1133, %v1149
    %v1199 = vcombine.high %v1133, %v1149
    %v1201 = vunpack.c.l.s4 1934713408
    %v1202 = vunpack.c.0.s8 %v1201
    %v1203 = vlaneseq
    %v1204 = vshrl.u32 %v1203, 7
    %v1205 = vsub.s32 %v1202, %v1204
    %v1206 = vrot.slane %v1198, %v1205
    %v1208 = vunpack.c.l.s4 1934713408
    %v1209 = vunpack.c.0.s8 %v1208
    %v1210 = vlaneseq
    %v1211 = vshrl.u32 %v1210, 7
    %v1212 = vsub.s32 %v1209, %v1211
    %v1213 = vrot.slane %v1199, %v1212
    %v1214 = vcombine.low %v1158, %v1174
    %v1215 = vcombine.high %v1158, %v1174
    %v1217 = vunpack.c.l.s4 1934713408
    %v1218 = vunpack.c.0.s8 %v1217
    %v1219 = vlaneseq
    %v1220 = vshrl.u32 %v1219, 7
    %v1221 = vsub.s32 %v1218, %v1220
    %v1222 = vrot.slane %v1214, %v1221
    %v1224 = vunpack.c.l.s4 1934713408
    %v1225 = vunpack.c.0.s8 %v1224
    %v1226 = vlaneseq
    %v1227 = vshrl.u32 %v1226, 7
    %v1228 = vsub.s32 %v1225, %v1227
    %v1229 = vrot.slane %v1215, %v1228
    %v1230 = vcombine.low %v1165, %v1181
    %v1231 = vcombine.high %v1165, %v1181
    %v1233 = vunpack.c.l.s4 1934713408
    %v1234 = vunpack.c.0.s8 %v1233
    %v1235 = vlaneseq
    %v1236 = vshrl.u32 %v1235, 7
    %v1237 = vsub.s32 %v1234, %v1236
    %v1238 = vrot.slane %v1230, %v1237
    %v1240 = vunpack.c.l.s4 1934713408
    %v1241 = vunpack.c.0.s8 %v1240
    %v1242 = vlaneseq
    %v1243 = vshrl.u32 %v1242, 7
    %v1244 = vsub.s32 %v1241, %v1243
    %v1245 = vrot.slane %v1231, %v1244
    %v1246 = vcombine.low %v1190, %v1222
    %v1247 = vcombine.high %v1190, %v1222
    %v1248 = vcombine.low %v1197, %v1229
    %v1249 = vcombine.high %v1197, %v1229
    %v1250 = vcombine.low %v1206, %v1238
    %v1251 = vcombine.high %v1206, %v1238
    %v1252 = vcombine.low %v1213, %v1245
    %v1253 = vcombine.high %v1213, %v1245
    %v1254 = vcombine.low %v64, %v198
    %v1255 = vcombine.high %v64, %v198
    %v1257 = vunpack.c.l.s4 1983009808
    %v1258 = vunpack.c.0.s8 %v1257
    %v1259 = vlaneseq
    %v1260 = vshrl.u32 %v1259, 7
    %v1261 = vsub.s32 %v1258, %v1260
    %v1262 = vrot.slane %v1254, %v1261
    %v1264 = vunpack.c.l.s4 1983009808
    %v1265 = vunpack.c.0.s8 %v1264
    %v1266 = vlaneseq
    %v1267 = vshrl.u32 %v1266, 7
    %v1268 = vsub.s32 %v1265, %v1267
    %v1269 = vrot.slane %v1255, %v1268
    %v1270 = vcombine.low %v131, %v265
    %v1271 = vcombine.high %v131, %v265
    %v1273 = vunpack.c.l.s4 1983009808
    %v1274 = vunpack.c.0.s8 %v1273
    %v1275 = vlaneseq
    %v1276 = vshrl.u32 %v1275, 7
    %v1277 = vsub.s32 %v1274, %v1276
    %v1278 = vrot.slane %v1270, %v1277
    %v1280 = vunpack.c.l.s4 1983009808
    %v1281 = vunpack.c.0.s8 %v1280
    %v1282 = vlaneseq
    %v1283 = vshrl.u32 %v1282, 7
    %v1284 = vsub.s32 %v1281, %v1283
    %v1285 = vrot.slane %v1271, %v1284
    %v1286 = vcombine.low %v332, %v466
    %v1287 = vcombine.high %v332, %v466
    %v1289 = vunpack.c.l.s4 1983009808
    %v1290 = vunpack.c.0.s8 %v1289
    %v1291 = vlaneseq
    %v1292 = vshrl.u32 %v1291, 7
    %v1293 = vsub.s32 %v1290, %v1292
    %v1294 = vrot.slane %v1286, %v1293
    %v1296 = vunpack.c.l.s4 1983009808
    %v1297 = vunpack.c.0.s8 %v1296
    %v1298 = vlaneseq
    %v1299 = vshrl.u32 %v1298, 7
    %v1300 = vsub.s32 %v1297, %v1299
    %v1301 = vrot.slane %v1287, %v1300
    %v1302 = vcombine.low %v399, %v533
    %v1303 = vcombine.high %v399, %v533
    %v1305 = vunpack.c.l.s4 1983009808
    %v1306 = vunpack.c.0.s8 %v1305
    %v1307 = vlaneseq
    %v1308 = vshrl.u32 %v1307, 7
    %v1309 = vsub.s32 %v1306, %v1308
    %v1310 = vrot.slane %v1302, %v1309
    %v1312 = vunpack.c.l.s4 1983009808
    %v1313 = vunpack.c.0.s8 %v1312
    %v1314 = vlaneseq
    %v1315 = vshrl.u32 %v1314, 7
    %v1316 = vsub.s32 %v1313, %v1315
    %v1317 = vrot.slane %v1303, %v1316
    %v1318 = vcombine.low %v1262, %v1278
    %v1319 = vcombine.high %v1262, %v1278
    %v1321 = vunpack.c.l.s4 1934713408
    %v1322 = vunpack.c.0.s8 %v1321
    %v1323 = vlaneseq
    %v1324 = vshrl.u32 %v1323, 7
    %v1325 = vsub.s32 %v1322, %v1324
    %v1326 = vrot.slane %v1318, %v1325
    %v1328 = vunpack.c.l.s4 1934713408
    %v1329 = vunpack.c.0.s8 %v1328
    %v1330 = vlaneseq
    %v1331 = vshrl.u32 %v1330, 7
    %v1332 = vsub.s32 %v1329, %v1331
    %v1333 = vrot.slane %v1319, %v1332
    %v1334 = vcombine.low %v1269, %v1285
    %v1335 = vcombine.high %v1269, %v1285
    %v1337 = vunpack.c.l.s4 1934713408
    %v1338 = vunpack.c.0.s8 %v1337
    %v1339 = vlaneseq
    %v1340 = vshrl.u32 %v1339, 7
    %v1341 = vsub.s32 %v1338, %v1340
    %v1342 = vrot.slane %v1334, %v1341
    %v1344 = vunpack.c.l.s4 1934713408
    %v1345 = vunpack.c.0.s8 %v1344
    %v1346 = vlaneseq
    %v1347 = vshrl.u32 %v1346, 7
    %v1348 = vsub.s32 %v1345, %v1347
    %v1349 = vrot.slane %v1335, %v1348
    %v1350 = vcombine.low %v1294, %v1310
    %v1351 = vcombine.high %v1294, %v1310
    %v1353 = vunpack.c.l.s4 1934713408
    %v1354 = vunpack.c.0.s8 %v1353
    %v1355 = vlaneseq
    %v1356 = vshrl.u32 %v1355, 7
    %v1357 = vsub.s32 %v1354, %v1356
    %v1358 = vrot.slane %v1350, %v1357
    %v1360 = vunpack.c.l.s4 1934713408
    %v1361 = vunpack.c.0.s8 %v1360
    %v1362 = vlaneseq
    %v1363 = vshrl.u32 %v1362, 7
    %v1364 = vsub.s32 %v1361, %v1363
    %v1365 = vrot.slane %v1351, %v1364
    %v1366 = vcombine.low %v1301, %v1317
    %v1367 = vcombine.high %v1301, %v1317
    %v1369 = vunpack.c.l.s4 1934713408
    %v1370 = vunpack.c.0.s8 %v1369
    %v1371 = vlaneseq
    %v1372 = vshrl.u32 %v1371, 7
    %v1373 = vsub.s32 %v1370, %v1372
    %v1374 = vrot.slane %v1366, %v1373
    %v1376 = vunpack.c.l.s4 1934713408
    %v1377 = vunpack.c.0.s8 %v1376
    %v1378 = vlaneseq
    %v1379 = vshrl.u32 %v1378, 7
    %v1380 = vsub.s32 %v1377, %v1379
    %v1381 = vrot.slane %v1367, %v1380
    %v1382 = vcombine.low %v1326, %v1358
    %v1383 = vcombine.high %v1326, %v1358
    %v1384 = vcombine.low %v1333, %v1365
    %v1385 = vcombine.high %v1333, %v1365
    %v1386 = vcombine.low %v1342, %v1374
    %v1387 = vcombine.high %v1342, %v1374
    %v1388 = vcombine.low %v1349, %v1381
    %v1389 = vcombine.high %v1349, %v1381
    %v1390 = vcombine.low %v68, %v202
    %v1391 = vcombine.high %v68, %v202
    %v1393 = vunpack.c.l.s4 1983009808
    %v1394 = vunpack.c.0.s8 %v1393
    %v1395 = vlaneseq
    %v1396 = vshrl.u32 %v1395, 7
    %v1397 = vsub.s32 %v1394, %v1396
    %v1398 = vrot.slane %v1390, %v1397
    %v1400 = vunpack.c.l.s4 1983009808
    %v1401 = vunpack.c.0.s8 %v1400
    %v1402 = vlaneseq
    %v1403 = vshrl.u32 %v1402, 7
    %v1404 = vsub.s32 %v1401, %v1403
    %v1405 = vrot.slane %v1391, %v1404
    %v1406 = vcombine.low %v135, %v269
    %v1407 = vcombine.high %v135, %v269
    %v1409 = vunpack.c.l.s4 1983009808
    %v1410 = vunpack.c.0.s8 %v1409
    %v1411 = vlaneseq
    %v1412 = vshrl.u32 %v1411, 7
    %v1413 = vsub.s32 %v1410, %v1412
    %v1414 = vrot.slane %v1406, %v1413
    %v1416 = vunpack.c.l.s4 1983009808
    %v1417 = vunpack.c.0.s8 %v1416
    %v1418 = vlaneseq
    %v1419 = vshrl.u32 %v1418, 7
    %v1420 = vsub.s32 %v1417, %v1419
    %v1421 = vrot.slane %v1407, %v1420
    %v1422 = vcombine.low %v336, %v470
    %v1423 = vcombine.high %v336, %v470
    %v1425 = vunpack.c.l.s4 1983009808
    %v1426 = vunpack.c.0.s8 %v1425
    %v1427 = vlaneseq
    %v1428 = vshrl.u32 %v1427, 7
    %v1429 = vsub.s32 %v1426, %v1428
    %v1430 = vrot.slane %v1422, %v1429
    %v1432 = vunpack.c.l.s4 1983009808
    %v1433 = vunpack.c.0.s8 %v1432
    %v1434 = vlaneseq
    %v1435 = vshrl.u32 %v1434, 7
    %v1436 = vsub.s32 %v1433, %v1435
    %v1437 = vrot.slane %v1423, %v1436
    %v1438 = vcombine.low %v403, %v537
    %v1439 = vcombine.high %v403, %v537
    %v1441 = vunpack.c.l.s4 1983009808
    %v1442 = vunpack.c.0.s8 %v1441
    %v1443 = vlaneseq
    %v1444 = vshrl.u32 %v1443, 7
    %v1445 = vsub.s32 %v1442, %v1444
    %v1446 = vrot.slane %v1438, %v1445
    %v1448 = vunpack.c.l.s4 1983009808
    %v1449 = vunpack.c.0.s8 %v1448
    %v1450 = vlaneseq
    %v1451 = vshrl.u32 %v1450, 7
    %v1452 = vsub.s32 %v1449, %v1451
    %v1453 = vrot.slane %v1439, %v1452
    %v1454 = vcombine.low %v1398, %v1414
    %v1455 = vcombine.high %v1398, %v1414
    %v1457 = vunpack.c.l.s4 1934713408
    %v1458 = vunpack.c.0.s8 %v1457
    %v1459 = vlaneseq
    %v1460 = vshrl.u32 %v1459, 7
    %v1461 = vsub.s32 %v1458, %v1460
    %v1462 = vrot.slane %v1454, %v1461
    %v1464 = vunpack.c.l.s4 1934713408
    %v1465 = vunpack.c.0.s8 %v1464
    %v1466 = vlaneseq
    %v1467 = vshrl.u32 %v1466, 7
    %v1468 = vsub.s32 %v1465, %v1467
    %v1469 = vrot.slane %v1455, %v1468
    %v1470 = vcombine.low %v1405, %v1421
    %v1471 = vcombine.high %v1405, %v1421
    %v1473 = vunpack.c.l.s4 1934713408
    %v1474 = vunpack.c.0.s8 %v1473
    %v1475 = vlaneseq
    %v1476 = vshrl.u32 %v1475, 7
    %v1477 = vsub.s32 %v1474, %v1476
    %v1478 = vrot.slane %v1470, %v1477
    %v1480 = vunpack.c.l.s4 1934713408
    %v1481 = vunpack.c.0.s8 %v1480
    %v1482 = vlaneseq
    %v1483 = vshrl.u32 %v1482, 7
    %v1484 = vsub.s32 %v1481, %v1483
    %v1485 = vrot.slane %v1471, %v1484
    %v1486 = vcombine.low %v1430, %v1446
    %v1487 = vcombine.high %v1430, %v1446
    %v1489 = vunpack.c.l.s4 1934713408
    %v1490 = vunpack.c.0.s8 %v1489
    %v1491 = vlaneseq
    %v1492 = vshrl.u32 %v1491, 7
    %v1493 = vsub.s32 %v1490, %v1492
    %v1494 = vrot.slane %v1486, %v1493
    %v1496 = vunpack.c.l.s4 1934713408
    %v1497 = vunpack.c.0.s8 %v1496
    %v1498 = vlaneseq
    %v1499 = vshrl.u32 %v1498, 7
    %v1500 = vsub.s32 %v1497, %v1499
    %v1501 = vrot.slane %v1487, %v1500
    %v1502 = vcombine.low %v1437, %v1453
    %v1503 = vcombine.high %v1437, %v1453
    %v1505 = vunpack.c.l.s4 1934713408
    %v1506 = vunpack.c.0.s8 %v1505
    %v1507 = vlaneseq
    %v1508 = vshrl.u32 %v1507, 7
    %v1509 = vsub.s32 %v1506, %v1508
    %v1510 = vrot.slane %v1502, %v1509
    %v1512 = vunpack.c.l.s4 1934713408
    %v1513 = vunpack.c.0.s8 %v1512
    %v1514 = vlaneseq
    %v1515 = vshrl.u32 %v1514, 7
    %v1516 = vsub.s32 %v1513, %v1515
    %v1517 = vrot.slane %v1503, %v1516
    %v1518 = vcombine.low %v1462, %v1494
    %v1519 = vcombine.high %v1462, %v1494
    %v1520 = vcombine.low %v1469, %v1501
    %v1521 = vcombine.high %v1469, %v1501
    %v1522 = vcombine.low %v1478, %v1510
    %v1523 = vcombine.high %v1478, %v1510
    %v1524 = vcombine.low %v1485, %v1517
    %v1525 = vcombine.high %v1485, %v1517
    %v1526 = vcombine.low %v72, %v206
    %v1527 = vcombine.high %v72, %v206
    %v1529 = vunpack.c.l.s4 1983009808
    %v1530 = vunpack.c.0.s8 %v1529
    %v1531 = vlaneseq
    %v1532 = vshrl.u32 %v1531, 7
    %v1533 = vsub.s32 %v1530, %v1532
    %v1534 = vrot.slane %v1526, %v1533
    %v1536 = vunpack.c.l.s4 1983009808
    %v1537 = vunpack.c.0.s8 %v1536
    %v1538 = vlaneseq
    %v1539 = vshrl.u32 %v1538, 7
    %v1540 = vsub.s32 %v1537, %v1539
    %v1541 = vrot.slane %v1527, %v1540
    %v1542 = vcombine.low %v139, %v273
    %v1543 = vcombine.high %v139, %v273
    %v1545 = vunpack.c.l.s4 1983009808
    %v1546 = vunpack.c.0.s8 %v1545
    %v1547 = vlaneseq
    %v1548 = vshrl.u32 %v1547, 7
    %v1549 = vsub.s32 %v1546, %v1548
    %v1550 = vrot.slane %v1542, %v1549
    %v1552 = vunpack.c.l.s4 1983009808
    %v1553 = vunpack.c.0.s8 %v1552
    %v1554 = vlaneseq
    %v1555 = vshrl.u32 %v1554, 7
    %v1556 = vsub.s32 %v1553, %v1555
    %v1557 = vrot.slane %v1543, %v1556
    %v1558 = vcombine.low %v340, %v474
    %v1559 = vcombine.high %v340, %v474
    %v1561 = vunpack.c.l.s4 1983009808
    %v1562 = vunpack.c.0.s8 %v1561
    %v1563 = vlaneseq
    %v1564 = vshrl.u32 %v1563, 7
    %v1565 = vsub.s32 %v1562, %v1564
    %v1566 = vrot.slane %v1558, %v1565
    %v1568 = vunpack.c.l.s4 1983009808
    %v1569 = vunpack.c.0.s8 %v1568
    %v1570 = vlaneseq
    %v1571 = vshrl.u32 %v1570, 7
    %v1572 = vsub.s32 %v1569, %v1571
    %v1573 = vrot.slane %v1559, %v1572
    %v1574 = vcombine.low %v407, %v541
    %v1575 = vcombine.high %v407, %v541
    %v1577 = vunpack.c.l.s4 1983009808
    %v1578 = vunpack.c.0.s8 %v1577
    %v1579 = vlaneseq
    %v1580 = vshrl.u32 %v1579, 7
    %v1581 = vsub.s32 %v1578, %v1580
    %v1582 = vrot.slane %v1574, %v1581
    %v1584 = vunpack.c.l.s4 1983009808
    %v1585 = vunpack.c.0.s8 %v1584
    %v1586 = vlaneseq
    %v1587 = vshrl.u32 %v1586, 7
    %v1588 = vsub.s32 %v1585, %v1587
    %v1589 = vrot.slane %v1575, %v1588
    %v1590 = vcombine.low %v1534, %v1550
    %v1591 = vcombine.high %v1534, %v1550
    %v1593 = vunpack.c.l.s4 1934713408
    %v1594 = vunpack.c.0.s8 %v1593
    %v1595 = vlaneseq
    %v1596 = vshrl.u32 %v1595, 7
    %v1597 = vsub.s32 %v1594, %v1596
    %v1598 = vrot.slane %v1590, %v1597
    %v1600 = vunpack.c.l.s4 1934713408
    %v1601 = vunpack.c.0.s8 %v1600
    %v1602 = vlaneseq
    %v1603 = vshrl.u32 %v1602, 7
    %v1604 = vsub.s32 %v1601, %v1603
    %v1605 = vrot.slane %v1591, %v1604
    %v1606 = vcombine.low %v1541, %v1557
    %v1607 = vcombine.high %v1541, %v1557
    %v1609 = vunpack.c.l.s4 1934713408
    %v1610 = vunpack.c.0.s8 %v1609
    %v1611 = vlaneseq
    %v1612 = vshrl.u32 %v1611, 7
    %v1613 = vsub.s32 %v1610, %v1612
    %v1614 = vrot.slane %v1606, %v1613
    %v1616 = vunpack.c.l.s4 1934713408
    %v1617 = vunpack.c.0.s8 %v1616
    %v1618 = vlaneseq
    %v1619 = vshrl.u32 %v1618, 7
    %v1620 = vsub.s32 %v1617, %v1619
    %v1621 = vrot.slane %v1607, %v1620
    %v1622 = vcombine.low %v1566, %v1582
    %v1623 = vcombine.high %v1566, %v1582
    %v1625 = vunpack.c.l.s4 1934713408
    %v1626 = vunpack.c.0.s8 %v1625
    %v1627 = vlaneseq
    %v1628 = vshrl.u32 %v1627, 7
    %v1629 = vsub.s32 %v1626, %v1628
    %v1630 = vrot.slane %v1622, %v1629
    %v1632 = vunpack.c.l.s4 1934713408
    %v1633 = vunpack.c.0.s8 %v1632
    %v1634 = vlaneseq
    %v1635 = vshrl.u32 %v1634, 7
    %v1636 = vsub.s32 %v1633, %v1635
    %v1637 = vrot.slane %v1623, %v1636
    %v1638 = vcombine.low %v1573, %v1589
    %v1639 = vcombine.high %v1573, %v1589
    %v1641 = vunpack.c.l.s4 1934713408
    %v1642 = vunpack.c.0.s8 %v1641
    %v1643 = vlaneseq
    %v1644 = vshrl.u32 %v1643, 7
    %v1645 = vsub.s32 %v1642, %v1644
    %v1646 = vrot.slane %v1638, %v1645
    %v1648 = vunpack.c.l.s4 1934713408
    %v1649 = vunpack.c.0.s8 %v1648
    %v1650 = vlaneseq
    %v1651 = vshrl.u32 %v1650, 7
    %v1652 = vsub.s32 %v1649, %v1651
    %v1653 = vrot.slane %v1639, %v1652
    %v1654 = vcombine.low %v1598, %v1630
    %v1655 = vcombine.high %v1598, %v1630
    %v1656 = vcombine.low %v1605, %v1637
    %v1657 = vcombine.high %v1605, %v1637
    %v1658 = vcombine.low %v1614, %v1646
    %v1659 = vcombine.high %v1614, %v1646
    %v1660 = vcombine.low %v1621, %v1653
    %v1661 = vcombine.high %v1621, %v1653
    %v1662 = vcombine.low %v76, %v210
    %v1663 = vcombine.high %v76, %v210
    %v1665 = vunpack.c.l.s4 1983009808
    %v1666 = vunpack.c.0.s8 %v1665
    %v1667 = vlaneseq
    %v1668 = vshrl.u32 %v1667, 7
    %v1669 = vsub.s32 %v1666, %v1668
    %v1670 = vrot.slane %v1662, %v1669
    %v1672 = vunpack.c.l.s4 1983009808
    %v1673 = vunpack.c.0.s8 %v1672
    %v1674 = vlaneseq
    %v1675 = vshrl.u32 %v1674, 7
    %v1676 = vsub.s32 %v1673, %v1675
    %v1677 = vrot.slane %v1663, %v1676
    %v1678 = vcombine.low %v143, %v277
    %v1679 = vcombine.high %v143, %v277
    %v1681 = vunpack.c.l.s4 1983009808
    %v1682 = vunpack.c.0.s8 %v1681
    %v1683 = vlaneseq
    %v1684 = vshrl.u32 %v1683, 7
    %v1685 = vsub.s32 %v1682, %v1684
    %v1686 = vrot.slane %v1678, %v1685
    %v1688 = vunpack.c.l.s4 1983009808
    %v1689 = vunpack.c.0.s8 %v1688
    %v1690 = vlaneseq
    %v1691 = vshrl.u32 %v1690, 7
    %v1692 = vsub.s32 %v1689, %v1691
    %v1693 = vrot.slane %v1679, %v1692
    %v1694 = vcombine.low %v344, %v478
    %v1695 = vcombine.high %v344, %v478
    %v1697 = vunpack.c.l.s4 1983009808
    %v1698 = vunpack.c.0.s8 %v1697
    %v1699 = vlaneseq
    %v1700 = vshrl.u32 %v1699, 7
    %v1701 = vsub.s32 %v1698, %v1700
    %v1702 = vrot.slane %v1694, %v1701
    %v1704 = vunpack.c.l.s4 1983009808
    %v1705 = vunpack.c.0.s8 %v1704
    %v1706 = vlaneseq
    %v1707 = vshrl.u32 %v1706, 7
    %v1708 = vsub.s32 %v1705, %v1707
    %v1709 = vrot.slane %v1695, %v1708
    %v1710 = vcombine.low %v411, %v545
    %v1711 = vcombine.high %v411, %v545
    %v1713 = vunpack.c.l.s4 1983009808
    %v1714 = vunpack.c.0.s8 %v1713
    %v1715 = vlaneseq
    %v1716 = vshrl.u32 %v1715, 7
    %v1717 = vsub.s32 %v1714, %v1716
    %v1718 = vrot.slane %v1710, %v1717
    %v1720 = vunpack.c.l.s4 1983009808
    %v1721 = vunpack.c.0.s8 %v1720
    %v1722 = vlaneseq
    %v1723 = vshrl.u32 %v1722, 7
    %v1724 = vsub.s32 %v1721, %v1723
    %v1725 = vrot.slane %v1711, %v1724
    %v1726 = vcombine.low %v1670, %v1686
    %v1727 = vcombine.high %v1670, %v1686
    %v1729 = vunpack.c.l.s4 1934713408
    %v1730 = vunpack.c.0.s8 %v1729
    %v1731 = vlaneseq
    %v1732 = vshrl.u32 %v1731, 7
    %v1733 = vsub.s32 %v1730, %v1732
    %v1734 = vrot.slane %v1726, %v1733
    %v1736 = vunpack.c.l.s4 1934713408
    %v1737 = vunpack.c.0.s8 %v1736
    %v1738 = vlaneseq
    %v1739 = vshrl.u32 %v1738, 7
    %v1740 = vsub.s32 %v1737, %v1739
    %v1741 = vrot.slane %v1727, %v1740
    %v1742 = vcombine.low %v1677, %v1693
    %v1743 = vcombine.high %v1677, %v1693
    %v1745 = vunpack.c.l.s4 1934713408
    %v1746 = vunpack.c.0.s8 %v1745
    %v1747 = vlaneseq
    %v1748 = vshrl.u32 %v1747, 7
    %v1749 = vsub.s32 %v1746, %v1748
    %v1750 = vrot.slane %v1742, %v1749
    %v1752 = vunpack.c.l.s4 1934713408
    %v1753 = vunpack.c.0.s8 %v1752
    %v1754 = vlaneseq
    %v1755 = vshrl.u32 %v1754, 7
    %v1756 = vsub.s32 %v1753, %v1755
    %v1757 = vrot.slane %v1743, %v1756
    %v1758 = vcombine.low %v1702, %v1718
    %v1759 = vcombine.high %v1702, %v1718
    %v1761 = vunpack.c.l.s4 1934713408
    %v1762 = vunpack.c.0.s8 %v1761
    %v1763 = vlaneseq
    %v1764 = vshrl.u32 %v1763, 7
    %v1765 = vsub.s32 %v1762, %v1764
    %v1766 = vrot.slane %v1758, %v1765
    %v1768 = vunpack.c.l.s4 1934713408
    %v1769 = vunpack.c.0.s8 %v1768
    %v1770 = vlaneseq
    %v1771 = vshrl.u32 %v1770, 7
    %v1772 = vsub.s32 %v1769, %v1771
    %v1773 = vrot.slane %v1759, %v1772
    %v1774 = vcombine.low %v1709, %v1725
    %v1775 = vcombine.high %v1709, %v1725
    %v1777 = vunpack.c.l.s4 1934713408
    %v1778 = vunpack.c.0.s8 %v1777
    %v1779 = vlaneseq
    %v1780 = vshrl.u32 %v1779, 7
    %v1781 = vsub.s32 %v1778, %v1780
    %v1782 = vrot.slane %v1774, %v1781
    %v1784 = vunpack.c.l.s4 1934713408
    %v1785 = vunpack.c.0.s8 %v1784
    %v1786 = vlaneseq
    %v1787 = vshrl.u32 %v1786, 7
    %v1788 = vsub.s32 %v1785, %v1787
    %v1789 = vrot.slane %v1775, %v1788
    %v1790 = vcombine.low %v1734, %v1766
    %v1791 = vcombine.high %v1734, %v1766
    %v1792 = vcombine.low %v1741, %v1773
    %v1793 = vcombine.high %v1741, %v1773
    %v1794 = vcombine.low %v1750, %v1782
    %v1795 = vcombine.high %v1750, %v1782
    %v1796 = vcombine.low %v1757, %v1789
    %v1797 = vcombine.high %v1757, %v1789
    %v1798 = vcombine.low %v80, %v214
    %v1799 = vcombine.high %v80, %v214
    %v1801 = vunpack.c.l.s4 1983009808
    %v1802 = vunpack.c.0.s8 %v1801
    %v1803 = vlaneseq
    %v1804 = vshrl.u32 %v1803, 7
    %v1805 = vsub.s32 %v1802, %v1804
    %v1806 = vrot.slane %v1798, %v1805
    %v1808 = vunpack.c.l.s4 1983009808
    %v1809 = vunpack.c.0.s8 %v1808
    %v1810 = vlaneseq
    %v1811 = vshrl.u32 %v1810, 7
    %v1812 = vsub.s32 %v1809, %v1811
    %v1813 = vrot.slane %v1799, %v1812
    %v1814 = vcombine.low %v147, %v281
    %v1815 = vcombine.high %v147, %v281
    %v1817 = vunpack.c.l.s4 1983009808
    %v1818 = vunpack.c.0.s8 %v1817
    %v1819 = vlaneseq
    %v1820 = vshrl.u32 %v1819, 7
    %v1821 = vsub.s32 %v1818, %v1820
    %v1822 = vrot.slane %v1814, %v1821
    %v1824 = vunpack.c.l.s4 1983009808
    %v1825 = vunpack.c.0.s8 %v1824
    %v1826 = vlaneseq
    %v1827 = vshrl.u32 %v1826, 7
    %v1828 = vsub.s32 %v1825, %v1827
    %v1829 = vrot.slane %v1815, %v1828
    %v1830 = vcombine.low %v348, %v482
    %v1831 = vcombine.high %v348, %v482
    %v1833 = vunpack.c.l.s4 1983009808
    %v1834 = vunpack.c.0.s8 %v1833
    %v1835 = vlaneseq
    %v1836 = vshrl.u32 %v1835, 7
    %v1837 = vsub.s32 %v1834, %v1836
    %v1838 = vrot.slane %v1830, %v1837
    %v1840 = vunpack.c.l.s4 1983009808
    %v1841 = vunpack.c.0.s8 %v1840
    %v1842 = vlaneseq
    %v1843 = vshrl.u32 %v1842, 7
    %v1844 = vsub.s32 %v1841, %v1843
    %v1845 = vrot.slane %v1831, %v1844
    %v1846 = vcombine.low %v415, %v549
    %v1847 = vcombine.high %v415, %v549
    %v1849 = vunpack.c.l.s4 1983009808
    %v1850 = vunpack.c.0.s8 %v1849
    %v1851 = vlaneseq
    %v1852 = vshrl.u32 %v1851, 7
    %v1853 = vsub.s32 %v1850, %v1852
    %v1854 = vrot.slane %v1846, %v1853
    %v1856 = vunpack.c.l.s4 1983009808
    %v1857 = vunpack.c.0.s8 %v1856
    %v1858 = vlaneseq
    %v1859 = vshrl.u32 %v1858, 7
    %v1860 = vsub.s32 %v1857, %v1859
    %v1861 = vrot.slane %v1847, %v1860
    %v1862 = vcombine.low %v1806, %v1822
    %v1863 = vcombine.high %v1806, %v1822
    %v1865 = vunpack.c.l.s4 1934713408
    %v1866 = vunpack.c.0.s8 %v1865
    %v1867 = vlaneseq
    %v1868 = vshrl.u32 %v1867, 7
    %v1869 = vsub.s32 %v1866, %v1868
    %v1870 = vrot.slane %v1862, %v1869
    %v1872 = vunpack.c.l.s4 1934713408
    %v1873 = vunpack.c.0.s8 %v1872
    %v1874 = vlaneseq
    %v1875 = vshrl.u32 %v1874, 7
    %v1876 = vsub.s32 %v1873, %v1875
    %v1877 = vrot.slane %v1863, %v1876
    %v1878 = vcombine.low %v1813, %v1829
    %v1879 = vcombine.high %v1813, %v1829
    %v1881 = vunpack.c.l.s4 1934713408
    %v1882 = vunpack.c.0.s8 %v1881
    %v1883 = vlaneseq
    %v1884 = vshrl.u32 %v1883, 7
    %v1885 = vsub.s32 %v1882, %v1884
    %v1886 = vrot.slane %v1878, %v1885
    %v1888 = vunpack.c.l.s4 1934713408
    %v1889 = vunpack.c.0.s8 %v1888
    %v1890 = vlaneseq
    %v1891 = vshrl.u32 %v1890, 7
    %v1892 = vsub.s32 %v1889, %v1891
    %v1893 = vrot.slane %v1879, %v1892
    %v1894 = vcombine.low %v1838, %v1854
    %v1895 = vcombine.high %v1838, %v1854
    %v1897 = vunpack.c.l.s4 1934713408
    %v1898 = vunpack.c.0.s8 %v1897
    %v1899 = vlaneseq
    %v1900 = vshrl.u32 %v1899, 7
    %v1901 = vsub.s32 %v1898, %v1900
    %v1902 = vrot.slane %v1894, %v1901
    %v1904 = vunpack.c.l.s4 1934713408
    %v1905 = vunpack.c.0.s8 %v1904
    %v1906 = vlaneseq
    %v1907 = vshrl.u32 %v1906, 7
    %v1908 = vsub.s32 %v1905, %v1907
    %v1909 = vrot.slane %v1895, %v1908
    %v1910 = vcombine.low %v1845, %v1861
    %v1911 = vcombine.high %v1845, %v1861
    %v1913 = vunpack.c.l.s4 1934713408
    %v1914 = vunpack.c.0.s8 %v1913
    %v1915 = vlaneseq
    %v1916 = vshrl.u32 %v1915, 7
    %v1917 = vsub.s32 %v1914, %v1916
    %v1918 = vrot.slane %v1910, %v1917
    %v1920 = vunpack.c.l.s4 1934713408
    %v1921 = vunpack.c.0.s8 %v1920
    %v1922 = vlaneseq
    %v1923 = vshrl.u32 %v1922, 7
    %v1924 = vsub.s32 %v1921, %v1923
    %v1925 = vrot.slane %v1911, %v1924
    %v1926 = vcombine.low %v1870, %v1902
    %v1927 = vcombine.high %v1870, %v1902
    %v1928 = vcombine.low %v1877, %v1909
    %v1929 = vcombine.high %v1877, %v1909
    %v1930 = vcombine.low %v1886, %v1918
    %v1931 = vcombine.high %v1886, %v1918
    %v1932 = vcombine.low %v1893, %v1925
    %v1933 = vcombine.high %v1893, %v1925
    %v1934 = vcombine.low %v84, %v218
    %v1935 = vcombine.high %v84, %v218
    %v1937 = vunpack.c.l.s4 1983009808
    %v1938 = vunpack.c.0.s8 %v1937
    %v1939 = vlaneseq
    %v1940 = vshrl.u32 %v1939, 7
    %v1941 = vsub.s32 %v1938, %v1940
    %v1942 = vrot.slane %v1934, %v1941
    %v1944 = vunpack.c.l.s4 1983009808
    %v1945 = vunpack.c.0.s8 %v1944
    %v1946 = vlaneseq
    %v1947 = vshrl.u32 %v1946, 7
    %v1948 = vsub.s32 %v1945, %v1947
    %v1949 = vrot.slane %v1935, %v1948
    %v1950 = vcombine.low %v151, %v285
    %v1951 = vcombine.high %v151, %v285
    %v1953 = vunpack.c.l.s4 1983009808
    %v1954 = vunpack.c.0.s8 %v1953
    %v1955 = vlaneseq
    %v1956 = vshrl.u32 %v1955, 7
    %v1957 = vsub.s32 %v1954, %v1956
    %v1958 = vrot.slane %v1950, %v1957
    %v1960 = vunpack.c.l.s4 1983009808
    %v1961 = vunpack.c.0.s8 %v1960
    %v1962 = vlaneseq
    %v1963 = vshrl.u32 %v1962, 7
    %v1964 = vsub.s32 %v1961, %v1963
    %v1965 = vrot.slane %v1951, %v1964
    %v1966 = vcombine.low %v352, %v486
    %v1967 = vcombine.high %v352, %v486
    %v1969 = vunpack.c.l.s4 1983009808
    %v1970 = vunpack.c.0.s8 %v1969
    %v1971 = vlaneseq
    %v1972 = vshrl.u32 %v1971, 7
    %v1973 = vsub.s32 %v1970, %v1972
    %v1974 = vrot.slane %v1966, %v1973
    %v1976 = vunpack.c.l.s4 1983009808
    %v1977 = vunpack.c.0.s8 %v1976
    %v1978 = vlaneseq
    %v1979 = vshrl.u32 %v1978, 7
    %v1980 = vsub.s32 %v1977, %v1979
    %v1981 = vrot.slane %v1967, %v1980
    %v1982 = vcombine.low %v419, %v553
    %v1983 = vcombine.high %v419, %v553
    %v1985 = vunpack.c.l.s4 1983009808
    %v1986 = vunpack.c.0.s8 %v1985
    %v1987 = vlaneseq
    %v1988 = vshrl.u32 %v1987, 7
    %v1989 = vsub.s32 %v1986, %v1988
    %v1990 = vrot.slane %v1982, %v1989
    %v1992 = vunpack.c.l.s4 1983009808
    %v1993 = vunpack.c.0.s8 %v1992
    %v1994 = vlaneseq
    %v1995 = vshrl.u32 %v1994, 7
    %v1996 = vsub.s32 %v1993, %v1995
    %v1997 = vrot.slane %v1983, %v1996
    %v1998 = vcombine.low %v1942, %v1958
    %v1999 = vcombine.high %v1942, %v1958
    %v2001 = vunpack.c.l.s4 1934713408
    %v2002 = vunpack.c.0.s8 %v2001
    %v2003 = vlaneseq
    %v2004 = vshrl.u32 %v2003, 7
    %v2005 = vsub.s32 %v2002, %v2004
    %v2006 = vrot.slane %v1998, %v2005
    %v2008 = vunpack.c.l.s4 1934713408
    %v2009 = vunpack.c.0.s8 %v2008
    %v2010 = vlaneseq
    %v2011 = vshrl.u32 %v2010, 7
    %v2012 = vsub.s32 %v2009, %v2011
    %v2013 = vrot.slane %v1999, %v2012
    %v2014 = vcombine.low %v1949, %v1965
    %v2015 = vcombine.high %v1949, %v1965
    %v2017 = vunpack.c.l.s4 1934713408
    %v2018 = vunpack.c.0.s8 %v2017
    %v2019 = vlaneseq
    %v2020 = vshrl.u32 %v2019, 7
    %v2021 = vsub.s32 %v2018, %v2020
    %v2022 = vrot.slane %v2014, %v2021
    %v2024 = vunpack.c.l.s4 1934713408
    %v2025 = vunpack.c.0.s8 %v2024
    %v2026 = vlaneseq
    %v2027 = vshrl.u32 %v2026, 7
    %v2028 = vsub.s32 %v2025, %v2027
    %v2029 = vrot.slane %v2015, %v2028
    %v2030 = vcombine.low %v1974, %v1990
    %v2031 = vcombine.high %v1974, %v1990
    %v2033 = vunpack.c.l.s4 1934713408
    %v2034 = vunpack.c.0.s8 %v2033
    %v2035 = vlaneseq
    %v2036 = vshrl.u32 %v2035, 7
    %v2037 = vsub.s32 %v2034, %v2036
    %v2038 = vrot.slane %v2030, %v2037
    %v2040 = vunpack.c.l.s4 1934713408
    %v2041 = vunpack.c.0.s8 %v2040
    %v2042 = vlaneseq
    %v2043 = vshrl.u32 %v2042, 7
    %v2044 = vsub.s32 %v2041, %v2043
    %v2045 = vrot.slane %v2031, %v2044
    %v2046 = vcombine.low %v1981, %v1997
    %v2047 = vcombine.high %v1981, %v1997
    %v2049 = vunpack.c.l.s4 1934713408
    %v2050 = vunpack.c.0.s8 %v2049
    %v2051 = vlaneseq
    %v2052 = vshrl.u32 %v2051, 7
    %v2053 = vsub.s32 %v2050, %v2052
    %v2054 = vrot.slane %v2046, %v2053
    %v2056 = vunpack.c.l.s4 1934713408
    %v2057 = vunpack.c.0.s8 %v2056
    %v2058 = vlaneseq
    %v2059 = vshrl.u32 %v2058, 7
    %v2060 = vsub.s32 %v2057, %v2059
    %v2061 = vrot.slane %v2047, %v2060
    %v2062 = vcombine.low %v2006, %v2038
    %v2063 = vcombine.high %v2006, %v2038
    %v2064 = vcombine.low %v2013, %v2045
    %v2065 = vcombine.high %v2013, %v2045
    %v2066 = vcombine.low %v2022, %v2054
    %v2067 = vcombine.high %v2022, %v2054
    %v2068 = vcombine.low %v2029, %v2061
    %v2069 = vcombine.high %v2029, %v2061
    %v2070 = vcombine.low %v88, %v222
    %v2071 = vcombine.high %v88, %v222
    %v2073 = vunpack.c.l.s4 1983009808
    %v2074 = vunpack.c.0.s8 %v2073
    %v2075 = vlaneseq
    %v2076 = vshrl.u32 %v2075, 7
    %v2077 = vsub.s32 %v2074, %v2076
    %v2078 = vrot.slane %v2070, %v2077
    %v2080 = vunpack.c.l.s4 1983009808
    %v2081 = vunpack.c.0.s8 %v2080
    %v2082 = vlaneseq
    %v2083 = vshrl.u32 %v2082, 7
    %v2084 = vsub.s32 %v2081, %v2083
    %v2085 = vrot.slane %v2071, %v2084
    %v2086 = vcombine.low %v155, %v289
    %v2087 = vcombine.high %v155, %v289
    %v2089 = vunpack.c.l.s4 1983009808
    %v2090 = vunpack.c.0.s8 %v2089
    %v2091 = vlaneseq
    %v2092 = vshrl.u32 %v2091, 7
    %v2093 = vsub.s32 %v2090, %v2092
    %v2094 = vrot.slane %v2086, %v2093
    %v2096 = vunpack.c.l.s4 1983009808
    %v2097 = vunpack.c.0.s8 %v2096
    %v2098 = vlaneseq
    %v2099 = vshrl.u32 %v2098, 7
    %v2100 = vsub.s32 %v2097, %v2099
    %v2101 = vrot.slane %v2087, %v2100
    %v2102 = vcombine.low %v356, %v490
    %v2103 = vcombine.high %v356, %v490
    %v2105 = vunpack.c.l.s4 1983009808
    %v2106 = vunpack.c.0.s8 %v2105
    %v2107 = vlaneseq
    %v2108 = vshrl.u32 %v2107, 7
    %v2109 = vsub.s32 %v2106, %v2108
    %v2110 = vrot.slane %v2102, %v2109
    %v2112 = vunpack.c.l.s4 1983009808
    %v2113 = vunpack.c.0.s8 %v2112
    %v2114 = vlaneseq
    %v2115 = vshrl.u32 %v2114, 7
    %v2116 = vsub.s32 %v2113, %v2115
    %v2117 = vrot.slane %v2103, %v2116
    %v2118 = vcombine.low %v423, %v557
    %v2119 = vcombine.high %v423, %v557
    %v2121 = vunpack.c.l.s4 1983009808
    %v2122 = vunpack.c.0.s8 %v2121
    %v2123 = vlaneseq
    %v2124 = vshrl.u32 %v2123, 7
    %v2125 = vsub.s32 %v2122, %v2124
    %v2126 = vrot.slane %v2118, %v2125
    %v2128 = vunpack.c.l.s4 1983009808
    %v2129 = vunpack.c.0.s8 %v2128
    %v2130 = vlaneseq
    %v2131 = vshrl.u32 %v2130, 7
    %v2132 = vsub.s32 %v2129, %v2131
    %v2133 = vrot.slane %v2119, %v2132
    %v2134 = vcombine.low %v2078, %v2094
    %v2135 = vcombine.high %v2078, %v2094
    %v2137 = vunpack.c.l.s4 1934713408
    %v2138 = vunpack.c.0.s8 %v2137
    %v2139 = vlaneseq
    %v2140 = vshrl.u32 %v2139, 7
    %v2141 = vsub.s32 %v2138, %v2140
    %v2142 = vrot.slane %v2134, %v2141
    %v2144 = vunpack.c.l.s4 1934713408
    %v2145 = vunpack.c.0.s8 %v2144
    %v2146 = vlaneseq
    %v2147 = vshrl.u32 %v2146, 7
    %v2148 = vsub.s32 %v2145, %v2147
    %v2149 = vrot.slane %v2135, %v2148
    %v2150 = vcombine.low %v2085, %v2101
    %v2151 = vcombine.high %v2085, %v2101
    %v2153 = vunpack.c.l.s4 1934713408
    %v2154 = vunpack.c.0.s8 %v2153
    %v2155 = vlaneseq
    %v2156 = vshrl.u32 %v2155, 7
    %v2157 = vsub.s32 %v2154, %v2156
    %v2158 = vrot.slane %v2150, %v2157
    %v2160 = vunpack.c.l.s4 1934713408
    %v2161 = vunpack.c.0.s8 %v2160
    %v2162 = vlaneseq
    %v2163 = vshrl.u32 %v2162, 7
    %v2164 = vsub.s32 %v2161, %v2163
    %v2165 = vrot.slane %v2151, %v2164
    %v2166 = vcombine.low %v2110, %v2126
    %v2167 = vcombine.high %v2110, %v2126
    %v2169 = vunpack.c.l.s4 1934713408
    %v2170 = vunpack.c.0.s8 %v2169
    %v2171 = vlaneseq
    %v2172 = vshrl.u32 %v2171, 7
    %v2173 = vsub.s32 %v2170, %v2172
    %v2174 = vrot.slane %v2166, %v2173
    %v2176 = vunpack.c.l.s4 1934713408
    %v2177 = vunpack.c.0.s8 %v2176
    %v2178 = vlaneseq
    %v2179 = vshrl.u32 %v2178, 7
    %v2180 = vsub.s32 %v2177, %v2179
    %v2181 = vrot.slane %v2167, %v2180
    %v2182 = vcombine.low %v2117, %v2133
    %v2183 = vcombine.high %v2117, %v2133
    %v2185 = vunpack.c.l.s4 1934713408
    %v2186 = vunpack.c.0.s8 %v2185
    %v2187 = vlaneseq
    %v2188 = vshrl.u32 %v2187, 7
    %v2189 = vsub.s32 %v2186, %v2188
    %v2190 = vrot.slane %v2182, %v2189
    %v2192 = vunpack.c.l.s4 1934713408
    %v2193 = vunpack.c.0.s8 %v2192
    %v2194 = vlaneseq
    %v2195 = vshrl.u32 %v2194, 7
    %v2196 = vsub.s32 %v2193, %v2195
    %v2197 = vrot.slane %v2183, %v2196
    %v2198 = vcombine.low %v2142, %v2174
    %v2199 = vcombine.high %v2142, %v2174
    %v2200 = vcombine.low %v2149, %v2181
    %v2201 = vcombine.high %v2149, %v2181
    %v2202 = vcombine.low %v2158, %v2190
    %v2203 = vcombine.high %v2158, %v2190
    %v2204 = vcombine.low %v2165, %v2197
    %v2205 = vcombine.high %v2165, %v2197
    %v2206 = vcombine.low %v92, %v226
    %v2207 = vcombine.high %v92, %v226
    %v2209 = vunpack.c.l.s4 1983009808
    %v2210 = vunpack.c.0.s8 %v2209
    %v2211 = vlaneseq
    %v2212 = vshrl.u32 %v2211, 7
    %v2213 = vsub.s32 %v2210, %v2212
    %v2214 = vrot.slane %v2206, %v2213
    %v2216 = vunpack.c.l.s4 1983009808
    %v2217 = vunpack.c.0.s8 %v2216
    %v2218 = vlaneseq
    %v2219 = vshrl.u32 %v2218, 7
    %v2220 = vsub.s32 %v2217, %v2219
    %v2221 = vrot.slane %v2207, %v2220
    %v2222 = vcombine.low %v159, %v293
    %v2223 = vcombine.high %v159, %v293
    %v2225 = vunpack.c.l.s4 1983009808
    %v2226 = vunpack.c.0.s8 %v2225
    %v2227 = vlaneseq
    %v2228 = vshrl.u32 %v2227, 7
    %v2229 = vsub.s32 %v2226, %v2228
    %v2230 = vrot.slane %v2222, %v2229
    %v2232 = vunpack.c.l.s4 1983009808
    %v2233 = vunpack.c.0.s8 %v2232
    %v2234 = vlaneseq
    %v2235 = vshrl.u32 %v2234, 7
    %v2236 = vsub.s32 %v2233, %v2235
    %v2237 = vrot.slane %v2223, %v2236
    %v2238 = vcombine.low %v360, %v494
    %v2239 = vcombine.high %v360, %v494
    %v2241 = vunpack.c.l.s4 1983009808
    %v2242 = vunpack.c.0.s8 %v2241
    %v2243 = vlaneseq
    %v2244 = vshrl.u32 %v2243, 7
    %v2245 = vsub.s32 %v2242, %v2244
    %v2246 = vrot.slane %v2238, %v2245
    %v2248 = vunpack.c.l.s4 1983009808
    %v2249 = vunpack.c.0.s8 %v2248
    %v2250 = vlaneseq
    %v2251 = vshrl.u32 %v2250, 7
    %v2252 = vsub.s32 %v2249, %v2251
    %v2253 = vrot.slane %v2239, %v2252
    %v2254 = vcombine.low %v427, %v561
    %v2255 = vcombine.high %v427, %v561
    %v2257 = vunpack.c.l.s4 1983009808
    %v2258 = vunpack.c.0.s8 %v2257
    %v2259 = vlaneseq
    %v2260 = vshrl.u32 %v2259, 7
    %v2261 = vsub.s32 %v2258, %v2260
    %v2262 = vrot.slane %v2254, %v2261
    %v2264 = vunpack.c.l.s4 1983009808
    %v2265 = vunpack.c.0.s8 %v2264
    %v2266 = vlaneseq
    %v2267 = vshrl.u32 %v2266, 7
    %v2268 = vsub.s32 %v2265, %v2267
    %v2269 = vrot.slane %v2255, %v2268
    %v2270 = vcombine.low %v2214, %v2230
    %v2271 = vcombine.high %v2214, %v2230
    %v2273 = vunpack.c.l.s4 1934713408
    %v2274 = vunpack.c.0.s8 %v2273
    %v2275 = vlaneseq
    %v2276 = vshrl.u32 %v2275, 7
    %v2277 = vsub.s32 %v2274, %v2276
    %v2278 = vrot.slane %v2270, %v2277
    %v2280 = vunpack.c.l.s4 1934713408
    %v2281 = vunpack.c.0.s8 %v2280
    %v2282 = vlaneseq
    %v2283 = vshrl.u32 %v2282, 7
    %v2284 = vsub.s32 %v2281, %v2283
    %v2285 = vrot.slane %v2271, %v2284
    %v2286 = vcombine.low %v2221, %v2237
    %v2287 = vcombine.high %v2221, %v2237
    %v2289 = vunpack.c.l.s4 1934713408
    %v2290 = vunpack.c.0.s8 %v2289
    %v2291 = vlaneseq
    %v2292 = vshrl.u32 %v2291, 7
    %v2293 = vsub.s32 %v2290, %v2292
    %v2294 = vrot.slane %v2286, %v2293
    %v2296 = vunpack.c.l.s4 1934713408
    %v2297 = vunpack.c.0.s8 %v2296
    %v2298 = vlaneseq
    %v2299 = vshrl.u32 %v2298, 7
    %v2300 = vsub.s32 %v2297, %v2299
    %v2301 = vrot.slane %v2287, %v2300
    %v2302 = vcombine.low %v2246, %v2262
    %v2303 = vcombine.high %v2246, %v2262
    %v2305 = vunpack.c.l.s4 1934713408
    %v2306 = vunpack.c.0.s8 %v2305
    %v2307 = vlaneseq
    %v2308 = vshrl.u32 %v2307, 7
    %v2309 = vsub.s32 %v2306, %v2308
    %v2310 = vrot.slane %v2302, %v2309
    %v2312 = vunpack.c.l.s4 1934713408
    %v2313 = vunpack.c.0.s8 %v2312
    %v2314 = vlaneseq
    %v2315 = vshrl.u32 %v2314, 7
    %v2316 = vsub.s32 %v2313, %v2315
    %v2317 = vrot.slane %v2303, %v2316
    %v2318 = vcombine.low %v2253, %v2269
    %v2319 = vcombine.high %v2253, %v2269
    %v2321 = vunpack.c.l.s4 1934713408
    %v2322 = vunpack.c.0.s8 %v2321
    %v2323 = vlaneseq
    %v2324 = vshrl.u32 %v2323, 7
    %v2325 = vsub.s32 %v2322, %v2324
    %v2326 = vrot.slane %v2318, %v2325
    %v2328 = vunpack.c.l.s4 1934713408
    %v2329 = vunpack.c.0.s8 %v2328
    %v2330 = vlaneseq
    %v2331 = vshrl.u32 %v2330, 7
    %v2332 = vsub.s32 %v2329, %v2331
    %v2333 = vrot.slane %v2319, %v2332
    %v2334 = vcombine.low %v2278, %v2310
    %v2335 = vcombine.high %v2278, %v2310
    %v2336 = vcombine.low %v2285, %v2317
    %v2337 = vcombine.high %v2285, %v2317
    %v2338 = vcombine.low %v2294, %v2326
    %v2339 = vcombine.high %v2294, %v2326
    %v2340 = vcombine.low %v2301, %v2333
    %v2341 = vcombine.high %v2301, %v2333
    %v2342 = vcombine.low %v96, %v230
    %v2343 = vcombine.high %v96, %v230
    %v2345 = vunpack.c.l.s4 1983009808
    %v2346 = vunpack.c.0.s8 %v2345
    %v2347 = vlaneseq
    %v2348 = vshrl.u32 %v2347, 7
    %v2349 = vsub.s32 %v2346, %v2348
    %v2350 = vrot.slane %v2342, %v2349
    %v2352 = vunpack.c.l.s4 1983009808
    %v2353 = vunpack.c.0.s8 %v2352
    %v2354 = vlaneseq
    %v2355 = vshrl.u32 %v2354, 7
    %v2356 = vsub.s32 %v2353, %v2355
    %v2357 = vrot.slane %v2343, %v2356
    %v2358 = vcombine.low %v163, %v297
    %v2359 = vcombine.high %v163, %v297
    %v2361 = vunpack.c.l.s4 1983009808
    %v2362 = vunpack.c.0.s8 %v2361
    %v2363 = vlaneseq
    %v2364 = vshrl.u32 %v2363, 7
    %v2365 = vsub.s32 %v2362, %v2364
    %v2366 = vrot.slane %v2358, %v2365
    %v2368 = vunpack.c.l.s4 1983009808
    %v2369 = vunpack.c.0.s8 %v2368
    %v2370 = vlaneseq
    %v2371 = vshrl.u32 %v2370, 7
    %v2372 = vsub.s32 %v2369, %v2371
    %v2373 = vrot.slane %v2359, %v2372
    %v2374 = vcombine.low %v364, %v498
    %v2375 = vcombine.high %v364, %v498
    %v2377 = vunpack.c.l.s4 1983009808
    %v2378 = vunpack.c.0.s8 %v2377
    %v2379 = vlaneseq
    %v2380 = vshrl.u32 %v2379, 7
    %v2381 = vsub.s32 %v2378, %v2380
    %v2382 = vrot.slane %v2374, %v2381
    %v2384 = vunpack.c.l.s4 1983009808
    %v2385 = vunpack.c.0.s8 %v2384
    %v2386 = vlaneseq
    %v2387 = vshrl.u32 %v2386, 7
    %v2388 = vsub.s32 %v2385, %v2387
    %v2389 = vrot.slane %v2375, %v2388
    %v2390 = vcombine.low %v431, %v565
    %v2391 = vcombine.high %v431, %v565
    %v2393 = vunpack.c.l.s4 1983009808
    %v2394 = vunpack.c.0.s8 %v2393
    %v2395 = vlaneseq
    %v2396 = vshrl.u32 %v2395, 7
    %v2397 = vsub.s32 %v2394, %v2396
    %v2398 = vrot.slane %v2390, %v2397
    %v2400 = vunpack.c.l.s4 1983009808
    %v2401 = vunpack.c.0.s8 %v2400
    %v2402 = vlaneseq
    %v2403 = vshrl.u32 %v2402, 7
    %v2404 = vsub.s32 %v2401, %v2403
    %v2405 = vrot.slane %v2391, %v2404
    %v2406 = vcombine.low %v2350, %v2366
    %v2407 = vcombine.high %v2350, %v2366
    %v2409 = vunpack.c.l.s4 1934713408
    %v2410 = vunpack.c.0.s8 %v2409
    %v2411 = vlaneseq
    %v2412 = vshrl.u32 %v2411, 7
    %v2413 = vsub.s32 %v2410, %v2412
    %v2414 = vrot.slane %v2406, %v2413
    %v2416 = vunpack.c.l.s4 1934713408
    %v2417 = vunpack.c.0.s8 %v2416
    %v2418 = vlaneseq
    %v2419 = vshrl.u32 %v2418, 7
    %v2420 = vsub.s32 %v2417, %v2419
    %v2421 = vrot.slane %v2407, %v2420
    %v2422 = vcombine.low %v2357, %v2373
    %v2423 = vcombine.high %v2357, %v2373
    %v2425 = vunpack.c.l.s4 1934713408
    %v2426 = vunpack.c.0.s8 %v2425
    %v2427 = vlaneseq
    %v2428 = vshrl.u32 %v2427, 7
    %v2429 = vsub.s32 %v2426, %v2428
    %v2430 = vrot.slane %v2422, %v2429
    %v2432 = vunpack.c.l.s4 1934713408
    %v2433 = vunpack.c.0.s8 %v2432
    %v2434 = vlaneseq
    %v2435 = vshrl.u32 %v2434, 7
    %v2436 = vsub.s32 %v2433, %v2435
    %v2437 = vrot.slane %v2423, %v2436
    %v2438 = vcombine.low %v2382, %v2398
    %v2439 = vcombine.high %v2382, %v2398
    %v2441 = vunpack.c.l.s4 1934713408
    %v2442 = vunpack.c.0.s8 %v2441
    %v2443 = vlaneseq
    %v2444 = vshrl.u32 %v2443, 7
    %v2445 = vsub.s32 %v2442, %v2444
    %v2446 = vrot.slane %v2438, %v2445
    %v2448 = vunpack.c.l.s4 1934713408
    %v2449 = vunpack.c.0.s8 %v2448
    %v2450 = vlaneseq
    %v2451 = vshrl.u32 %v2450, 7
    %v2452 = vsub.s32 %v2449, %v2451
    %v2453 = vrot.slane %v2439, %v2452
    %v2454 = vcombine.low %v2389, %v2405
    %v2455 = vcombine.high %v2389, %v2405
    %v2457 = vunpack.c.l.s4 1934713408
    %v2458 = vunpack.c.0.s8 %v2457
    %v2459 = vlaneseq
    %v2460 = vshrl.u32 %v2459, 7
    %v2461 = vsub.s32 %v2458, %v2460
    %v2462 = vrot.slane %v2454, %v2461
    %v2464 = vunpack.c.l.s4 1934713408
    %v2465 = vunpack.c.0.s8 %v2464
    %v2466 = vlaneseq
    %v2467 = vshrl.u32 %v2466, 7
    %v2468 = vsub.s32 %v2465, %v2467
    %v2469 = vrot.slane %v2455, %v2468
    %v2470 = vcombine.low %v2414, %v2446
    %v2471 = vcombine.high %v2414, %v2446
    %v2472 = vcombine.low %v2421, %v2453
    %v2473 = vcombine.high %v2421, %v2453
    %v2474 = vcombine.low %v2430, %v2462
    %v2475 = vcombine.high %v2430, %v2462
    %v2476 = vcombine.low %v2437, %v2469
    %v2477 = vcombine.high %v2437, %v2469
    %v2478 = vcombine.low %v100, %v234
    %v2479 = vcombine.high %v100, %v234
    %v2481 = vunpack.c.l.s4 1983009808
    %v2482 = vunpack.c.0.s8 %v2481
    %v2483 = vlaneseq
    %v2484 = vshrl.u32 %v2483, 7
    %v2485 = vsub.s32 %v2482, %v2484
    %v2486 = vrot.slane %v2478, %v2485
    %v2488 = vunpack.c.l.s4 1983009808
    %v2489 = vunpack.c.0.s8 %v2488
    %v2490 = vlaneseq
    %v2491 = vshrl.u32 %v2490, 7
    %v2492 = vsub.s32 %v2489, %v2491
    %v2493 = vrot.slane %v2479, %v2492
    %v2494 = vcombine.low %v167, %v301
    %v2495 = vcombine.high %v167, %v301
    %v2497 = vunpack.c.l.s4 1983009808
    %v2498 = vunpack.c.0.s8 %v2497
    %v2499 = vlaneseq
    %v2500 = vshrl.u32 %v2499, 7
    %v2501 = vsub.s32 %v2498, %v2500
    %v2502 = vrot.slane %v2494, %v2501
    %v2504 = vunpack.c.l.s4 1983009808
    %v2505 = vunpack.c.0.s8 %v2504
    %v2506 = vlaneseq
    %v2507 = vshrl.u32 %v2506, 7
    %v2508 = vsub.s32 %v2505, %v2507
    %v2509 = vrot.slane %v2495, %v2508
    %v2510 = vcombine.low %v368, %v502
    %v2511 = vcombine.high %v368, %v502
    %v2513 = vunpack.c.l.s4 1983009808
    %v2514 = vunpack.c.0.s8 %v2513
    %v2515 = vlaneseq
    %v2516 = vshrl.u32 %v2515, 7
    %v2517 = vsub.s32 %v2514, %v2516
    %v2518 = vrot.slane %v2510, %v2517
    %v2520 = vunpack.c.l.s4 1983009808
    %v2521 = vunpack.c.0.s8 %v2520
    %v2522 = vlaneseq
    %v2523 = vshrl.u32 %v2522, 7
    %v2524 = vsub.s32 %v2521, %v2523
    %v2525 = vrot.slane %v2511, %v2524
    %v2526 = vcombine.low %v435, %v569
    %v2527 = vcombine.high %v435, %v569
    %v2529 = vunpack.c.l.s4 1983009808
    %v2530 = vunpack.c.0.s8 %v2529
    %v2531 = vlaneseq
    %v2532 = vshrl.u32 %v2531, 7
    %v2533 = vsub.s32 %v2530, %v2532
    %v2534 = vrot.slane %v2526, %v2533
    %v2536 = vunpack.c.l.s4 1983009808
    %v2537 = vunpack.c.0.s8 %v2536
    %v2538 = vlaneseq
    %v2539 = vshrl.u32 %v2538, 7
    %v2540 = vsub.s32 %v2537, %v2539
    %v2541 = vrot.slane %v2527, %v2540
    %v2542 = vcombine.low %v2486, %v2502
    %v2543 = vcombine.high %v2486, %v2502
    %v2545 = vunpack.c.l.s4 1934713408
    %v2546 = vunpack.c.0.s8 %v2545
    %v2547 = vlaneseq
    %v2548 = vshrl.u32 %v2547, 7
    %v2549 = vsub.s32 %v2546, %v2548
    %v2550 = vrot.slane %v2542, %v2549
    %v2552 = vunpack.c.l.s4 1934713408
    %v2553 = vunpack.c.0.s8 %v2552
    %v2554 = vlaneseq
    %v2555 = vshrl.u32 %v2554, 7
    %v2556 = vsub.s32 %v2553, %v2555
    %v2557 = vrot.slane %v2543, %v2556
    %v2558 = vcombine.low %v2493, %v2509
    %v2559 = vcombine.high %v2493, %v2509
    %v2561 = vunpack.c.l.s4 1934713408
    %v2562 = vunpack.c.0.s8 %v2561
    %v2563 = vlaneseq
    %v2564 = vshrl.u32 %v2563, 7
    %v2565 = vsub.s32 %v2562, %v2564
    %v2566 = vrot.slane %v2558, %v2565
    %v2568 = vunpack.c.l.s4 1934713408
    %v2569 = vunpack.c.0.s8 %v2568
    %v2570 = vlaneseq
    %v2571 = vshrl.u32 %v2570, 7
    %v2572 = vsub.s32 %v2569, %v2571
    %v2573 = vrot.slane %v2559, %v2572
    %v2574 = vcombine.low %v2518, %v2534
    %v2575 = vcombine.high %v2518, %v2534
    %v2577 = vunpack.c.l.s4 1934713408
    %v2578 = vunpack.c.0.s8 %v2577
    %v2579 = vlaneseq
    %v2580 = vshrl.u32 %v2579, 7
    %v2581 = vsub.s32 %v2578, %v2580
    %v2582 = vrot.slane %v2574, %v2581
    %v2584 = vunpack.c.l.s4 1934713408
    %v2585 = vunpack.c.0.s8 %v2584
    %v2586 = vlaneseq
    %v2587 = vshrl.u32 %v2586, 7
    %v2588 = vsub.s32 %v2585, %v2587
    %v2589 = vrot.slane %v2575, %v2588
    %v2590 = vcombine.low %v2525, %v2541
    %v2591 = vcombine.high %v2525, %v2541
    %v2593 = vunpack.c.l.s4 1934713408
    %v2594 = vunpack.c.0.s8 %v2593
    %v2595 = vlaneseq
    %v2596 = vshrl.u32 %v2595, 7
    %v2597 = vsub.s32 %v2594, %v2596
    %v2598 = vrot.slane %v2590, %v2597
    %v2600 = vunpack.c.l.s4 1934713408
    %v2601 = vunpack.c.0.s8 %v2600
    %v2602 = vlaneseq
    %v2603 = vshrl.u32 %v2602, 7
    %v2604 = vsub.s32 %v2601, %v2603
    %v2605 = vrot.slane %v2591, %v2604
    %v2606 = vcombine.low %v2550, %v2582
    %v2607 = vcombine.high %v2550, %v2582
    %v2608 = vcombine.low %v2557, %v2589
    %v2609 = vcombine.high %v2557, %v2589
    %v2610 = vcombine.low %v2566, %v2598
    %v2611 = vcombine.high %v2566, %v2598
    %v2612 = vcombine.low %v2573, %v2605
    %v2613 = vcombine.high %v2573, %v2605
    %v2614 = vcombine.low %v104, %v238
    %v2615 = vcombine.high %v104, %v238
    %v2617 = vunpack.c.l.s4 1983009808
    %v2618 = vunpack.c.0.s8 %v2617
    %v2619 = vlaneseq
    %v2620 = vshrl.u32 %v2619, 7
    %v2621 = vsub.s32 %v2618, %v2620
    %v2622 = vrot.slane %v2614, %v2621
    %v2624 = vunpack.c.l.s4 1983009808
    %v2625 = vunpack.c.0.s8 %v2624
    %v2626 = vlaneseq
    %v2627 = vshrl.u32 %v2626, 7
    %v2628 = vsub.s32 %v2625, %v2627
    %v2629 = vrot.slane %v2615, %v2628
    %v2630 = vcombine.low %v171, %v305
    %v2631 = vcombine.high %v171, %v305
    %v2633 = vunpack.c.l.s4 1983009808
    %v2634 = vunpack.c.0.s8 %v2633
    %v2635 = vlaneseq
    %v2636 = vshrl.u32 %v2635, 7
    %v2637 = vsub.s32 %v2634, %v2636
    %v2638 = vrot.slane %v2630, %v2637
    %v2640 = vunpack.c.l.s4 1983009808
    %v2641 = vunpack.c.0.s8 %v2640
    %v2642 = vlaneseq
    %v2643 = vshrl.u32 %v2642, 7
    %v2644 = vsub.s32 %v2641, %v2643
    %v2645 = vrot.slane %v2631, %v2644
    %v2646 = vcombine.low %v372, %v506
    %v2647 = vcombine.high %v372, %v506
    %v2649 = vunpack.c.l.s4 1983009808
    %v2650 = vunpack.c.0.s8 %v2649
    %v2651 = vlaneseq
    %v2652 = vshrl.u32 %v2651, 7
    %v2653 = vsub.s32 %v2650, %v2652
    %v2654 = vrot.slane %v2646, %v2653
    %v2656 = vunpack.c.l.s4 1983009808
    %v2657 = vunpack.c.0.s8 %v2656
    %v2658 = vlaneseq
    %v2659 = vshrl.u32 %v2658, 7
    %v2660 = vsub.s32 %v2657, %v2659
    %v2661 = vrot.slane %v2647, %v2660
    %v2662 = vcombine.low %v439, %v573
    %v2663 = vcombine.high %v439, %v573
    %v2665 = vunpack.c.l.s4 1983009808
    %v2666 = vunpack.c.0.s8 %v2665
    %v2667 = vlaneseq
    %v2668 = vshrl.u32 %v2667, 7
    %v2669 = vsub.s32 %v2666, %v2668
    %v2670 = vrot.slane %v2662, %v2669
    %v2672 = vunpack.c.l.s4 1983009808
    %v2673 = vunpack.c.0.s8 %v2672
    %v2674 = vlaneseq
    %v2675 = vshrl.u32 %v2674, 7
    %v2676 = vsub.s32 %v2673, %v2675
    %v2677 = vrot.slane %v2663, %v2676
    %v2678 = vcombine.low %v2622, %v2638
    %v2679 = vcombine.high %v2622, %v2638
    %v2681 = vunpack.c.l.s4 1934713408
    %v2682 = vunpack.c.0.s8 %v2681
    %v2683 = vlaneseq
    %v2684 = vshrl.u32 %v2683, 7
    %v2685 = vsub.s32 %v2682, %v2684
    %v2686 = vrot.slane %v2678, %v2685
    %v2688 = vunpack.c.l.s4 1934713408
    %v2689 = vunpack.c.0.s8 %v2688
    %v2690 = vlaneseq
    %v2691 = vshrl.u32 %v2690, 7
    %v2692 = vsub.s32 %v2689, %v2691
    %v2693 = vrot.slane %v2679, %v2692
    %v2694 = vcombine.low %v2629, %v2645
    %v2695 = vcombine.high %v2629, %v2645
    %v2697 = vunpack.c.l.s4 1934713408
    %v2698 = vunpack.c.0.s8 %v2697
    %v2699 = vlaneseq
    %v2700 = vshrl.u32 %v2699, 7
    %v2701 = vsub.s32 %v2698, %v2700
    %v2702 = vrot.slane %v2694, %v2701
    %v2704 = vunpack.c.l.s4 1934713408
    %v2705 = vunpack.c.0.s8 %v2704
    %v2706 = vlaneseq
    %v2707 = vshrl.u32 %v2706, 7
    %v2708 = vsub.s32 %v2705, %v2707
    %v2709 = vrot.slane %v2695, %v2708
    %v2710 = vcombine.low %v2654, %v2670
    %v2711 = vcombine.high %v2654, %v2670
    %v2713 = vunpack.c.l.s4 1934713408
    %v2714 = vunpack.c.0.s8 %v2713
    %v2715 = vlaneseq
    %v2716 = vshrl.u32 %v2715, 7
    %v2717 = vsub.s32 %v2714, %v2716
    %v2718 = vrot.slane %v2710, %v2717
    %v2720 = vunpack.c.l.s4 1934713408
    %v2721 = vunpack.c.0.s8 %v2720
    %v2722 = vlaneseq
    %v2723 = vshrl.u32 %v2722, 7
    %v2724 = vsub.s32 %v2721, %v2723
    %v2725 = vrot.slane %v2711, %v2724
    %v2726 = vcombine.low %v2661, %v2677
    %v2727 = vcombine.high %v2661, %v2677
    %v2729 = vunpack.c.l.s4 1934713408
    %v2730 = vunpack.c.0.s8 %v2729
    %v2731 = vlaneseq
    %v2732 = vshrl.u32 %v2731, 7
    %v2733 = vsub.s32 %v2730, %v2732
    %v2734 = vrot.slane %v2726, %v2733
    %v2736 = vunpack.c.l.s4 1934713408
    %v2737 = vunpack.c.0.s8 %v2736
    %v2738 = vlaneseq
    %v2739 = vshrl.u32 %v2738, 7
    %v2740 = vsub.s32 %v2737, %v2739
    %v2741 = vrot.slane %v2727, %v2740
    %v2742 = vcombine.low %v2686, %v2718
    %v2743 = vcombine.high %v2686, %v2718
    %v2744 = vcombine.low %v2693, %v2725
    %v2745 = vcombine.high %v2693, %v2725
    %v2746 = vcombine.low %v2702, %v2734
    %v2747 = vcombine.high %v2702, %v2734
    %v2748 = vcombine.low %v2709, %v2741
    %v2749 = vcombine.high %v2709, %v2741
    %2751 = vrot.lane.b32.xlu0 %v703, 2
    %v2752 = vpop.permute.xlu0 %2751
    %2755 = vrot.lane.b32.xlu0 %v704, 4
    %v2756 = vpop.permute.xlu0 %2755
    %2759 = vrot.lane.b32.xlu0 %v705, 6
    %v2760 = vpop.permute.xlu0 %2759
    %2763 = vrot.lane.b32.xlu0 %v706, 8
    %v2764 = vpop.permute.xlu0 %2763
    %2767 = vrot.lane.b32.xlu0 %v707, 10
    %v2768 = vpop.permute.xlu0 %2767
    %2771 = vrot.lane.b32.xlu0 %v708, 12
    %v2772 = vpop.permute.xlu0 %2771
    %2775 = vrot.lane.b32.xlu0 %v709, 14
    %v2776 = vpop.permute.xlu0 %2775
    %2779 = vrot.lane.b32.xlu0 %v838, 16
    %v2780 = vpop.permute.xlu0 %2779
    %2783 = vrot.lane.b32.xlu0 %v839, 18
    %v2784 = vpop.permute.xlu0 %2783
    %2787 = vrot.lane.b32.xlu0 %v840, 20
    %v2788 = vpop.permute.xlu0 %2787
    %2791 = vrot.lane.b32.xlu0 %v841, 22
    %v2792 = vpop.permute.xlu0 %2791
    %2795 = vrot.lane.b32.xlu0 %v842, 24
    %v2796 = vpop.permute.xlu0 %2795
    %2799 = vrot.lane.b32.xlu0 %v843, 26
    %v2800 = vpop.permute.xlu0 %2799
    %2803 = vrot.lane.b32.xlu0 %v844, 28
    %v2804 = vpop.permute.xlu0 %2803
    %2807 = vrot.lane.b32.xlu0 %v845, 30
    %v2808 = vpop.permute.xlu0 %2807
    %2811 = vrot.lane.b32.xlu0 %v974, 32
    %v2812 = vpop.permute.xlu0 %2811
    %2815 = vrot.lane.b32.xlu0 %v975, 34
    %v2816 = vpop.permute.xlu0 %2815
    %2819 = vrot.lane.b32.xlu0 %v976, 36
    %v2820 = vpop.permute.xlu0 %2819
    %2823 = vrot.lane.b32.xlu0 %v977, 38
    %v2824 = vpop.permute.xlu0 %2823
    %2827 = vrot.lane.b32.xlu0 %v978, 40
    %v2828 = vpop.permute.xlu0 %2827
    %2831 = vrot.lane.b32.xlu0 %v979, 42
    %v2832 = vpop.permute.xlu0 %2831
    %2835 = vrot.lane.b32.xlu0 %v980, 44
    %v2836 = vpop.permute.xlu0 %2835
    %2839 = vrot.lane.b32.xlu0 %v981, 46
    %v2840 = vpop.permute.xlu0 %2839
    %2843 = vrot.lane.b32.xlu0 %v1110, 48
    %v2844 = vpop.permute.xlu0 %2843
    %2847 = vrot.lane.b32.xlu0 %v1111, 50
    %v2848 = vpop.permute.xlu0 %2847
    %2851 = vrot.lane.b32.xlu0 %v1112, 52
    %v2852 = vpop.permute.xlu0 %2851
    %2855 = vrot.lane.b32.xlu0 %v1113, 54
    %v2856 = vpop.permute.xlu0 %2855
    %2859 = vrot.lane.b32.xlu0 %v1114, 56
    %v2860 = vpop.permute.xlu0 %2859
    %2863 = vrot.lane.b32.xlu0 %v1115, 58
    %v2864 = vpop.permute.xlu0 %2863
    %2867 = vrot.lane.b32.xlu0 %v1116, 60
    %v2868 = vpop.permute.xlu0 %2867
    %2871 = vrot.lane.b32.xlu0 %v1117, 62
    %v2872 = vpop.permute.xlu0 %2871
    %2875 = vrot.lane.b32.xlu0 %v1246, 64
    %v2876 = vpop.permute.xlu0 %2875
    %2879 = vrot.lane.b32.xlu0 %v1247, 66
    %v2880 = vpop.permute.xlu0 %2879
    %2883 = vrot.lane.b32.xlu0 %v1248, 68
    %v2884 = vpop.permute.xlu0 %2883
    %2887 = vrot.lane.b32.xlu0 %v1249, 70
    %v2888 = vpop.permute.xlu0 %2887
    %2891 = vrot.lane.b32.xlu0 %v1250, 72
    %v2892 = vpop.permute.xlu0 %2891
    %2895 = vrot.lane.b32.xlu0 %v1251, 74
    %v2896 = vpop.permute.xlu0 %2895
    %2899 = vrot.lane.b32.xlu0 %v1252, 76
    %v2900 = vpop.permute.xlu0 %2899
    %2903 = vrot.lane.b32.xlu0 %v1253, 78
    %v2904 = vpop.permute.xlu0 %2903
    %2907 = vrot.lane.b32.xlu0 %v1382, 80
    %v2908 = vpop.permute.xlu0 %2907
    %2911 = vrot.lane.b32.xlu0 %v1383, 82
    %v2912 = vpop.permute.xlu0 %2911
    %2915 = vrot.lane.b32.xlu0 %v1384, 84
    %v2916 = vpop.permute.xlu0 %2915
    %2919 = vrot.lane.b32.xlu0 %v1385, 86
    %v2920 = vpop.permute.xlu0 %2919
    %2923 = vrot.lane.b32.xlu0 %v1386, 88
    %v2924 = vpop.permute.xlu0 %2923
    %2927 = vrot.lane.b32.xlu0 %v1387, 90
    %v2928 = vpop.permute.xlu0 %2927
    %2931 = vrot.lane.b32.xlu0 %v1388, 92
    %v2932 = vpop.permute.xlu0 %2931
    %2935 = vrot.lane.b32.xlu0 %v1389, 94
    %v2936 = vpop.permute.xlu0 %2935
    %2939 = vrot.lane.b32.xlu0 %v1518, 96
    %v2940 = vpop.permute.xlu0 %2939
    %2943 = vrot.lane.b32.xlu0 %v1519, 98
    %v2944 = vpop.permute.xlu0 %2943
    %2947 = vrot.lane.b32.xlu0 %v1520, 100
    %v2948 = vpop.permute.xlu0 %2947
    %2951 = vrot.lane.b32.xlu0 %v1521, 102
    %v2952 = vpop.permute.xlu0 %2951
    %2955 = vrot.lane.b32.xlu0 %v1522, 104
    %v2956 = vpop.permute.xlu0 %2955
    %2959 = vrot.lane.b32.xlu0 %v1523, 106
    %v2960 = vpop.permute.xlu0 %2959
    %2963 = vrot.lane.b32.xlu0 %v1524, 108
    %v2964 = vpop.permute.xlu0 %2963
    %2967 = vrot.lane.b32.xlu0 %v1525, 110
    %v2968 = vpop.permute.xlu0 %2967
    %2971 = vrot.lane.b32.xlu0 %v1654, 112
    %v2972 = vpop.permute.xlu0 %2971
    %2975 = vrot.lane.b32.xlu0 %v1655, 114
    %v2976 = vpop.permute.xlu0 %2975
    %2979 = vrot.lane.b32.xlu0 %v1656, 116
    %v2980 = vpop.permute.xlu0 %2979
    %2983 = vrot.lane.b32.xlu0 %v1657, 118
    %v2984 = vpop.permute.xlu0 %2983
    %2987 = vrot.lane.b32.xlu0 %v1658, 120
    %v2988 = vpop.permute.xlu0 %2987
    %2991 = vrot.lane.b32.xlu0 %v1659, 122
    %v2992 = vpop.permute.xlu0 %2991
    %2995 = vrot.lane.b32.xlu0 %v1660, 124
    %v2996 = vpop.permute.xlu0 %2995
    %2999 = vrot.lane.b32.xlu0 %v1661, 126
    %v3000 = vpop.permute.xlu0 %2999
    %3003 = vrot.lane.b32.xlu0 %v1791, 2
    %v3004 = vpop.permute.xlu0 %3003
    %3007 = vrot.lane.b32.xlu0 %v1792, 4
    %v3008 = vpop.permute.xlu0 %3007
    %3011 = vrot.lane.b32.xlu0 %v1793, 6
    %v3012 = vpop.permute.xlu0 %3011
    %3015 = vrot.lane.b32.xlu0 %v1794, 8
    %v3016 = vpop.permute.xlu0 %3015
    %3019 = vrot.lane.b32.xlu0 %v1795, 10
    %v3020 = vpop.permute.xlu0 %3019
    %3023 = vrot.lane.b32.xlu0 %v1796, 12
    %v3024 = vpop.permute.xlu0 %3023
    %3027 = vrot.lane.b32.xlu0 %v1797, 14
    %v3028 = vpop.permute.xlu0 %3027
    %3031 = vrot.lane.b32.xlu0 %v1926, 16
    %v3032 = vpop.permute.xlu0 %3031
    %3035 = vrot.lane.b32.xlu0 %v1927, 18
    %v3036 = vpop.permute.xlu0 %3035
    %3039 = vrot.lane.b32.xlu0 %v1928, 20
    %v3040 = vpop.permute.xlu0 %3039
    %3043 = vrot.lane.b32.xlu0 %v1929, 22
    %v3044 = vpop.permute.xlu0 %3043
    %3047 = vrot.lane.b32.xlu0 %v1930, 24
    %v3048 = vpop.permute.xlu0 %3047
    %3051 = vrot.lane.b32.xlu0 %v1931, 26
    %v3052 = vpop.permute.xlu0 %3051
    %3055 = vrot.lane.b32.xlu0 %v1932, 28
    %v3056 = vpop.permute.xlu0 %3055
    %3059 = vrot.lane.b32.xlu0 %v1933, 30
    %v3060 = vpop.permute.xlu0 %3059
    %3063 = vrot.lane.b32.xlu0 %v2062, 32
    %v3064 = vpop.permute.xlu0 %3063
    %3067 = vrot.lane.b32.xlu0 %v2063, 34
    %v3068 = vpop.permute.xlu0 %3067
    %3071 = vrot.lane.b32.xlu0 %v2064, 36
    %v3072 = vpop.permute.xlu0 %3071
    %3075 = vrot.lane.b32.xlu0 %v2065, 38
    %v3076 = vpop.permute.xlu0 %3075
    %3079 = vrot.lane.b32.xlu0 %v2066, 40
    %v3080 = vpop.permute.xlu0 %3079
    %3083 = vrot.lane.b32.xlu0 %v2067, 42
    %v3084 = vpop.permute.xlu0 %3083
    %3087 = vrot.lane.b32.xlu0 %v2068, 44
    %v3088 = vpop.permute.xlu0 %3087
    %3091 = vrot.lane.b32.xlu0 %v2069, 46
    %v3092 = vpop.permute.xlu0 %3091
    %3095 = vrot.lane.b32.xlu0 %v2198, 48
    %v3096 = vpop.permute.xlu0 %3095
    %3099 = vrot.lane.b32.xlu0 %v2199, 50
    %v3100 = vpop.permute.xlu0 %3099
    %3103 = vrot.lane.b32.xlu0 %v2200, 52
    %v3104 = vpop.permute.xlu0 %3103
    %3107 = vrot.lane.b32.xlu0 %v2201, 54
    %v3108 = vpop.permute.xlu0 %3107
    %3111 = vrot.lane.b32.xlu0 %v2202, 56
    %v3112 = vpop.permute.xlu0 %3111
    %3115 = vrot.lane.b32.xlu0 %v2203, 58
    %v3116 = vpop.permute.xlu0 %3115
    %3119 = vrot.lane.b32.xlu0 %v2204, 60
    %v3120 = vpop.permute.xlu0 %3119
    %3123 = vrot.lane.b32.xlu0 %v2205, 62
    %v3124 = vpop.permute.xlu0 %3123
    %3127 = vrot.lane.b32.xlu0 %v2334, 64
    %v3128 = vpop.permute.xlu0 %3127
    %3131 = vrot.lane.b32.xlu0 %v2335, 66
    %v3132 = vpop.permute.xlu0 %3131
    %3135 = vrot.lane.b32.xlu0 %v2336, 68
    %v3136 = vpop.permute.xlu0 %3135
    %3139 = vrot.lane.b32.xlu0 %v2337, 70
    %v3140 = vpop.permute.xlu0 %3139
    %3143 = vrot.lane.b32.xlu0 %v2338, 72
    %v3144 = vpop.permute.xlu0 %3143
    %3147 = vrot.lane.b32.xlu0 %v2339, 74
    %v3148 = vpop.permute.xlu0 %3147
    %3151 = vrot.lane.b32.xlu0 %v2340, 76
    %v3152 = vpop.permute.xlu0 %3151
    %3155 = vrot.lane.b32.xlu0 %v2341, 78
    %v3156 = vpop.permute.xlu0 %3155
    %3159 = vrot.lane.b32.xlu0 %v2470, 80
    %v3160 = vpop.permute.xlu0 %3159
    %3163 = vrot.lane.b32.xlu0 %v2471, 82
    %v3164 = vpop.permute.xlu0 %3163
    %3167 = vrot.lane.b32.xlu0 %v2472, 84
    %v3168 = vpop.permute.xlu0 %3167
    %3171 = vrot.lane.b32.xlu0 %v2473, 86
    %v3172 = vpop.permute.xlu0 %3171
    %3175 = vrot.lane.b32.xlu0 %v2474, 88
    %v3176 = vpop.permute.xlu0 %3175
    %3179 = vrot.lane.b32.xlu0 %v2475, 90
    %v3180 = vpop.permute.xlu0 %3179
    %3183 = vrot.lane.b32.xlu0 %v2476, 92
    %v3184 = vpop.permute.xlu0 %3183
    %3187 = vrot.lane.b32.xlu0 %v2477, 94
    %v3188 = vpop.permute.xlu0 %3187
    %3191 = vrot.lane.b32.xlu0 %v2606, 96
    %v3192 = vpop.permute.xlu0 %3191
    %3195 = vrot.lane.b32.xlu0 %v2607, 98
    %v3196 = vpop.permute.xlu0 %3195
    %3199 = vrot.lane.b32.xlu0 %v2608, 100
    %v3200 = vpop.permute.xlu0 %3199
    %3203 = vrot.lane.b32.xlu0 %v2609, 102
    %v3204 = vpop.permute.xlu0 %3203
    %3207 = vrot.lane.b32.xlu0 %v2610, 104
    %v3208 = vpop.permute.xlu0 %3207
    %3211 = vrot.lane.b32.xlu0 %v2611, 106
    %v3212 = vpop.permute.xlu0 %3211
    %3215 = vrot.lane.b32.xlu0 %v2612, 108
    %v3216 = vpop.permute.xlu0 %3215
    %3219 = vrot.lane.b32.xlu0 %v2613, 110
    %v3220 = vpop.permute.xlu0 %3219
    %3223 = vrot.lane.b32.xlu0 %v2742, 112
    %v3224 = vpop.permute.xlu0 %3223
    %3227 = vrot.lane.b32.xlu0 %v2743, 114
    %v3228 = vpop.permute.xlu0 %3227
    %3231 = vrot.lane.b32.xlu0 %v2744, 116
    %v3232 = vpop.permute.xlu0 %3231
    %3235 = vrot.lane.b32.xlu0 %v2745, 118
    %v3236 = vpop.permute.xlu0 %3235
    %3239 = vrot.lane.b32.xlu0 %v2746, 120
    %v3240 = vpop.permute.xlu0 %3239
    %3243 = vrot.lane.b32.xlu0 %v2747, 122
    %v3244 = vpop.permute.xlu0 %3243
    %3247 = vrot.lane.b32.xlu0 %v2748, 124
    %v3248 = vpop.permute.xlu0 %3247
    %3251 = vrot.lane.b32.xlu0 %v2749, 126
    %v3252 = vpop.permute.xlu0 %3251
    %vm3254 = vcmask 15360
    %v3255 = vsel %vm3254, %v702, %v2752
    %vm3256 = vcmask 31744
    %v3257 = vsel %vm3256, %v3255, %v2756
    %vm3258 = vcmask 48128
    %v3259 = vsel %vm3258, %v3257, %v2760
    %vm3260 = vcmask 64512
    %v3261 = vsel %vm3260, %v3259, %v2764
    %vm3262 = vcmask 80896
    %v3263 = vsel %vm3262, %v3261, %v2768
    %vm3264 = vcmask 97280
    %v3265 = vsel %vm3264, %v3263, %v2772
    %vm3266 = vcmask 113664
    %v3267 = vsel %vm3266, %v3265, %v2776
    %vm3268 = vcmask 130048
    %v3269 = vsel %vm3268, %v3267, %v2780
    %vm3270 = vcmask 146432
    %v3271 = vsel %vm3270, %v3269, %v2784
    %vm3272 = vcmask 162816
    %v3273 = vsel %vm3272, %v3271, %v2788
    %vm3274 = vcmask 179200
    %v3275 = vsel %vm3274, %v3273, %v2792
    %vm3276 = vcmask 195584
    %v3277 = vsel %vm3276, %v3275, %v2796
    %vm3278 = vcmask 211968
    %v3279 = vsel %vm3278, %v3277, %v2800
    %vm3280 = vcmask 228352
    %v3281 = vsel %vm3280, %v3279, %v2804
    %vm3282 = vcmask 244736
    %v3283 = vsel %vm3282, %v3281, %v2808
    %vm3284 = vcmask 261120
    %v3285 = vsel %vm3284, %v3283, %v2812
    %vm3286 = vcmask 277504
    %v3287 = vsel %vm3286, %v3285, %v2816
    %vm3288 = vcmask 293888
    %v3289 = vsel %vm3288, %v3287, %v2820
    %vm3290 = vcmask 310272
    %v3291 = vsel %vm3290, %v3289, %v2824
    %vm3292 = vcmask 326656
    %v3293 = vsel %vm3292, %v3291, %v2828
    %vm3294 = vcmask 343040
    %v3295 = vsel %vm3294, %v3293, %v2832
    %vm3296 = vcmask 359424
    %v3297 = vsel %vm3296, %v3295, %v2836
    %vm3298 = vcmask 375808
    %v3299 = vsel %vm3298, %v3297, %v2840
    %vm3300 = vcmask 392192
    %v3301 = vsel %vm3300, %v3299, %v2844
    %vm3302 = vcmask 408576
    %v3303 = vsel %vm3302, %v3301, %v2848
    %vm3304 = vcmask 424960
    %v3305 = vsel %vm3304, %v3303, %v2852
    %vm3306 = vcmask 441344
    %v3307 = vsel %vm3306, %v3305, %v2856
    %vm3308 = vcmask 457728
    %v3309 = vsel %vm3308, %v3307, %v2860
    %vm3310 = vcmask 474112
    %v3311 = vsel %vm3310, %v3309, %v2864
    %vm3312 = vcmask 490496
    %v3313 = vsel %vm3312, %v3311, %v2868
    %vm3314 = vcmask 506880
    %v3315 = vsel %vm3314, %v3313, %v2872
    %vm3316 = vcmask 523264
    %v3317 = vsel %vm3316, %v3315, %v2876
    %vm3318 = vcmask 539648
    %v3319 = vsel %vm3318, %v3317, %v2880
    %vm3320 = vcmask 556032
    %v3321 = vsel %vm3320, %v3319, %v2884
    %vm3322 = vcmask 572416
    %v3323 = vsel %vm3322, %v3321, %v2888
    %vm3324 = vcmask 588800
    %v3325 = vsel %vm3324, %v3323, %v2892
    %vm3326 = vcmask 605184
    %v3327 = vsel %vm3326, %v3325, %v2896
    %vm3328 = vcmask 621568
    %v3329 = vsel %vm3328, %v3327, %v2900
    %vm3330 = vcmask 637952
    %v3331 = vsel %vm3330, %v3329, %v2904
    %vm3332 = vcmask 654336
    %v3333 = vsel %vm3332, %v3331, %v2908
    %vm3334 = vcmask 670720
    %v3335 = vsel %vm3334, %v3333, %v2912
    %vm3336 = vcmask 687104
    %v3337 = vsel %vm3336, %v3335, %v2916
    %vm3338 = vcmask 703488
    %v3339 = vsel %vm3338, %v3337, %v2920
    %vm3340 = vcmask 719872
    %v3341 = vsel %vm3340, %v3339, %v2924
    %vm3342 = vcmask 736256
    %v3343 = vsel %vm3342, %v3341, %v2928
    %vm3344 = vcmask 752640
    %v3345 = vsel %vm3344, %v3343, %v2932
    %vm3346 = vcmask 769024
    %v3347 = vsel %vm3346, %v3345, %v2936
    %vm3348 = vcmask 785408
    %v3349 = vsel %vm3348, %v3347, %v2940
    %vm3350 = vcmask 801792
    %v3351 = vsel %vm3350, %v3349, %v2944
    %vm3352 = vcmask 818176
    %v3353 = vsel %vm3352, %v3351, %v2948
    %vm3354 = vcmask 834560
    %v3355 = vsel %vm3354, %v3353, %v2952
    %vm3356 = vcmask 850944
    %v3357 = vsel %vm3356, %v3355, %v2956
    %vm3358 = vcmask 867328
    %v3359 = vsel %vm3358, %v3357, %v2960
    %vm3360 = vcmask 883712
    %v3361 = vsel %vm3360, %v3359, %v2964
    %vm3362 = vcmask 900096
    %v3363 = vsel %vm3362, %v3361, %v2968
    %vm3364 = vcmask 916480
    %v3365 = vsel %vm3364, %v3363, %v2972
    %vm3366 = vcmask 932864
    %v3367 = vsel %vm3366, %v3365, %v2976
    %vm3368 = vcmask 949248
    %v3369 = vsel %vm3368, %v3367, %v2980
    %vm3370 = vcmask 965632
    %v3371 = vsel %vm3370, %v3369, %v2984
    %vm3372 = vcmask 982016
    %v3373 = vsel %vm3372, %v3371, %v2988
    %vm3374 = vcmask 998400
    %v3375 = vsel %vm3374, %v3373, %v2992
    %vm3376 = vcmask 1014784
    %v3377 = vsel %vm3376, %v3375, %v2996
    %vm3378 = vcmask 1031168
    %v3379 = vsel %vm3378, %v3377, %v3000
    %v3380 = vsel %vm3254, %v1790, %v3004
    %v3381 = vsel %vm3256, %v3380, %v3008
    %v3382 = vsel %vm3258, %v3381, %v3012
    %v3383 = vsel %vm3260, %v3382, %v3016
    %v3384 = vsel %vm3262, %v3383, %v3020
    %v3385 = vsel %vm3264, %v3384, %v3024
    %v3386 = vsel %vm3266, %v3385, %v3028
    %v3387 = vsel %vm3268, %v3386, %v3032
    %v3388 = vsel %vm3270, %v3387, %v3036
    %v3389 = vsel %vm3272, %v3388, %v3040
    %v3390 = vsel %vm3274, %v3389, %v3044
    %v3391 = vsel %vm3276, %v3390, %v3048
    %v3392 = vsel %vm3278, %v3391, %v3052
    %v3393 = vsel %vm3280, %v3392, %v3056
    %v3394 = vsel %vm3282, %v3393, %v3060
    %v3395 = vsel %vm3284, %v3394, %v3064
    %v3396 = vsel %vm3286, %v3395, %v3068
    %v3397 = vsel %vm3288, %v3396, %v3072
    %v3398 = vsel %vm3290, %v3397, %v3076
    %v3399 = vsel %vm3292, %v3398, %v3080
    %v3400 = vsel %vm3294, %v3399, %v3084
    %v3401 = vsel %vm3296, %v3400, %v3088
    %v3402 = vsel %vm3298, %v3401, %v3092
    %v3403 = vsel %vm3300, %v3402, %v3096
    %v3404 = vsel %vm3302, %v3403, %v3100
    %v3405 = vsel %vm3304, %v3404, %v3104
    %v3406 = vsel %vm3306, %v3405, %v3108
    %v3407 = vsel %vm3308, %v3406, %v3112
    %v3408 = vsel %vm3310, %v3407, %v3116
    %v3409 = vsel %vm3312, %v3408, %v3120
    %v3410 = vsel %vm3314, %v3409, %v3124
    %v3411 = vsel %vm3316, %v3410, %v3128
    %v3412 = vsel %vm3318, %v3411, %v3132
    %v3413 = vsel %vm3320, %v3412, %v3136
    %v3414 = vsel %vm3322, %v3413, %v3140
    %v3415 = vsel %vm3324, %v3414, %v3144
    %v3416 = vsel %vm3326, %v3415, %v3148
    %v3417 = vsel %vm3328, %v3416, %v3152
    %v3418 = vsel %vm3330, %v3417, %v3156
    %v3419 = vsel %vm3332, %v3418, %v3160
    %v3420 = vsel %vm3334, %v3419, %v3164
    %v3421 = vsel %vm3336, %v3420, %v3168
    %v3422 = vsel %vm3338, %v3421, %v3172
    %v3423 = vsel %vm3340, %v3422, %v3176
    %v3424 = vsel %vm3342, %v3423, %v3180
    %v3425 = vsel %vm3344, %v3424, %v3184
    %v3426 = vsel %vm3346, %v3425, %v3188
    %v3427 = vsel %vm3348, %v3426, %v3192
    %v3428 = vsel %vm3350, %v3427, %v3196
    %v3429 = vsel %vm3352, %v3428, %v3200
    %v3430 = vsel %vm3354, %v3429, %v3204
    %v3431 = vsel %vm3356, %v3430, %v3208
    %v3432 = vsel %vm3358, %v3431, %v3212
    %v3433 = vsel %vm3360, %v3432, %v3216
    %v3434 = vsel %vm3362, %v3433, %v3220
    %v3435 = vsel %vm3364, %v3434, %v3224
    %v3436 = vsel %vm3366, %v3435, %v3228
    %v3437 = vsel %vm3368, %v3436, %v3232
    %v3438 = vsel %vm3370, %v3437, %v3236
    %v3439 = vsel %vm3372, %v3438, %v3240
    %v3440 = vsel %vm3374, %v3439, %v3244
    %v3441 = vsel %vm3376, %v3440, %v3248
    %v3442 = vsel %vm3378, %v3441, %v3252
    %v3443 = vlaneseq
    %v3444 = vshrl.u32 %v3443, 7
    %v3445 = vsub.s32 0, %v3444
    %v3446 = vrot.slane %v37, %v3445
    %3448 = vbcast.lane.b32.xlu0 %v3446, 256
    %v3449 = vpop.permute.xlu0 %3448
    %s3451 = sor.u32 256, 8
    %3452 = vbcast.lane.b32.xlu0 %v3446, %s3451
    %v3453 = vpop.permute.xlu0 %3452
    %s3455 = sor.u32 256, 16
    %3456 = vbcast.lane.b32.xlu0 %v3446, %s3455
    %v3457 = vpop.permute.xlu0 %3456
    %s3459 = sor.u32 256, 24
    %3460 = vbcast.lane.b32.xlu0 %v3446, %s3459
    %v3461 = vpop.permute.xlu0 %3460
    %s3463 = sor.u32 256, 32
    %3464 = vbcast.lane.b32.xlu0 %v3446, %s3463
    %v3465 = vpop.permute.xlu0 %3464
    %s3467 = sor.u32 256, 40
    %3468 = vbcast.lane.b32.xlu0 %v3446, %s3467
    %v3469 = vpop.permute.xlu0 %3468
    %s3471 = sor.u32 256, 48
    %3472 = vbcast.lane.b32.xlu0 %v3446, %s3471
    %v3473 = vpop.permute.xlu0 %3472
    %s3475 = sor.u32 256, 56
    %3476 = vbcast.lane.b32.xlu0 %v3446, %s3475
    %v3477 = vpop.permute.xlu0 %3476
    %s3479 = sor.u32 256, 64
    %3480 = vbcast.lane.b32.xlu0 %v3446, %s3479
    %v3481 = vpop.permute.xlu0 %3480
    %s3483 = sor.u32 256, 72
    %3484 = vbcast.lane.b32.xlu0 %v3446, %s3483
    %v3485 = vpop.permute.xlu0 %3484
    %s3487 = sor.u32 256, 80
    %3488 = vbcast.lane.b32.xlu0 %v3446, %s3487
    %v3489 = vpop.permute.xlu0 %3488
    %s3491 = sor.u32 256, 88
    %3492 = vbcast.lane.b32.xlu0 %v3446, %s3491
    %v3493 = vpop.permute.xlu0 %3492
    %s3495 = sor.u32 256, 96
    %3496 = vbcast.lane.b32.xlu0 %v3446, %s3495
    %v3497 = vpop.permute.xlu0 %3496
    %s3499 = sor.u32 256, 104
    %3500 = vbcast.lane.b32.xlu0 %v3446, %s3499
    %v3501 = vpop.permute.xlu0 %3500
    %s3503 = sor.u32 256, 112
    %3504 = vbcast.lane.b32.xlu0 %v3446, %s3503
    %v3505 = vpop.permute.xlu0 %3504
    %s3507 = sor.u32 256, 120
    %3508 = vbcast.lane.b32.xlu0 %v3446, %s3507
    %v3509 = vpop.permute.xlu0 %3508
    %v3510 = vlaneseq
    %v3511 = vshrl.u32 %v3510, 7
    %v3512 = vsub.s32 1, %v3511
    %v3513 = vrot.slane %v37, %v3512
    %3515 = vbcast.lane.b32.xlu0 %v3513, 256
    %v3516 = vpop.permute.xlu0 %3515
    %s3518 = sor.u32 256, 8
    %3519 = vbcast.lane.b32.xlu0 %v3513, %s3518
    %v3520 = vpop.permute.xlu0 %3519
    %s3522 = sor.u32 256, 16
    %3523 = vbcast.lane.b32.xlu0 %v3513, %s3522
    %v3524 = vpop.permute.xlu0 %3523
    %s3526 = sor.u32 256, 24
    %3527 = vbcast.lane.b32.xlu0 %v3513, %s3526
    %v3528 = vpop.permute.xlu0 %3527
    %s3530 = sor.u32 256, 32
    %3531 = vbcast.lane.b32.xlu0 %v3513, %s3530
    %v3532 = vpop.permute.xlu0 %3531
    %s3534 = sor.u32 256, 40
    %3535 = vbcast.lane.b32.xlu0 %v3513, %s3534
    %v3536 = vpop.permute.xlu0 %3535
    %s3538 = sor.u32 256, 48
    %3539 = vbcast.lane.b32.xlu0 %v3513, %s3538
    %v3540 = vpop.permute.xlu0 %3539
    %s3542 = sor.u32 256, 56
    %3543 = vbcast.lane.b32.xlu0 %v3513, %s3542
    %v3544 = vpop.permute.xlu0 %3543
    %s3546 = sor.u32 256, 64
    %3547 = vbcast.lane.b32.xlu0 %v3513, %s3546
    %v3548 = vpop.permute.xlu0 %3547
    %s3550 = sor.u32 256, 72
    %3551 = vbcast.lane.b32.xlu0 %v3513, %s3550
    %v3552 = vpop.permute.xlu0 %3551
    %s3554 = sor.u32 256, 80
    %3555 = vbcast.lane.b32.xlu0 %v3513, %s3554
    %v3556 = vpop.permute.xlu0 %3555
    %s3558 = sor.u32 256, 88
    %3559 = vbcast.lane.b32.xlu0 %v3513, %s3558
    %v3560 = vpop.permute.xlu0 %3559
    %s3562 = sor.u32 256, 96
    %3563 = vbcast.lane.b32.xlu0 %v3513, %s3562
    %v3564 = vpop.permute.xlu0 %3563
    %s3566 = sor.u32 256, 104
    %3567 = vbcast.lane.b32.xlu0 %v3513, %s3566
    %v3568 = vpop.permute.xlu0 %3567
    %s3570 = sor.u32 256, 112
    %3571 = vbcast.lane.b32.xlu0 %v3513, %s3570
    %v3572 = vpop.permute.xlu0 %3571
    %s3574 = sor.u32 256, 120
    %3575 = vbcast.lane.b32.xlu0 %v3513, %s3574
    %v3576 = vpop.permute.xlu0 %3575
    %v3577 = vlaneseq
    %v3578 = vshrl.u32 %v3577, 7
    %v3579 = vsub.s32 2, %v3578
    %v3580 = vrot.slane %v37, %v3579
    %3582 = vbcast.lane.b32.xlu0 %v3580, 256
    %v3583 = vpop.permute.xlu0 %3582
    %s3585 = sor.u32 256, 8
    %3586 = vbcast.lane.b32.xlu0 %v3580, %s3585
    %v3587 = vpop.permute.xlu0 %3586
    %s3589 = sor.u32 256, 16
    %3590 = vbcast.lane.b32.xlu0 %v3580, %s3589
    %v3591 = vpop.permute.xlu0 %3590
    %s3593 = sor.u32 256, 24
    %3594 = vbcast.lane.b32.xlu0 %v3580, %s3593
    %v3595 = vpop.permute.xlu0 %3594
    %s3597 = sor.u32 256, 32
    %3598 = vbcast.lane.b32.xlu0 %v3580, %s3597
    %v3599 = vpop.permute.xlu0 %3598
    %s3601 = sor.u32 256, 40
    %3602 = vbcast.lane.b32.xlu0 %v3580, %s3601
    %v3603 = vpop.permute.xlu0 %3602
    %s3605 = sor.u32 256, 48
    %3606 = vbcast.lane.b32.xlu0 %v3580, %s3605
    %v3607 = vpop.permute.xlu0 %3606
    %s3609 = sor.u32 256, 56
    %3610 = vbcast.lane.b32.xlu0 %v3580, %s3609
    %v3611 = vpop.permute.xlu0 %3610
    %s3613 = sor.u32 256, 64
    %3614 = vbcast.lane.b32.xlu0 %v3580, %s3613
    %v3615 = vpop.permute.xlu0 %3614
    %s3617 = sor.u32 256, 72
    %3618 = vbcast.lane.b32.xlu0 %v3580, %s3617
    %v3619 = vpop.permute.xlu0 %3618
    %s3621 = sor.u32 256, 80
    %3622 = vbcast.lane.b32.xlu0 %v3580, %s3621
    %v3623 = vpop.permute.xlu0 %3622
    %s3625 = sor.u32 256, 88
    %3626 = vbcast.lane.b32.xlu0 %v3580, %s3625
    %v3627 = vpop.permute.xlu0 %3626
    %s3629 = sor.u32 256, 96
    %3630 = vbcast.lane.b32.xlu0 %v3580, %s3629
    %v3631 = vpop.permute.xlu0 %3630
    %s3633 = sor.u32 256, 104
    %3634 = vbcast.lane.b32.xlu0 %v3580, %s3633
    %v3635 = vpop.permute.xlu0 %3634
    %s3637 = sor.u32 256, 112
    %3638 = vbcast.lane.b32.xlu0 %v3580, %s3637
    %v3639 = vpop.permute.xlu0 %3638
    %s3641 = sor.u32 256, 120
    %3642 = vbcast.lane.b32.xlu0 %v3580, %s3641
    %v3643 = vpop.permute.xlu0 %3642
    %v3644 = vlaneseq
    %v3645 = vshrl.u32 %v3644, 7
    %v3646 = vsub.s32 3, %v3645
    %v3647 = vrot.slane %v37, %v3646
    %3649 = vbcast.lane.b32.xlu0 %v3647, 256
    %v3650 = vpop.permute.xlu0 %3649
    %s3652 = sor.u32 256, 8
    %3653 = vbcast.lane.b32.xlu0 %v3647, %s3652
    %v3654 = vpop.permute.xlu0 %3653
    %s3656 = sor.u32 256, 16
    %3657 = vbcast.lane.b32.xlu0 %v3647, %s3656
    %v3658 = vpop.permute.xlu0 %3657
    %s3660 = sor.u32 256, 24
    %3661 = vbcast.lane.b32.xlu0 %v3647, %s3660
    %v3662 = vpop.permute.xlu0 %3661
    %s3664 = sor.u32 256, 32
    %3665 = vbcast.lane.b32.xlu0 %v3647, %s3664
    %v3666 = vpop.permute.xlu0 %3665
    %s3668 = sor.u32 256, 40
    %3669 = vbcast.lane.b32.xlu0 %v3647, %s3668
    %v3670 = vpop.permute.xlu0 %3669
    %s3672 = sor.u32 256, 48
    %3673 = vbcast.lane.b32.xlu0 %v3647, %s3672
    %v3674 = vpop.permute.xlu0 %3673
    %s3676 = sor.u32 256, 56
    %3677 = vbcast.lane.b32.xlu0 %v3647, %s3676
    %v3678 = vpop.permute.xlu0 %3677
    %s3680 = sor.u32 256, 64
    %3681 = vbcast.lane.b32.xlu0 %v3647, %s3680
    %v3682 = vpop.permute.xlu0 %3681
    %s3684 = sor.u32 256, 72
    %3685 = vbcast.lane.b32.xlu0 %v3647, %s3684
    %v3686 = vpop.permute.xlu0 %3685
    %s3688 = sor.u32 256, 80
    %3689 = vbcast.lane.b32.xlu0 %v3647, %s3688
    %v3690 = vpop.permute.xlu0 %3689
    %s3692 = sor.u32 256, 88
    %3693 = vbcast.lane.b32.xlu0 %v3647, %s3692
    %v3694 = vpop.permute.xlu0 %3693
    %s3696 = sor.u32 256, 96
    %3697 = vbcast.lane.b32.xlu0 %v3647, %s3696
    %v3698 = vpop.permute.xlu0 %3697
    %s3700 = sor.u32 256, 104
    %3701 = vbcast.lane.b32.xlu0 %v3647, %s3700
    %v3702 = vpop.permute.xlu0 %3701
    %s3704 = sor.u32 256, 112
    %3705 = vbcast.lane.b32.xlu0 %v3647, %s3704
    %v3706 = vpop.permute.xlu0 %3705
    %s3708 = sor.u32 256, 120
    %3709 = vbcast.lane.b32.xlu0 %v3647, %s3708
    %v3710 = vpop.permute.xlu0 %3709
    %v3711 = vlaneseq
    %v3712 = vshrl.u32 %v3711, 7
    %v3713 = vsub.s32 4, %v3712
    %v3714 = vrot.slane %v37, %v3713
    %3716 = vbcast.lane.b32.xlu0 %v3714, 256
    %v3717 = vpop.permute.xlu0 %3716
    %s3719 = sor.u32 256, 8
    %3720 = vbcast.lane.b32.xlu0 %v3714, %s3719
    %v3721 = vpop.permute.xlu0 %3720
    %s3723 = sor.u32 256, 16
    %3724 = vbcast.lane.b32.xlu0 %v3714, %s3723
    %v3725 = vpop.permute.xlu0 %3724
    %s3727 = sor.u32 256, 24
    %3728 = vbcast.lane.b32.xlu0 %v3714, %s3727
    %v3729 = vpop.permute.xlu0 %3728
    %s3731 = sor.u32 256, 32
    %3732 = vbcast.lane.b32.xlu0 %v3714, %s3731
    %v3733 = vpop.permute.xlu0 %3732
    %s3735 = sor.u32 256, 40
    %3736 = vbcast.lane.b32.xlu0 %v3714, %s3735
    %v3737 = vpop.permute.xlu0 %3736
    %s3739 = sor.u32 256, 48
    %3740 = vbcast.lane.b32.xlu0 %v3714, %s3739
    %v3741 = vpop.permute.xlu0 %3740
    %s3743 = sor.u32 256, 56
    %3744 = vbcast.lane.b32.xlu0 %v3714, %s3743
    %v3745 = vpop.permute.xlu0 %3744
    %s3747 = sor.u32 256, 64
    %3748 = vbcast.lane.b32.xlu0 %v3714, %s3747
    %v3749 = vpop.permute.xlu0 %3748
    %s3751 = sor.u32 256, 72
    %3752 = vbcast.lane.b32.xlu0 %v3714, %s3751
    %v3753 = vpop.permute.xlu0 %3752
    %s3755 = sor.u32 256, 80
    %3756 = vbcast.lane.b32.xlu0 %v3714, %s3755
    %v3757 = vpop.permute.xlu0 %3756
    %s3759 = sor.u32 256, 88
    %3760 = vbcast.lane.b32.xlu0 %v3714, %s3759
    %v3761 = vpop.permute.xlu0 %3760
    %s3763 = sor.u32 256, 96
    %3764 = vbcast.lane.b32.xlu0 %v3714, %s3763
    %v3765 = vpop.permute.xlu0 %3764
    %s3767 = sor.u32 256, 104
    %3768 = vbcast.lane.b32.xlu0 %v3714, %s3767
    %v3769 = vpop.permute.xlu0 %3768
    %s3771 = sor.u32 256, 112
    %3772 = vbcast.lane.b32.xlu0 %v3714, %s3771
    %v3773 = vpop.permute.xlu0 %3772
    %s3775 = sor.u32 256, 120
    %3776 = vbcast.lane.b32.xlu0 %v3714, %s3775
    %v3777 = vpop.permute.xlu0 %3776
    %v3778 = vlaneseq
    %v3779 = vshrl.u32 %v3778, 7
    %v3780 = vsub.s32 5, %v3779
    %v3781 = vrot.slane %v37, %v3780
    %3783 = vbcast.lane.b32.xlu0 %v3781, 256
    %v3784 = vpop.permute.xlu0 %3783
    %s3786 = sor.u32 256, 8
    %3787 = vbcast.lane.b32.xlu0 %v3781, %s3786
    %v3788 = vpop.permute.xlu0 %3787
    %s3790 = sor.u32 256, 16
    %3791 = vbcast.lane.b32.xlu0 %v3781, %s3790
    %v3792 = vpop.permute.xlu0 %3791
    %s3794 = sor.u32 256, 24
    %3795 = vbcast.lane.b32.xlu0 %v3781, %s3794
    %v3796 = vpop.permute.xlu0 %3795
    %s3798 = sor.u32 256, 32
    %3799 = vbcast.lane.b32.xlu0 %v3781, %s3798
    %v3800 = vpop.permute.xlu0 %3799
    %s3802 = sor.u32 256, 40
    %3803 = vbcast.lane.b32.xlu0 %v3781, %s3802
    %v3804 = vpop.permute.xlu0 %3803
    %s3806 = sor.u32 256, 48
    %3807 = vbcast.lane.b32.xlu0 %v3781, %s3806
    %v3808 = vpop.permute.xlu0 %3807
    %s3810 = sor.u32 256, 56
    %3811 = vbcast.lane.b32.xlu0 %v3781, %s3810
    %v3812 = vpop.permute.xlu0 %3811
    %s3814 = sor.u32 256, 64
    %3815 = vbcast.lane.b32.xlu0 %v3781, %s3814
    %v3816 = vpop.permute.xlu0 %3815
    %s3818 = sor.u32 256, 72
    %3819 = vbcast.lane.b32.xlu0 %v3781, %s3818
    %v3820 = vpop.permute.xlu0 %3819
    %s3822 = sor.u32 256, 80
    %3823 = vbcast.lane.b32.xlu0 %v3781, %s3822
    %v3824 = vpop.permute.xlu0 %3823
    %s3826 = sor.u32 256, 88
    %3827 = vbcast.lane.b32.xlu0 %v3781, %s3826
    %v3828 = vpop.permute.xlu0 %3827
    %s3830 = sor.u32 256, 96
    %3831 = vbcast.lane.b32.xlu0 %v3781, %s3830
    %v3832 = vpop.permute.xlu0 %3831
    %s3834 = sor.u32 256, 104
    %3835 = vbcast.lane.b32.xlu0 %v3781, %s3834
    %v3836 = vpop.permute.xlu0 %3835
    %s3838 = sor.u32 256, 112
    %3839 = vbcast.lane.b32.xlu0 %v3781, %s3838
    %v3840 = vpop.permute.xlu0 %3839
    %s3842 = sor.u32 256, 120
    %3843 = vbcast.lane.b32.xlu0 %v3781, %s3842
    %v3844 = vpop.permute.xlu0 %3843
    %v3845 = vlaneseq
    %v3846 = vshrl.u32 %v3845, 7
    %v3847 = vsub.s32 6, %v3846
    %v3848 = vrot.slane %v37, %v3847
    %3850 = vbcast.lane.b32.xlu0 %v3848, 256
    %v3851 = vpop.permute.xlu0 %3850
    %s3853 = sor.u32 256, 8
    %3854 = vbcast.lane.b32.xlu0 %v3848, %s3853
    %v3855 = vpop.permute.xlu0 %3854
    %s3857 = sor.u32 256, 16
    %3858 = vbcast.lane.b32.xlu0 %v3848, %s3857
    %v3859 = vpop.permute.xlu0 %3858
    %s3861 = sor.u32 256, 24
    %3862 = vbcast.lane.b32.xlu0 %v3848, %s3861
    %v3863 = vpop.permute.xlu0 %3862
    %s3865 = sor.u32 256, 32
    %3866 = vbcast.lane.b32.xlu0 %v3848, %s3865
    %v3867 = vpop.permute.xlu0 %3866
    %s3869 = sor.u32 256, 40
    %3870 = vbcast.lane.b32.xlu0 %v3848, %s3869
    %v3871 = vpop.permute.xlu0 %3870
    %s3873 = sor.u32 256, 48
    %3874 = vbcast.lane.b32.xlu0 %v3848, %s3873
    %v3875 = vpop.permute.xlu0 %3874
    %s3877 = sor.u32 256, 56
    %3878 = vbcast.lane.b32.xlu0 %v3848, %s3877
    %v3879 = vpop.permute.xlu0 %3878
    %s3881 = sor.u32 256, 64
    %3882 = vbcast.lane.b32.xlu0 %v3848, %s3881
    %v3883 = vpop.permute.xlu0 %3882
    %s3885 = sor.u32 256, 72
    %3886 = vbcast.lane.b32.xlu0 %v3848, %s3885
    %v3887 = vpop.permute.xlu0 %3886
    %s3889 = sor.u32 256, 80
    %3890 = vbcast.lane.b32.xlu0 %v3848, %s3889
    %v3891 = vpop.permute.xlu0 %3890
    %s3893 = sor.u32 256, 88
    %3894 = vbcast.lane.b32.xlu0 %v3848, %s3893
    %v3895 = vpop.permute.xlu0 %3894
    %s3897 = sor.u32 256, 96
    %3898 = vbcast.lane.b32.xlu0 %v3848, %s3897
    %v3899 = vpop.permute.xlu0 %3898
    %s3901 = sor.u32 256, 104
    %3902 = vbcast.lane.b32.xlu0 %v3848, %s3901
    %v3903 = vpop.permute.xlu0 %3902
    %s3905 = sor.u32 256, 112
    %3906 = vbcast.lane.b32.xlu0 %v3848, %s3905
    %v3907 = vpop.permute.xlu0 %3906
    %s3909 = sor.u32 256, 120
    %3910 = vbcast.lane.b32.xlu0 %v3848, %s3909
    %v3911 = vpop.permute.xlu0 %3910
    %v3912 = vlaneseq
    %v3913 = vshrl.u32 %v3912, 7
    %v3914 = vsub.s32 7, %v3913
    %v3915 = vrot.slane %v37, %v3914
    %3917 = vbcast.lane.b32.xlu0 %v3915, 256
    %v3918 = vpop.permute.xlu0 %3917
    %s3920 = sor.u32 256, 8
    %3921 = vbcast.lane.b32.xlu0 %v3915, %s3920
    %v3922 = vpop.permute.xlu0 %3921
    %s3924 = sor.u32 256, 16
    %3925 = vbcast.lane.b32.xlu0 %v3915, %s3924
    %v3926 = vpop.permute.xlu0 %3925
    %s3928 = sor.u32 256, 24
    %3929 = vbcast.lane.b32.xlu0 %v3915, %s3928
    %v3930 = vpop.permute.xlu0 %3929
    %s3932 = sor.u32 256, 32
    %3933 = vbcast.lane.b32.xlu0 %v3915, %s3932
    %v3934 = vpop.permute.xlu0 %3933
    %s3936 = sor.u32 256, 40
    %3937 = vbcast.lane.b32.xlu0 %v3915, %s3936
    %v3938 = vpop.permute.xlu0 %3937
    %s3940 = sor.u32 256, 48
    %3941 = vbcast.lane.b32.xlu0 %v3915, %s3940
    %v3942 = vpop.permute.xlu0 %3941
    %s3944 = sor.u32 256, 56
    %3945 = vbcast.lane.b32.xlu0 %v3915, %s3944
    %v3946 = vpop.permute.xlu0 %3945
    %s3948 = sor.u32 256, 64
    %3949 = vbcast.lane.b32.xlu0 %v3915, %s3948
    %v3950 = vpop.permute.xlu0 %3949
    %s3952 = sor.u32 256, 72
    %3953 = vbcast.lane.b32.xlu0 %v3915, %s3952
    %v3954 = vpop.permute.xlu0 %3953
    %s3956 = sor.u32 256, 80
    %3957 = vbcast.lane.b32.xlu0 %v3915, %s3956
    %v3958 = vpop.permute.xlu0 %3957
    %s3960 = sor.u32 256, 88
    %3961 = vbcast.lane.b32.xlu0 %v3915, %s3960
    %v3962 = vpop.permute.xlu0 %3961
    %s3964 = sor.u32 256, 96
    %3965 = vbcast.lane.b32.xlu0 %v3915, %s3964
    %v3966 = vpop.permute.xlu0 %3965
    %s3968 = sor.u32 256, 104
    %3969 = vbcast.lane.b32.xlu0 %v3915, %s3968
    %v3970 = vpop.permute.xlu0 %3969
    %s3972 = sor.u32 256, 112
    %3973 = vbcast.lane.b32.xlu0 %v3915, %s3972
    %v3974 = vpop.permute.xlu0 %3973
    %s3976 = sor.u32 256, 120
    %3977 = vbcast.lane.b32.xlu0 %v3915, %s3976
    %v3978 = vpop.permute.xlu0 %3977
    %v3979 = vcombine.low %v3449, %v3583
    %v3980 = vcombine.high %v3449, %v3583
    %v3982 = vunpack.c.l.s4 1983009808
    %v3983 = vunpack.c.0.s8 %v3982
    %v3984 = vlaneseq
    %v3985 = vshrl.u32 %v3984, 7
    %v3986 = vsub.s32 %v3983, %v3985
    %v3987 = vrot.slane %v3979, %v3986
    %v3989 = vunpack.c.l.s4 1983009808
    %v3990 = vunpack.c.0.s8 %v3989
    %v3991 = vlaneseq
    %v3992 = vshrl.u32 %v3991, 7
    %v3993 = vsub.s32 %v3990, %v3992
    %v3994 = vrot.slane %v3980, %v3993
    %v3995 = vcombine.low %v3516, %v3650
    %v3996 = vcombine.high %v3516, %v3650
    %v3998 = vunpack.c.l.s4 1983009808
    %v3999 = vunpack.c.0.s8 %v3998
    %v4000 = vlaneseq
    %v4001 = vshrl.u32 %v4000, 7
    %v4002 = vsub.s32 %v3999, %v4001
    %v4003 = vrot.slane %v3995, %v4002
    %v4005 = vunpack.c.l.s4 1983009808
    %v4006 = vunpack.c.0.s8 %v4005
    %v4007 = vlaneseq
    %v4008 = vshrl.u32 %v4007, 7
    %v4009 = vsub.s32 %v4006, %v4008
    %v4010 = vrot.slane %v3996, %v4009
    %v4011 = vcombine.low %v3717, %v3851
    %v4012 = vcombine.high %v3717, %v3851
    %v4014 = vunpack.c.l.s4 1983009808
    %v4015 = vunpack.c.0.s8 %v4014
    %v4016 = vlaneseq
    %v4017 = vshrl.u32 %v4016, 7
    %v4018 = vsub.s32 %v4015, %v4017
    %v4019 = vrot.slane %v4011, %v4018
    %v4021 = vunpack.c.l.s4 1983009808
    %v4022 = vunpack.c.0.s8 %v4021
    %v4023 = vlaneseq
    %v4024 = vshrl.u32 %v4023, 7
    %v4025 = vsub.s32 %v4022, %v4024
    %v4026 = vrot.slane %v4012, %v4025
    %v4027 = vcombine.low %v3784, %v3918
    %v4028 = vcombine.high %v3784, %v3918
    %v4030 = vunpack.c.l.s4 1983009808
    %v4031 = vunpack.c.0.s8 %v4030
    %v4032 = vlaneseq
    %v4033 = vshrl.u32 %v4032, 7
    %v4034 = vsub.s32 %v4031, %v4033
    %v4035 = vrot.slane %v4027, %v4034
    %v4037 = vunpack.c.l.s4 1983009808
    %v4038 = vunpack.c.0.s8 %v4037
    %v4039 = vlaneseq
    %v4040 = vshrl.u32 %v4039, 7
    %v4041 = vsub.s32 %v4038, %v4040
    %v4042 = vrot.slane %v4028, %v4041
    %v4043 = vcombine.low %v3987, %v4003
    %v4044 = vcombine.high %v3987, %v4003
    %v4046 = vunpack.c.l.s4 1934713408
    %v4047 = vunpack.c.0.s8 %v4046
    %v4048 = vlaneseq
    %v4049 = vshrl.u32 %v4048, 7
    %v4050 = vsub.s32 %v4047, %v4049
    %v4051 = vrot.slane %v4043, %v4050
    %v4053 = vunpack.c.l.s4 1934713408
    %v4054 = vunpack.c.0.s8 %v4053
    %v4055 = vlaneseq
    %v4056 = vshrl.u32 %v4055, 7
    %v4057 = vsub.s32 %v4054, %v4056
    %v4058 = vrot.slane %v4044, %v4057
    %v4059 = vcombine.low %v3994, %v4010
    %v4060 = vcombine.high %v3994, %v4010
    %v4062 = vunpack.c.l.s4 1934713408
    %v4063 = vunpack.c.0.s8 %v4062
    %v4064 = vlaneseq
    %v4065 = vshrl.u32 %v4064, 7
    %v4066 = vsub.s32 %v4063, %v4065
    %v4067 = vrot.slane %v4059, %v4066
    %v4069 = vunpack.c.l.s4 1934713408
    %v4070 = vunpack.c.0.s8 %v4069
    %v4071 = vlaneseq
    %v4072 = vshrl.u32 %v4071, 7
    %v4073 = vsub.s32 %v4070, %v4072
    %v4074 = vrot.slane %v4060, %v4073
    %v4075 = vcombine.low %v4019, %v4035
    %v4076 = vcombine.high %v4019, %v4035
    %v4078 = vunpack.c.l.s4 1934713408
    %v4079 = vunpack.c.0.s8 %v4078
    %v4080 = vlaneseq
    %v4081 = vshrl.u32 %v4080, 7
    %v4082 = vsub.s32 %v4079, %v4081
    %v4083 = vrot.slane %v4075, %v4082
    %v4085 = vunpack.c.l.s4 1934713408
    %v4086 = vunpack.c.0.s8 %v4085
    %v4087 = vlaneseq
    %v4088 = vshrl.u32 %v4087, 7
    %v4089 = vsub.s32 %v4086, %v4088
    %v4090 = vrot.slane %v4076, %v4089
    %v4091 = vcombine.low %v4026, %v4042
    %v4092 = vcombine.high %v4026, %v4042
    %v4094 = vunpack.c.l.s4 1934713408
    %v4095 = vunpack.c.0.s8 %v4094
    %v4096 = vlaneseq
    %v4097 = vshrl.u32 %v4096, 7
    %v4098 = vsub.s32 %v4095, %v4097
    %v4099 = vrot.slane %v4091, %v4098
    %v4101 = vunpack.c.l.s4 1934713408
    %v4102 = vunpack.c.0.s8 %v4101
    %v4103 = vlaneseq
    %v4104 = vshrl.u32 %v4103, 7
    %v4105 = vsub.s32 %v4102, %v4104
    %v4106 = vrot.slane %v4092, %v4105
    %v4107 = vcombine.low %v4051, %v4083
    %v4108 = vcombine.high %v4051, %v4083
    %v4109 = vcombine.low %v4058, %v4090
    %v4110 = vcombine.high %v4058, %v4090
    %v4111 = vcombine.low %v4067, %v4099
    %v4112 = vcombine.high %v4067, %v4099
    %v4113 = vcombine.low %v4074, %v4106
    %v4114 = vcombine.high %v4074, %v4106
    %v4115 = vcombine.low %v3453, %v3587
    %v4116 = vcombine.high %v3453, %v3587
    %v4118 = vunpack.c.l.s4 1983009808
    %v4119 = vunpack.c.0.s8 %v4118
    %v4120 = vlaneseq
    %v4121 = vshrl.u32 %v4120, 7
    %v4122 = vsub.s32 %v4119, %v4121
    %v4123 = vrot.slane %v4115, %v4122
    %v4125 = vunpack.c.l.s4 1983009808
    %v4126 = vunpack.c.0.s8 %v4125
    %v4127 = vlaneseq
    %v4128 = vshrl.u32 %v4127, 7
    %v4129 = vsub.s32 %v4126, %v4128
    %v4130 = vrot.slane %v4116, %v4129
    %v4131 = vcombine.low %v3520, %v3654
    %v4132 = vcombine.high %v3520, %v3654
    %v4134 = vunpack.c.l.s4 1983009808
    %v4135 = vunpack.c.0.s8 %v4134
    %v4136 = vlaneseq
    %v4137 = vshrl.u32 %v4136, 7
    %v4138 = vsub.s32 %v4135, %v4137
    %v4139 = vrot.slane %v4131, %v4138
    %v4141 = vunpack.c.l.s4 1983009808
    %v4142 = vunpack.c.0.s8 %v4141
    %v4143 = vlaneseq
    %v4144 = vshrl.u32 %v4143, 7
    %v4145 = vsub.s32 %v4142, %v4144
    %v4146 = vrot.slane %v4132, %v4145
    %v4147 = vcombine.low %v3721, %v3855
    %v4148 = vcombine.high %v3721, %v3855
    %v4150 = vunpack.c.l.s4 1983009808
    %v4151 = vunpack.c.0.s8 %v4150
    %v4152 = vlaneseq
    %v4153 = vshrl.u32 %v4152, 7
    %v4154 = vsub.s32 %v4151, %v4153
    %v4155 = vrot.slane %v4147, %v4154
    %v4157 = vunpack.c.l.s4 1983009808
    %v4158 = vunpack.c.0.s8 %v4157
    %v4159 = vlaneseq
    %v4160 = vshrl.u32 %v4159, 7
    %v4161 = vsub.s32 %v4158, %v4160
    %v4162 = vrot.slane %v4148, %v4161
    %v4163 = vcombine.low %v3788, %v3922
    %v4164 = vcombine.high %v3788, %v3922
    %v4166 = vunpack.c.l.s4 1983009808
    %v4167 = vunpack.c.0.s8 %v4166
    %v4168 = vlaneseq
    %v4169 = vshrl.u32 %v4168, 7
    %v4170 = vsub.s32 %v4167, %v4169
    %v4171 = vrot.slane %v4163, %v4170
    %v4173 = vunpack.c.l.s4 1983009808
    %v4174 = vunpack.c.0.s8 %v4173
    %v4175 = vlaneseq
    %v4176 = vshrl.u32 %v4175, 7
    %v4177 = vsub.s32 %v4174, %v4176
    %v4178 = vrot.slane %v4164, %v4177
    %v4179 = vcombine.low %v4123, %v4139
    %v4180 = vcombine.high %v4123, %v4139
    %v4182 = vunpack.c.l.s4 1934713408
    %v4183 = vunpack.c.0.s8 %v4182
    %v4184 = vlaneseq
    %v4185 = vshrl.u32 %v4184, 7
    %v4186 = vsub.s32 %v4183, %v4185
    %v4187 = vrot.slane %v4179, %v4186
    %v4189 = vunpack.c.l.s4 1934713408
    %v4190 = vunpack.c.0.s8 %v4189
    %v4191 = vlaneseq
    %v4192 = vshrl.u32 %v4191, 7
    %v4193 = vsub.s32 %v4190, %v4192
    %v4194 = vrot.slane %v4180, %v4193
    %v4195 = vcombine.low %v4130, %v4146
    %v4196 = vcombine.high %v4130, %v4146
    %v4198 = vunpack.c.l.s4 1934713408
    %v4199 = vunpack.c.0.s8 %v4198
    %v4200 = vlaneseq
    %v4201 = vshrl.u32 %v4200, 7
    %v4202 = vsub.s32 %v4199, %v4201
    %v4203 = vrot.slane %v4195, %v4202
    %v4205 = vunpack.c.l.s4 1934713408
    %v4206 = vunpack.c.0.s8 %v4205
    %v4207 = vlaneseq
    %v4208 = vshrl.u32 %v4207, 7
    %v4209 = vsub.s32 %v4206, %v4208
    %v4210 = vrot.slane %v4196, %v4209
    %v4211 = vcombine.low %v4155, %v4171
    %v4212 = vcombine.high %v4155, %v4171
    %v4214 = vunpack.c.l.s4 1934713408
    %v4215 = vunpack.c.0.s8 %v4214
    %v4216 = vlaneseq
    %v4217 = vshrl.u32 %v4216, 7
    %v4218 = vsub.s32 %v4215, %v4217
    %v4219 = vrot.slane %v4211, %v4218
    %v4221 = vunpack.c.l.s4 1934713408
    %v4222 = vunpack.c.0.s8 %v4221
    %v4223 = vlaneseq
    %v4224 = vshrl.u32 %v4223, 7
    %v4225 = vsub.s32 %v4222, %v4224
    %v4226 = vrot.slane %v4212, %v4225
    %v4227 = vcombine.low %v4162, %v4178
    %v4228 = vcombine.high %v4162, %v4178
    %v4230 = vunpack.c.l.s4 1934713408
    %v4231 = vunpack.c.0.s8 %v4230
    %v4232 = vlaneseq
    %v4233 = vshrl.u32 %v4232, 7
    %v4234 = vsub.s32 %v4231, %v4233
    %v4235 = vrot.slane %v4227, %v4234
    %v4237 = vunpack.c.l.s4 1934713408
    %v4238 = vunpack.c.0.s8 %v4237
    %v4239 = vlaneseq
    %v4240 = vshrl.u32 %v4239, 7
    %v4241 = vsub.s32 %v4238, %v4240
    %v4242 = vrot.slane %v4228, %v4241
    %v4243 = vcombine.low %v4187, %v4219
    %v4244 = vcombine.high %v4187, %v4219
    %v4245 = vcombine.low %v4194, %v4226
    %v4246 = vcombine.high %v4194, %v4226
    %v4247 = vcombine.low %v4203, %v4235
    %v4248 = vcombine.high %v4203, %v4235
    %v4249 = vcombine.low %v4210, %v4242
    %v4250 = vcombine.high %v4210, %v4242
    %v4251 = vcombine.low %v3457, %v3591
    %v4252 = vcombine.high %v3457, %v3591
    %v4254 = vunpack.c.l.s4 1983009808
    %v4255 = vunpack.c.0.s8 %v4254
    %v4256 = vlaneseq
    %v4257 = vshrl.u32 %v4256, 7
    %v4258 = vsub.s32 %v4255, %v4257
    %v4259 = vrot.slane %v4251, %v4258
    %v4261 = vunpack.c.l.s4 1983009808
    %v4262 = vunpack.c.0.s8 %v4261
    %v4263 = vlaneseq
    %v4264 = vshrl.u32 %v4263, 7
    %v4265 = vsub.s32 %v4262, %v4264
    %v4266 = vrot.slane %v4252, %v4265
    %v4267 = vcombine.low %v3524, %v3658
    %v4268 = vcombine.high %v3524, %v3658
    %v4270 = vunpack.c.l.s4 1983009808
    %v4271 = vunpack.c.0.s8 %v4270
    %v4272 = vlaneseq
    %v4273 = vshrl.u32 %v4272, 7
    %v4274 = vsub.s32 %v4271, %v4273
    %v4275 = vrot.slane %v4267, %v4274
    %v4277 = vunpack.c.l.s4 1983009808
    %v4278 = vunpack.c.0.s8 %v4277
    %v4279 = vlaneseq
    %v4280 = vshrl.u32 %v4279, 7
    %v4281 = vsub.s32 %v4278, %v4280
    %v4282 = vrot.slane %v4268, %v4281
    %v4283 = vcombine.low %v3725, %v3859
    %v4284 = vcombine.high %v3725, %v3859
    %v4286 = vunpack.c.l.s4 1983009808
    %v4287 = vunpack.c.0.s8 %v4286
    %v4288 = vlaneseq
    %v4289 = vshrl.u32 %v4288, 7
    %v4290 = vsub.s32 %v4287, %v4289
    %v4291 = vrot.slane %v4283, %v4290
    %v4293 = vunpack.c.l.s4 1983009808
    %v4294 = vunpack.c.0.s8 %v4293
    %v4295 = vlaneseq
    %v4296 = vshrl.u32 %v4295, 7
    %v4297 = vsub.s32 %v4294, %v4296
    %v4298 = vrot.slane %v4284, %v4297
    %v4299 = vcombine.low %v3792, %v3926
    %v4300 = vcombine.high %v3792, %v3926
    %v4302 = vunpack.c.l.s4 1983009808
    %v4303 = vunpack.c.0.s8 %v4302
    %v4304 = vlaneseq
    %v4305 = vshrl.u32 %v4304, 7
    %v4306 = vsub.s32 %v4303, %v4305
    %v4307 = vrot.slane %v4299, %v4306
    %v4309 = vunpack.c.l.s4 1983009808
    %v4310 = vunpack.c.0.s8 %v4309
    %v4311 = vlaneseq
    %v4312 = vshrl.u32 %v4311, 7
    %v4313 = vsub.s32 %v4310, %v4312
    %v4314 = vrot.slane %v4300, %v4313
    %v4315 = vcombine.low %v4259, %v4275
    %v4316 = vcombine.high %v4259, %v4275
    %v4318 = vunpack.c.l.s4 1934713408
    %v4319 = vunpack.c.0.s8 %v4318
    %v4320 = vlaneseq
    %v4321 = vshrl.u32 %v4320, 7
    %v4322 = vsub.s32 %v4319, %v4321
    %v4323 = vrot.slane %v4315, %v4322
    %v4325 = vunpack.c.l.s4 1934713408
    %v4326 = vunpack.c.0.s8 %v4325
    %v4327 = vlaneseq
    %v4328 = vshrl.u32 %v4327, 7
    %v4329 = vsub.s32 %v4326, %v4328
    %v4330 = vrot.slane %v4316, %v4329
    %v4331 = vcombine.low %v4266, %v4282
    %v4332 = vcombine.high %v4266, %v4282
    %v4334 = vunpack.c.l.s4 1934713408
    %v4335 = vunpack.c.0.s8 %v4334
    %v4336 = vlaneseq
    %v4337 = vshrl.u32 %v4336, 7
    %v4338 = vsub.s32 %v4335, %v4337
    %v4339 = vrot.slane %v4331, %v4338
    %v4341 = vunpack.c.l.s4 1934713408
    %v4342 = vunpack.c.0.s8 %v4341
    %v4343 = vlaneseq
    %v4344 = vshrl.u32 %v4343, 7
    %v4345 = vsub.s32 %v4342, %v4344
    %v4346 = vrot.slane %v4332, %v4345
    %v4347 = vcombine.low %v4291, %v4307
    %v4348 = vcombine.high %v4291, %v4307
    %v4350 = vunpack.c.l.s4 1934713408
    %v4351 = vunpack.c.0.s8 %v4350
    %v4352 = vlaneseq
    %v4353 = vshrl.u32 %v4352, 7
    %v4354 = vsub.s32 %v4351, %v4353
    %v4355 = vrot.slane %v4347, %v4354
    %v4357 = vunpack.c.l.s4 1934713408
    %v4358 = vunpack.c.0.s8 %v4357
    %v4359 = vlaneseq
    %v4360 = vshrl.u32 %v4359, 7
    %v4361 = vsub.s32 %v4358, %v4360
    %v4362 = vrot.slane %v4348, %v4361
    %v4363 = vcombine.low %v4298, %v4314
    %v4364 = vcombine.high %v4298, %v4314
    %v4366 = vunpack.c.l.s4 1934713408
    %v4367 = vunpack.c.0.s8 %v4366
    %v4368 = vlaneseq
    %v4369 = vshrl.u32 %v4368, 7
    %v4370 = vsub.s32 %v4367, %v4369
    %v4371 = vrot.slane %v4363, %v4370
    %v4373 = vunpack.c.l.s4 1934713408
    %v4374 = vunpack.c.0.s8 %v4373
    %v4375 = vlaneseq
    %v4376 = vshrl.u32 %v4375, 7
    %v4377 = vsub.s32 %v4374, %v4376
    %v4378 = vrot.slane %v4364, %v4377
    %v4379 = vcombine.low %v4323, %v4355
    %v4380 = vcombine.high %v4323, %v4355
    %v4381 = vcombine.low %v4330, %v4362
    %v4382 = vcombine.high %v4330, %v4362
    %v4383 = vcombine.low %v4339, %v4371
    %v4384 = vcombine.high %v4339, %v4371
    %v4385 = vcombine.low %v4346, %v4378
    %v4386 = vcombine.high %v4346, %v4378
    %v4387 = vcombine.low %v3461, %v3595
    %v4388 = vcombine.high %v3461, %v3595
    %v4390 = vunpack.c.l.s4 1983009808
    %v4391 = vunpack.c.0.s8 %v4390
    %v4392 = vlaneseq
    %v4393 = vshrl.u32 %v4392, 7
    %v4394 = vsub.s32 %v4391, %v4393
    %v4395 = vrot.slane %v4387, %v4394
    %v4397 = vunpack.c.l.s4 1983009808
    %v4398 = vunpack.c.0.s8 %v4397
    %v4399 = vlaneseq
    %v4400 = vshrl.u32 %v4399, 7
    %v4401 = vsub.s32 %v4398, %v4400
    %v4402 = vrot.slane %v4388, %v4401
    %v4403 = vcombine.low %v3528, %v3662
    %v4404 = vcombine.high %v3528, %v3662
    %v4406 = vunpack.c.l.s4 1983009808
    %v4407 = vunpack.c.0.s8 %v4406
    %v4408 = vlaneseq
    %v4409 = vshrl.u32 %v4408, 7
    %v4410 = vsub.s32 %v4407, %v4409
    %v4411 = vrot.slane %v4403, %v4410
    %v4413 = vunpack.c.l.s4 1983009808
    %v4414 = vunpack.c.0.s8 %v4413
    %v4415 = vlaneseq
    %v4416 = vshrl.u32 %v4415, 7
    %v4417 = vsub.s32 %v4414, %v4416
    %v4418 = vrot.slane %v4404, %v4417
    %v4419 = vcombine.low %v3729, %v3863
    %v4420 = vcombine.high %v3729, %v3863
    %v4422 = vunpack.c.l.s4 1983009808
    %v4423 = vunpack.c.0.s8 %v4422
    %v4424 = vlaneseq
    %v4425 = vshrl.u32 %v4424, 7
    %v4426 = vsub.s32 %v4423, %v4425
    %v4427 = vrot.slane %v4419, %v4426
    %v4429 = vunpack.c.l.s4 1983009808
    %v4430 = vunpack.c.0.s8 %v4429
    %v4431 = vlaneseq
    %v4432 = vshrl.u32 %v4431, 7
    %v4433 = vsub.s32 %v4430, %v4432
    %v4434 = vrot.slane %v4420, %v4433
    %v4435 = vcombine.low %v3796, %v3930
    %v4436 = vcombine.high %v3796, %v3930
    %v4438 = vunpack.c.l.s4 1983009808
    %v4439 = vunpack.c.0.s8 %v4438
    %v4440 = vlaneseq
    %v4441 = vshrl.u32 %v4440, 7
    %v4442 = vsub.s32 %v4439, %v4441
    %v4443 = vrot.slane %v4435, %v4442
    %v4445 = vunpack.c.l.s4 1983009808
    %v4446 = vunpack.c.0.s8 %v4445
    %v4447 = vlaneseq
    %v4448 = vshrl.u32 %v4447, 7
    %v4449 = vsub.s32 %v4446, %v4448
    %v4450 = vrot.slane %v4436, %v4449
    %v4451 = vcombine.low %v4395, %v4411
    %v4452 = vcombine.high %v4395, %v4411
    %v4454 = vunpack.c.l.s4 1934713408
    %v4455 = vunpack.c.0.s8 %v4454
    %v4456 = vlaneseq
    %v4457 = vshrl.u32 %v4456, 7
    %v4458 = vsub.s32 %v4455, %v4457
    %v4459 = vrot.slane %v4451, %v4458
    %v4461 = vunpack.c.l.s4 1934713408
    %v4462 = vunpack.c.0.s8 %v4461
    %v4463 = vlaneseq
    %v4464 = vshrl.u32 %v4463, 7
    %v4465 = vsub.s32 %v4462, %v4464
    %v4466 = vrot.slane %v4452, %v4465
    %v4467 = vcombine.low %v4402, %v4418
    %v4468 = vcombine.high %v4402, %v4418
    %v4470 = vunpack.c.l.s4 1934713408
    %v4471 = vunpack.c.0.s8 %v4470
    %v4472 = vlaneseq
    %v4473 = vshrl.u32 %v4472, 7
    %v4474 = vsub.s32 %v4471, %v4473
    %v4475 = vrot.slane %v4467, %v4474
    %v4477 = vunpack.c.l.s4 1934713408
    %v4478 = vunpack.c.0.s8 %v4477
    %v4479 = vlaneseq
    %v4480 = vshrl.u32 %v4479, 7
    %v4481 = vsub.s32 %v4478, %v4480
    %v4482 = vrot.slane %v4468, %v4481
    %v4483 = vcombine.low %v4427, %v4443
    %v4484 = vcombine.high %v4427, %v4443
    %v4486 = vunpack.c.l.s4 1934713408
    %v4487 = vunpack.c.0.s8 %v4486
    %v4488 = vlaneseq
    %v4489 = vshrl.u32 %v4488, 7
    %v4490 = vsub.s32 %v4487, %v4489
    %v4491 = vrot.slane %v4483, %v4490
    %v4493 = vunpack.c.l.s4 1934713408
    %v4494 = vunpack.c.0.s8 %v4493
    %v4495 = vlaneseq
    %v4496 = vshrl.u32 %v4495, 7
    %v4497 = vsub.s32 %v4494, %v4496
    %v4498 = vrot.slane %v4484, %v4497
    %v4499 = vcombine.low %v4434, %v4450
    %v4500 = vcombine.high %v4434, %v4450
    %v4502 = vunpack.c.l.s4 1934713408
    %v4503 = vunpack.c.0.s8 %v4502
    %v4504 = vlaneseq
    %v4505 = vshrl.u32 %v4504, 7
    %v4506 = vsub.s32 %v4503, %v4505
    %v4507 = vrot.slane %v4499, %v4506
    %v4509 = vunpack.c.l.s4 1934713408
    %v4510 = vunpack.c.0.s8 %v4509
    %v4511 = vlaneseq
    %v4512 = vshrl.u32 %v4511, 7
    %v4513 = vsub.s32 %v4510, %v4512
    %v4514 = vrot.slane %v4500, %v4513
    %v4515 = vcombine.low %v4459, %v4491
    %v4516 = vcombine.high %v4459, %v4491
    %v4517 = vcombine.low %v4466, %v4498
    %v4518 = vcombine.high %v4466, %v4498
    %v4519 = vcombine.low %v4475, %v4507
    %v4520 = vcombine.high %v4475, %v4507
    %v4521 = vcombine.low %v4482, %v4514
    %v4522 = vcombine.high %v4482, %v4514
    %v4523 = vcombine.low %v3465, %v3599
    %v4524 = vcombine.high %v3465, %v3599
    %v4526 = vunpack.c.l.s4 1983009808
    %v4527 = vunpack.c.0.s8 %v4526
    %v4528 = vlaneseq
    %v4529 = vshrl.u32 %v4528, 7
    %v4530 = vsub.s32 %v4527, %v4529
    %v4531 = vrot.slane %v4523, %v4530
    %v4533 = vunpack.c.l.s4 1983009808
    %v4534 = vunpack.c.0.s8 %v4533
    %v4535 = vlaneseq
    %v4536 = vshrl.u32 %v4535, 7
    %v4537 = vsub.s32 %v4534, %v4536
    %v4538 = vrot.slane %v4524, %v4537
    %v4539 = vcombine.low %v3532, %v3666
    %v4540 = vcombine.high %v3532, %v3666
    %v4542 = vunpack.c.l.s4 1983009808
    %v4543 = vunpack.c.0.s8 %v4542
    %v4544 = vlaneseq
    %v4545 = vshrl.u32 %v4544, 7
    %v4546 = vsub.s32 %v4543, %v4545
    %v4547 = vrot.slane %v4539, %v4546
    %v4549 = vunpack.c.l.s4 1983009808
    %v4550 = vunpack.c.0.s8 %v4549
    %v4551 = vlaneseq
    %v4552 = vshrl.u32 %v4551, 7
    %v4553 = vsub.s32 %v4550, %v4552
    %v4554 = vrot.slane %v4540, %v4553
    %v4555 = vcombine.low %v3733, %v3867
    %v4556 = vcombine.high %v3733, %v3867
    %v4558 = vunpack.c.l.s4 1983009808
    %v4559 = vunpack.c.0.s8 %v4558
    %v4560 = vlaneseq
    %v4561 = vshrl.u32 %v4560, 7
    %v4562 = vsub.s32 %v4559, %v4561
    %v4563 = vrot.slane %v4555, %v4562
    %v4565 = vunpack.c.l.s4 1983009808
    %v4566 = vunpack.c.0.s8 %v4565
    %v4567 = vlaneseq
    %v4568 = vshrl.u32 %v4567, 7
    %v4569 = vsub.s32 %v4566, %v4568
    %v4570 = vrot.slane %v4556, %v4569
    %v4571 = vcombine.low %v3800, %v3934
    %v4572 = vcombine.high %v3800, %v3934
    %v4574 = vunpack.c.l.s4 1983009808
    %v4575 = vunpack.c.0.s8 %v4574
    %v4576 = vlaneseq
    %v4577 = vshrl.u32 %v4576, 7
    %v4578 = vsub.s32 %v4575, %v4577
    %v4579 = vrot.slane %v4571, %v4578
    %v4581 = vunpack.c.l.s4 1983009808
    %v4582 = vunpack.c.0.s8 %v4581
    %v4583 = vlaneseq
    %v4584 = vshrl.u32 %v4583, 7
    %v4585 = vsub.s32 %v4582, %v4584
    %v4586 = vrot.slane %v4572, %v4585
    %v4587 = vcombine.low %v4531, %v4547
    %v4588 = vcombine.high %v4531, %v4547
    %v4590 = vunpack.c.l.s4 1934713408
    %v4591 = vunpack.c.0.s8 %v4590
    %v4592 = vlaneseq
    %v4593 = vshrl.u32 %v4592, 7
    %v4594 = vsub.s32 %v4591, %v4593
    %v4595 = vrot.slane %v4587, %v4594
    %v4597 = vunpack.c.l.s4 1934713408
    %v4598 = vunpack.c.0.s8 %v4597
    %v4599 = vlaneseq
    %v4600 = vshrl.u32 %v4599, 7
    %v4601 = vsub.s32 %v4598, %v4600
    %v4602 = vrot.slane %v4588, %v4601
    %v4603 = vcombine.low %v4538, %v4554
    %v4604 = vcombine.high %v4538, %v4554
    %v4606 = vunpack.c.l.s4 1934713408
    %v4607 = vunpack.c.0.s8 %v4606
    %v4608 = vlaneseq
    %v4609 = vshrl.u32 %v4608, 7
    %v4610 = vsub.s32 %v4607, %v4609
    %v4611 = vrot.slane %v4603, %v4610
    %v4613 = vunpack.c.l.s4 1934713408
    %v4614 = vunpack.c.0.s8 %v4613
    %v4615 = vlaneseq
    %v4616 = vshrl.u32 %v4615, 7
    %v4617 = vsub.s32 %v4614, %v4616
    %v4618 = vrot.slane %v4604, %v4617
    %v4619 = vcombine.low %v4563, %v4579
    %v4620 = vcombine.high %v4563, %v4579
    %v4622 = vunpack.c.l.s4 1934713408
    %v4623 = vunpack.c.0.s8 %v4622
    %v4624 = vlaneseq
    %v4625 = vshrl.u32 %v4624, 7
    %v4626 = vsub.s32 %v4623, %v4625
    %v4627 = vrot.slane %v4619, %v4626
    %v4629 = vunpack.c.l.s4 1934713408
    %v4630 = vunpack.c.0.s8 %v4629
    %v4631 = vlaneseq
    %v4632 = vshrl.u32 %v4631, 7
    %v4633 = vsub.s32 %v4630, %v4632
    %v4634 = vrot.slane %v4620, %v4633
    %v4635 = vcombine.low %v4570, %v4586
    %v4636 = vcombine.high %v4570, %v4586
    %v4638 = vunpack.c.l.s4 1934713408
    %v4639 = vunpack.c.0.s8 %v4638
    %v4640 = vlaneseq
    %v4641 = vshrl.u32 %v4640, 7
    %v4642 = vsub.s32 %v4639, %v4641
    %v4643 = vrot.slane %v4635, %v4642
    %v4645 = vunpack.c.l.s4 1934713408
    %v4646 = vunpack.c.0.s8 %v4645
    %v4647 = vlaneseq
    %v4648 = vshrl.u32 %v4647, 7
    %v4649 = vsub.s32 %v4646, %v4648
    %v4650 = vrot.slane %v4636, %v4649
    %v4651 = vcombine.low %v4595, %v4627
    %v4652 = vcombine.high %v4595, %v4627
    %v4653 = vcombine.low %v4602, %v4634
    %v4654 = vcombine.high %v4602, %v4634
    %v4655 = vcombine.low %v4611, %v4643
    %v4656 = vcombine.high %v4611, %v4643
    %v4657 = vcombine.low %v4618, %v4650
    %v4658 = vcombine.high %v4618, %v4650
    %v4659 = vcombine.low %v3469, %v3603
    %v4660 = vcombine.high %v3469, %v3603
    %v4662 = vunpack.c.l.s4 1983009808
    %v4663 = vunpack.c.0.s8 %v4662
    %v4664 = vlaneseq
    %v4665 = vshrl.u32 %v4664, 7
    %v4666 = vsub.s32 %v4663, %v4665
    %v4667 = vrot.slane %v4659, %v4666
    %v4669 = vunpack.c.l.s4 1983009808
    %v4670 = vunpack.c.0.s8 %v4669
    %v4671 = vlaneseq
    %v4672 = vshrl.u32 %v4671, 7
    %v4673 = vsub.s32 %v4670, %v4672
    %v4674 = vrot.slane %v4660, %v4673
    %v4675 = vcombine.low %v3536, %v3670
    %v4676 = vcombine.high %v3536, %v3670
    %v4678 = vunpack.c.l.s4 1983009808
    %v4679 = vunpack.c.0.s8 %v4678
    %v4680 = vlaneseq
    %v4681 = vshrl.u32 %v4680, 7
    %v4682 = vsub.s32 %v4679, %v4681
    %v4683 = vrot.slane %v4675, %v4682
    %v4685 = vunpack.c.l.s4 1983009808
    %v4686 = vunpack.c.0.s8 %v4685
    %v4687 = vlaneseq
    %v4688 = vshrl.u32 %v4687, 7
    %v4689 = vsub.s32 %v4686, %v4688
    %v4690 = vrot.slane %v4676, %v4689
    %v4691 = vcombine.low %v3737, %v3871
    %v4692 = vcombine.high %v3737, %v3871
    %v4694 = vunpack.c.l.s4 1983009808
    %v4695 = vunpack.c.0.s8 %v4694
    %v4696 = vlaneseq
    %v4697 = vshrl.u32 %v4696, 7
    %v4698 = vsub.s32 %v4695, %v4697
    %v4699 = vrot.slane %v4691, %v4698
    %v4701 = vunpack.c.l.s4 1983009808
    %v4702 = vunpack.c.0.s8 %v4701
    %v4703 = vlaneseq
    %v4704 = vshrl.u32 %v4703, 7
    %v4705 = vsub.s32 %v4702, %v4704
    %v4706 = vrot.slane %v4692, %v4705
    %v4707 = vcombine.low %v3804, %v3938
    %v4708 = vcombine.high %v3804, %v3938
    %v4710 = vunpack.c.l.s4 1983009808
    %v4711 = vunpack.c.0.s8 %v4710
    %v4712 = vlaneseq
    %v4713 = vshrl.u32 %v4712, 7
    %v4714 = vsub.s32 %v4711, %v4713
    %v4715 = vrot.slane %v4707, %v4714
    %v4717 = vunpack.c.l.s4 1983009808
    %v4718 = vunpack.c.0.s8 %v4717
    %v4719 = vlaneseq
    %v4720 = vshrl.u32 %v4719, 7
    %v4721 = vsub.s32 %v4718, %v4720
    %v4722 = vrot.slane %v4708, %v4721
    %v4723 = vcombine.low %v4667, %v4683
    %v4724 = vcombine.high %v4667, %v4683
    %v4726 = vunpack.c.l.s4 1934713408
    %v4727 = vunpack.c.0.s8 %v4726
    %v4728 = vlaneseq
    %v4729 = vshrl.u32 %v4728, 7
    %v4730 = vsub.s32 %v4727, %v4729
    %v4731 = vrot.slane %v4723, %v4730
    %v4733 = vunpack.c.l.s4 1934713408
    %v4734 = vunpack.c.0.s8 %v4733
    %v4735 = vlaneseq
    %v4736 = vshrl.u32 %v4735, 7
    %v4737 = vsub.s32 %v4734, %v4736
    %v4738 = vrot.slane %v4724, %v4737
    %v4739 = vcombine.low %v4674, %v4690
    %v4740 = vcombine.high %v4674, %v4690
    %v4742 = vunpack.c.l.s4 1934713408
    %v4743 = vunpack.c.0.s8 %v4742
    %v4744 = vlaneseq
    %v4745 = vshrl.u32 %v4744, 7
    %v4746 = vsub.s32 %v4743, %v4745
    %v4747 = vrot.slane %v4739, %v4746
    %v4749 = vunpack.c.l.s4 1934713408
    %v4750 = vunpack.c.0.s8 %v4749
    %v4751 = vlaneseq
    %v4752 = vshrl.u32 %v4751, 7
    %v4753 = vsub.s32 %v4750, %v4752
    %v4754 = vrot.slane %v4740, %v4753
    %v4755 = vcombine.low %v4699, %v4715
    %v4756 = vcombine.high %v4699, %v4715
    %v4758 = vunpack.c.l.s4 1934713408
    %v4759 = vunpack.c.0.s8 %v4758
    %v4760 = vlaneseq
    %v4761 = vshrl.u32 %v4760, 7
    %v4762 = vsub.s32 %v4759, %v4761
    %v4763 = vrot.slane %v4755, %v4762
    %v4765 = vunpack.c.l.s4 1934713408
    %v4766 = vunpack.c.0.s8 %v4765
    %v4767 = vlaneseq
    %v4768 = vshrl.u32 %v4767, 7
    %v4769 = vsub.s32 %v4766, %v4768
    %v4770 = vrot.slane %v4756, %v4769
    %v4771 = vcombine.low %v4706, %v4722
    %v4772 = vcombine.high %v4706, %v4722
    %v4774 = vunpack.c.l.s4 1934713408
    %v4775 = vunpack.c.0.s8 %v4774
    %v4776 = vlaneseq
    %v4777 = vshrl.u32 %v4776, 7
    %v4778 = vsub.s32 %v4775, %v4777
    %v4779 = vrot.slane %v4771, %v4778
    %v4781 = vunpack.c.l.s4 1934713408
    %v4782 = vunpack.c.0.s8 %v4781
    %v4783 = vlaneseq
    %v4784 = vshrl.u32 %v4783, 7
    %v4785 = vsub.s32 %v4782, %v4784
    %v4786 = vrot.slane %v4772, %v4785
    %v4787 = vcombine.low %v4731, %v4763
    %v4788 = vcombine.high %v4731, %v4763
    %v4789 = vcombine.low %v4738, %v4770
    %v4790 = vcombine.high %v4738, %v4770
    %v4791 = vcombine.low %v4747, %v4779
    %v4792 = vcombine.high %v4747, %v4779
    %v4793 = vcombine.low %v4754, %v4786
    %v4794 = vcombine.high %v4754, %v4786
    %v4795 = vcombine.low %v3473, %v3607
    %v4796 = vcombine.high %v3473, %v3607
    %v4798 = vunpack.c.l.s4 1983009808
    %v4799 = vunpack.c.0.s8 %v4798
    %v4800 = vlaneseq
    %v4801 = vshrl.u32 %v4800, 7
    %v4802 = vsub.s32 %v4799, %v4801
    %v4803 = vrot.slane %v4795, %v4802
    %v4805 = vunpack.c.l.s4 1983009808
    %v4806 = vunpack.c.0.s8 %v4805
    %v4807 = vlaneseq
    %v4808 = vshrl.u32 %v4807, 7
    %v4809 = vsub.s32 %v4806, %v4808
    %v4810 = vrot.slane %v4796, %v4809
    %v4811 = vcombine.low %v3540, %v3674
    %v4812 = vcombine.high %v3540, %v3674
    %v4814 = vunpack.c.l.s4 1983009808
    %v4815 = vunpack.c.0.s8 %v4814
    %v4816 = vlaneseq
    %v4817 = vshrl.u32 %v4816, 7
    %v4818 = vsub.s32 %v4815, %v4817
    %v4819 = vrot.slane %v4811, %v4818
    %v4821 = vunpack.c.l.s4 1983009808
    %v4822 = vunpack.c.0.s8 %v4821
    %v4823 = vlaneseq
    %v4824 = vshrl.u32 %v4823, 7
    %v4825 = vsub.s32 %v4822, %v4824
    %v4826 = vrot.slane %v4812, %v4825
    %v4827 = vcombine.low %v3741, %v3875
    %v4828 = vcombine.high %v3741, %v3875
    %v4830 = vunpack.c.l.s4 1983009808
    %v4831 = vunpack.c.0.s8 %v4830
    %v4832 = vlaneseq
    %v4833 = vshrl.u32 %v4832, 7
    %v4834 = vsub.s32 %v4831, %v4833
    %v4835 = vrot.slane %v4827, %v4834
    %v4837 = vunpack.c.l.s4 1983009808
    %v4838 = vunpack.c.0.s8 %v4837
    %v4839 = vlaneseq
    %v4840 = vshrl.u32 %v4839, 7
    %v4841 = vsub.s32 %v4838, %v4840
    %v4842 = vrot.slane %v4828, %v4841
    %v4843 = vcombine.low %v3808, %v3942
    %v4844 = vcombine.high %v3808, %v3942
    %v4846 = vunpack.c.l.s4 1983009808
    %v4847 = vunpack.c.0.s8 %v4846
    %v4848 = vlaneseq
    %v4849 = vshrl.u32 %v4848, 7
    %v4850 = vsub.s32 %v4847, %v4849
    %v4851 = vrot.slane %v4843, %v4850
    %v4853 = vunpack.c.l.s4 1983009808
    %v4854 = vunpack.c.0.s8 %v4853
    %v4855 = vlaneseq
    %v4856 = vshrl.u32 %v4855, 7
    %v4857 = vsub.s32 %v4854, %v4856
    %v4858 = vrot.slane %v4844, %v4857
    %v4859 = vcombine.low %v4803, %v4819
    %v4860 = vcombine.high %v4803, %v4819
    %v4862 = vunpack.c.l.s4 1934713408
    %v4863 = vunpack.c.0.s8 %v4862
    %v4864 = vlaneseq
    %v4865 = vshrl.u32 %v4864, 7
    %v4866 = vsub.s32 %v4863, %v4865
    %v4867 = vrot.slane %v4859, %v4866
    %v4869 = vunpack.c.l.s4 1934713408
    %v4870 = vunpack.c.0.s8 %v4869
    %v4871 = vlaneseq
    %v4872 = vshrl.u32 %v4871, 7
    %v4873 = vsub.s32 %v4870, %v4872
    %v4874 = vrot.slane %v4860, %v4873
    %v4875 = vcombine.low %v4810, %v4826
    %v4876 = vcombine.high %v4810, %v4826
    %v4878 = vunpack.c.l.s4 1934713408
    %v4879 = vunpack.c.0.s8 %v4878
    %v4880 = vlaneseq
    %v4881 = vshrl.u32 %v4880, 7
    %v4882 = vsub.s32 %v4879, %v4881
    %v4883 = vrot.slane %v4875, %v4882
    %v4885 = vunpack.c.l.s4 1934713408
    %v4886 = vunpack.c.0.s8 %v4885
    %v4887 = vlaneseq
    %v4888 = vshrl.u32 %v4887, 7
    %v4889 = vsub.s32 %v4886, %v4888
    %v4890 = vrot.slane %v4876, %v4889
    %v4891 = vcombine.low %v4835, %v4851
    %v4892 = vcombine.high %v4835, %v4851
    %v4894 = vunpack.c.l.s4 1934713408
    %v4895 = vunpack.c.0.s8 %v4894
    %v4896 = vlaneseq
    %v4897 = vshrl.u32 %v4896, 7
    %v4898 = vsub.s32 %v4895, %v4897
    %v4899 = vrot.slane %v4891, %v4898
    %v4901 = vunpack.c.l.s4 1934713408
    %v4902 = vunpack.c.0.s8 %v4901
    %v4903 = vlaneseq
    %v4904 = vshrl.u32 %v4903, 7
    %v4905 = vsub.s32 %v4902, %v4904
    %v4906 = vrot.slane %v4892, %v4905
    %v4907 = vcombine.low %v4842, %v4858
    %v4908 = vcombine.high %v4842, %v4858
    %v4910 = vunpack.c.l.s4 1934713408
    %v4911 = vunpack.c.0.s8 %v4910
    %v4912 = vlaneseq
    %v4913 = vshrl.u32 %v4912, 7
    %v4914 = vsub.s32 %v4911, %v4913
    %v4915 = vrot.slane %v4907, %v4914
    %v4917 = vunpack.c.l.s4 1934713408
    %v4918 = vunpack.c.0.s8 %v4917
    %v4919 = vlaneseq
    %v4920 = vshrl.u32 %v4919, 7
    %v4921 = vsub.s32 %v4918, %v4920
    %v4922 = vrot.slane %v4908, %v4921
    %v4923 = vcombine.low %v4867, %v4899
    %v4924 = vcombine.high %v4867, %v4899
    %v4925 = vcombine.low %v4874, %v4906
    %v4926 = vcombine.high %v4874, %v4906
    %v4927 = vcombine.low %v4883, %v4915
    %v4928 = vcombine.high %v4883, %v4915
    %v4929 = vcombine.low %v4890, %v4922
    %v4930 = vcombine.high %v4890, %v4922
    %v4931 = vcombine.low %v3477, %v3611
    %v4932 = vcombine.high %v3477, %v3611
    %v4934 = vunpack.c.l.s4 1983009808
    %v4935 = vunpack.c.0.s8 %v4934
    %v4936 = vlaneseq
    %v4937 = vshrl.u32 %v4936, 7
    %v4938 = vsub.s32 %v4935, %v4937
    %v4939 = vrot.slane %v4931, %v4938
    %v4941 = vunpack.c.l.s4 1983009808
    %v4942 = vunpack.c.0.s8 %v4941
    %v4943 = vlaneseq
    %v4944 = vshrl.u32 %v4943, 7
    %v4945 = vsub.s32 %v4942, %v4944
    %v4946 = vrot.slane %v4932, %v4945
    %v4947 = vcombine.low %v3544, %v3678
    %v4948 = vcombine.high %v3544, %v3678
    %v4950 = vunpack.c.l.s4 1983009808
    %v4951 = vunpack.c.0.s8 %v4950
    %v4952 = vlaneseq
    %v4953 = vshrl.u32 %v4952, 7
    %v4954 = vsub.s32 %v4951, %v4953
    %v4955 = vrot.slane %v4947, %v4954
    %v4957 = vunpack.c.l.s4 1983009808
    %v4958 = vunpack.c.0.s8 %v4957
    %v4959 = vlaneseq
    %v4960 = vshrl.u32 %v4959, 7
    %v4961 = vsub.s32 %v4958, %v4960
    %v4962 = vrot.slane %v4948, %v4961
    %v4963 = vcombine.low %v3745, %v3879
    %v4964 = vcombine.high %v3745, %v3879
    %v4966 = vunpack.c.l.s4 1983009808
    %v4967 = vunpack.c.0.s8 %v4966
    %v4968 = vlaneseq
    %v4969 = vshrl.u32 %v4968, 7
    %v4970 = vsub.s32 %v4967, %v4969
    %v4971 = vrot.slane %v4963, %v4970
    %v4973 = vunpack.c.l.s4 1983009808
    %v4974 = vunpack.c.0.s8 %v4973
    %v4975 = vlaneseq
    %v4976 = vshrl.u32 %v4975, 7
    %v4977 = vsub.s32 %v4974, %v4976
    %v4978 = vrot.slane %v4964, %v4977
    %v4979 = vcombine.low %v3812, %v3946
    %v4980 = vcombine.high %v3812, %v3946
    %v4982 = vunpack.c.l.s4 1983009808
    %v4983 = vunpack.c.0.s8 %v4982
    %v4984 = vlaneseq
    %v4985 = vshrl.u32 %v4984, 7
    %v4986 = vsub.s32 %v4983, %v4985
    %v4987 = vrot.slane %v4979, %v4986
    %v4989 = vunpack.c.l.s4 1983009808
    %v4990 = vunpack.c.0.s8 %v4989
    %v4991 = vlaneseq
    %v4992 = vshrl.u32 %v4991, 7
    %v4993 = vsub.s32 %v4990, %v4992
    %v4994 = vrot.slane %v4980, %v4993
    %v4995 = vcombine.low %v4939, %v4955
    %v4996 = vcombine.high %v4939, %v4955
    %v4998 = vunpack.c.l.s4 1934713408
    %v4999 = vunpack.c.0.s8 %v4998
    %v5000 = vlaneseq
    %v5001 = vshrl.u32 %v5000, 7
    %v5002 = vsub.s32 %v4999, %v5001
    %v5003 = vrot.slane %v4995, %v5002
    %v5005 = vunpack.c.l.s4 1934713408
    %v5006 = vunpack.c.0.s8 %v5005
    %v5007 = vlaneseq
    %v5008 = vshrl.u32 %v5007, 7
    %v5009 = vsub.s32 %v5006, %v5008
    %v5010 = vrot.slane %v4996, %v5009
    %v5011 = vcombine.low %v4946, %v4962
    %v5012 = vcombine.high %v4946, %v4962
    %v5014 = vunpack.c.l.s4 1934713408
    %v5015 = vunpack.c.0.s8 %v5014
    %v5016 = vlaneseq
    %v5017 = vshrl.u32 %v5016, 7
    %v5018 = vsub.s32 %v5015, %v5017
    %v5019 = vrot.slane %v5011, %v5018
    %v5021 = vunpack.c.l.s4 1934713408
    %v5022 = vunpack.c.0.s8 %v5021
    %v5023 = vlaneseq
    %v5024 = vshrl.u32 %v5023, 7
    %v5025 = vsub.s32 %v5022, %v5024
    %v5026 = vrot.slane %v5012, %v5025
    %v5027 = vcombine.low %v4971, %v4987
    %v5028 = vcombine.high %v4971, %v4987
    %v5030 = vunpack.c.l.s4 1934713408
    %v5031 = vunpack.c.0.s8 %v5030
    %v5032 = vlaneseq
    %v5033 = vshrl.u32 %v5032, 7
    %v5034 = vsub.s32 %v5031, %v5033
    %v5035 = vrot.slane %v5027, %v5034
    %v5037 = vunpack.c.l.s4 1934713408
    %v5038 = vunpack.c.0.s8 %v5037
    %v5039 = vlaneseq
    %v5040 = vshrl.u32 %v5039, 7
    %v5041 = vsub.s32 %v5038, %v5040
    %v5042 = vrot.slane %v5028, %v5041
    %v5043 = vcombine.low %v4978, %v4994
    %v5044 = vcombine.high %v4978, %v4994
    %v5046 = vunpack.c.l.s4 1934713408
    %v5047 = vunpack.c.0.s8 %v5046
    %v5048 = vlaneseq
    %v5049 = vshrl.u32 %v5048, 7
    %v5050 = vsub.s32 %v5047, %v5049
    %v5051 = vrot.slane %v5043, %v5050
    %v5053 = vunpack.c.l.s4 1934713408
    %v5054 = vunpack.c.0.s8 %v5053
    %v5055 = vlaneseq
    %v5056 = vshrl.u32 %v5055, 7
    %v5057 = vsub.s32 %v5054, %v5056
    %v5058 = vrot.slane %v5044, %v5057
    %v5059 = vcombine.low %v5003, %v5035
    %v5060 = vcombine.high %v5003, %v5035
    %v5061 = vcombine.low %v5010, %v5042
    %v5062 = vcombine.high %v5010, %v5042
    %v5063 = vcombine.low %v5019, %v5051
    %v5064 = vcombine.high %v5019, %v5051
    %v5065 = vcombine.low %v5026, %v5058
    %v5066 = vcombine.high %v5026, %v5058
    %v5067 = vcombine.low %v3481, %v3615
    %v5068 = vcombine.high %v3481, %v3615
    %v5070 = vunpack.c.l.s4 1983009808
    %v5071 = vunpack.c.0.s8 %v5070
    %v5072 = vlaneseq
    %v5073 = vshrl.u32 %v5072, 7
    %v5074 = vsub.s32 %v5071, %v5073
    %v5075 = vrot.slane %v5067, %v5074
    %v5077 = vunpack.c.l.s4 1983009808
    %v5078 = vunpack.c.0.s8 %v5077
    %v5079 = vlaneseq
    %v5080 = vshrl.u32 %v5079, 7
    %v5081 = vsub.s32 %v5078, %v5080
    %v5082 = vrot.slane %v5068, %v5081
    %v5083 = vcombine.low %v3548, %v3682
    %v5084 = vcombine.high %v3548, %v3682
    %v5086 = vunpack.c.l.s4 1983009808
    %v5087 = vunpack.c.0.s8 %v5086
    %v5088 = vlaneseq
    %v5089 = vshrl.u32 %v5088, 7
    %v5090 = vsub.s32 %v5087, %v5089
    %v5091 = vrot.slane %v5083, %v5090
    %v5093 = vunpack.c.l.s4 1983009808
    %v5094 = vunpack.c.0.s8 %v5093
    %v5095 = vlaneseq
    %v5096 = vshrl.u32 %v5095, 7
    %v5097 = vsub.s32 %v5094, %v5096
    %v5098 = vrot.slane %v5084, %v5097
    %v5099 = vcombine.low %v3749, %v3883
    %v5100 = vcombine.high %v3749, %v3883
    %v5102 = vunpack.c.l.s4 1983009808
    %v5103 = vunpack.c.0.s8 %v5102
    %v5104 = vlaneseq
    %v5105 = vshrl.u32 %v5104, 7
    %v5106 = vsub.s32 %v5103, %v5105
    %v5107 = vrot.slane %v5099, %v5106
    %v5109 = vunpack.c.l.s4 1983009808
    %v5110 = vunpack.c.0.s8 %v5109
    %v5111 = vlaneseq
    %v5112 = vshrl.u32 %v5111, 7
    %v5113 = vsub.s32 %v5110, %v5112
    %v5114 = vrot.slane %v5100, %v5113
    %v5115 = vcombine.low %v3816, %v3950
    %v5116 = vcombine.high %v3816, %v3950
    %v5118 = vunpack.c.l.s4 1983009808
    %v5119 = vunpack.c.0.s8 %v5118
    %v5120 = vlaneseq
    %v5121 = vshrl.u32 %v5120, 7
    %v5122 = vsub.s32 %v5119, %v5121
    %v5123 = vrot.slane %v5115, %v5122
    %v5125 = vunpack.c.l.s4 1983009808
    %v5126 = vunpack.c.0.s8 %v5125
    %v5127 = vlaneseq
    %v5128 = vshrl.u32 %v5127, 7
    %v5129 = vsub.s32 %v5126, %v5128
    %v5130 = vrot.slane %v5116, %v5129
    %v5131 = vcombine.low %v5075, %v5091
    %v5132 = vcombine.high %v5075, %v5091
    %v5134 = vunpack.c.l.s4 1934713408
    %v5135 = vunpack.c.0.s8 %v5134
    %v5136 = vlaneseq
    %v5137 = vshrl.u32 %v5136, 7
    %v5138 = vsub.s32 %v5135, %v5137
    %v5139 = vrot.slane %v5131, %v5138
    %v5141 = vunpack.c.l.s4 1934713408
    %v5142 = vunpack.c.0.s8 %v5141
    %v5143 = vlaneseq
    %v5144 = vshrl.u32 %v5143, 7
    %v5145 = vsub.s32 %v5142, %v5144
    %v5146 = vrot.slane %v5132, %v5145
    %v5147 = vcombine.low %v5082, %v5098
    %v5148 = vcombine.high %v5082, %v5098
    %v5150 = vunpack.c.l.s4 1934713408
    %v5151 = vunpack.c.0.s8 %v5150
    %v5152 = vlaneseq
    %v5153 = vshrl.u32 %v5152, 7
    %v5154 = vsub.s32 %v5151, %v5153
    %v5155 = vrot.slane %v5147, %v5154
    %v5157 = vunpack.c.l.s4 1934713408
    %v5158 = vunpack.c.0.s8 %v5157
    %v5159 = vlaneseq
    %v5160 = vshrl.u32 %v5159, 7
    %v5161 = vsub.s32 %v5158, %v5160
    %v5162 = vrot.slane %v5148, %v5161
    %v5163 = vcombine.low %v5107, %v5123
    %v5164 = vcombine.high %v5107, %v5123
    %v5166 = vunpack.c.l.s4 1934713408
    %v5167 = vunpack.c.0.s8 %v5166
    %v5168 = vlaneseq
    %v5169 = vshrl.u32 %v5168, 7
    %v5170 = vsub.s32 %v5167, %v5169
    %v5171 = vrot.slane %v5163, %v5170
    %v5173 = vunpack.c.l.s4 1934713408
    %v5174 = vunpack.c.0.s8 %v5173
    %v5175 = vlaneseq
    %v5176 = vshrl.u32 %v5175, 7
    %v5177 = vsub.s32 %v5174, %v5176
    %v5178 = vrot.slane %v5164, %v5177
    %v5179 = vcombine.low %v5114, %v5130
    %v5180 = vcombine.high %v5114, %v5130
    %v5182 = vunpack.c.l.s4 1934713408
    %v5183 = vunpack.c.0.s8 %v5182
    %v5184 = vlaneseq
    %v5185 = vshrl.u32 %v5184, 7
    %v5186 = vsub.s32 %v5183, %v5185
    %v5187 = vrot.slane %v5179, %v5186
    %v5189 = vunpack.c.l.s4 1934713408
    %v5190 = vunpack.c.0.s8 %v5189
    %v5191 = vlaneseq
    %v5192 = vshrl.u32 %v5191, 7
    %v5193 = vsub.s32 %v5190, %v5192
    %v5194 = vrot.slane %v5180, %v5193
    %v5195 = vcombine.low %v5139, %v5171
    %v5196 = vcombine.high %v5139, %v5171
    %v5197 = vcombine.low %v5146, %v5178
    %v5198 = vcombine.high %v5146, %v5178
    %v5199 = vcombine.low %v5155, %v5187
    %v5200 = vcombine.high %v5155, %v5187
    %v5201 = vcombine.low %v5162, %v5194
    %v5202 = vcombine.high %v5162, %v5194
    %v5203 = vcombine.low %v3485, %v3619
    %v5204 = vcombine.high %v3485, %v3619
    %v5206 = vunpack.c.l.s4 1983009808
    %v5207 = vunpack.c.0.s8 %v5206
    %v5208 = vlaneseq
    %v5209 = vshrl.u32 %v5208, 7
    %v5210 = vsub.s32 %v5207, %v5209
    %v5211 = vrot.slane %v5203, %v5210
    %v5213 = vunpack.c.l.s4 1983009808
    %v5214 = vunpack.c.0.s8 %v5213
    %v5215 = vlaneseq
    %v5216 = vshrl.u32 %v5215, 7
    %v5217 = vsub.s32 %v5214, %v5216
    %v5218 = vrot.slane %v5204, %v5217
    %v5219 = vcombine.low %v3552, %v3686
    %v5220 = vcombine.high %v3552, %v3686
    %v5222 = vunpack.c.l.s4 1983009808
    %v5223 = vunpack.c.0.s8 %v5222
    %v5224 = vlaneseq
    %v5225 = vshrl.u32 %v5224, 7
    %v5226 = vsub.s32 %v5223, %v5225
    %v5227 = vrot.slane %v5219, %v5226
    %v5229 = vunpack.c.l.s4 1983009808
    %v5230 = vunpack.c.0.s8 %v5229
    %v5231 = vlaneseq
    %v5232 = vshrl.u32 %v5231, 7
    %v5233 = vsub.s32 %v5230, %v5232
    %v5234 = vrot.slane %v5220, %v5233
    %v5235 = vcombine.low %v3753, %v3887
    %v5236 = vcombine.high %v3753, %v3887
    %v5238 = vunpack.c.l.s4 1983009808
    %v5239 = vunpack.c.0.s8 %v5238
    %v5240 = vlaneseq
    %v5241 = vshrl.u32 %v5240, 7
    %v5242 = vsub.s32 %v5239, %v5241
    %v5243 = vrot.slane %v5235, %v5242
    %v5245 = vunpack.c.l.s4 1983009808
    %v5246 = vunpack.c.0.s8 %v5245
    %v5247 = vlaneseq
    %v5248 = vshrl.u32 %v5247, 7
    %v5249 = vsub.s32 %v5246, %v5248
    %v5250 = vrot.slane %v5236, %v5249
    %v5251 = vcombine.low %v3820, %v3954
    %v5252 = vcombine.high %v3820, %v3954
    %v5254 = vunpack.c.l.s4 1983009808
    %v5255 = vunpack.c.0.s8 %v5254
    %v5256 = vlaneseq
    %v5257 = vshrl.u32 %v5256, 7
    %v5258 = vsub.s32 %v5255, %v5257
    %v5259 = vrot.slane %v5251, %v5258
    %v5261 = vunpack.c.l.s4 1983009808
    %v5262 = vunpack.c.0.s8 %v5261
    %v5263 = vlaneseq
    %v5264 = vshrl.u32 %v5263, 7
    %v5265 = vsub.s32 %v5262, %v5264
    %v5266 = vrot.slane %v5252, %v5265
    %v5267 = vcombine.low %v5211, %v5227
    %v5268 = vcombine.high %v5211, %v5227
    %v5270 = vunpack.c.l.s4 1934713408
    %v5271 = vunpack.c.0.s8 %v5270
    %v5272 = vlaneseq
    %v5273 = vshrl.u32 %v5272, 7
    %v5274 = vsub.s32 %v5271, %v5273
    %v5275 = vrot.slane %v5267, %v5274
    %v5277 = vunpack.c.l.s4 1934713408
    %v5278 = vunpack.c.0.s8 %v5277
    %v5279 = vlaneseq
    %v5280 = vshrl.u32 %v5279, 7
    %v5281 = vsub.s32 %v5278, %v5280
    %v5282 = vrot.slane %v5268, %v5281
    %v5283 = vcombine.low %v5218, %v5234
    %v5284 = vcombine.high %v5218, %v5234
    %v5286 = vunpack.c.l.s4 1934713408
    %v5287 = vunpack.c.0.s8 %v5286
    %v5288 = vlaneseq
    %v5289 = vshrl.u32 %v5288, 7
    %v5290 = vsub.s32 %v5287, %v5289
    %v5291 = vrot.slane %v5283, %v5290
    %v5293 = vunpack.c.l.s4 1934713408
    %v5294 = vunpack.c.0.s8 %v5293
    %v5295 = vlaneseq
    %v5296 = vshrl.u32 %v5295, 7
    %v5297 = vsub.s32 %v5294, %v5296
    %v5298 = vrot.slane %v5284, %v5297
    %v5299 = vcombine.low %v5243, %v5259
    %v5300 = vcombine.high %v5243, %v5259
    %v5302 = vunpack.c.l.s4 1934713408
    %v5303 = vunpack.c.0.s8 %v5302
    %v5304 = vlaneseq
    %v5305 = vshrl.u32 %v5304, 7
    %v5306 = vsub.s32 %v5303, %v5305
    %v5307 = vrot.slane %v5299, %v5306
    %v5309 = vunpack.c.l.s4 1934713408
    %v5310 = vunpack.c.0.s8 %v5309
    %v5311 = vlaneseq
    %v5312 = vshrl.u32 %v5311, 7
    %v5313 = vsub.s32 %v5310, %v5312
    %v5314 = vrot.slane %v5300, %v5313
    %v5315 = vcombine.low %v5250, %v5266
    %v5316 = vcombine.high %v5250, %v5266
    %v5318 = vunpack.c.l.s4 1934713408
    %v5319 = vunpack.c.0.s8 %v5318
    %v5320 = vlaneseq
    %v5321 = vshrl.u32 %v5320, 7
    %v5322 = vsub.s32 %v5319, %v5321
    %v5323 = vrot.slane %v5315, %v5322
    %v5325 = vunpack.c.l.s4 1934713408
    %v5326 = vunpack.c.0.s8 %v5325
    %v5327 = vlaneseq
    %v5328 = vshrl.u32 %v5327, 7
    %v5329 = vsub.s32 %v5326, %v5328
    %v5330 = vrot.slane %v5316, %v5329
    %v5331 = vcombine.low %v5275, %v5307
    %v5332 = vcombine.high %v5275, %v5307
    %v5333 = vcombine.low %v5282, %v5314
    %v5334 = vcombine.high %v5282, %v5314
    %v5335 = vcombine.low %v5291, %v5323
    %v5336 = vcombine.high %v5291, %v5323
    %v5337 = vcombine.low %v5298, %v5330
    %v5338 = vcombine.high %v5298, %v5330
    %v5339 = vcombine.low %v3489, %v3623
    %v5340 = vcombine.high %v3489, %v3623
    %v5342 = vunpack.c.l.s4 1983009808
    %v5343 = vunpack.c.0.s8 %v5342
    %v5344 = vlaneseq
    %v5345 = vshrl.u32 %v5344, 7
    %v5346 = vsub.s32 %v5343, %v5345
    %v5347 = vrot.slane %v5339, %v5346
    %v5349 = vunpack.c.l.s4 1983009808
    %v5350 = vunpack.c.0.s8 %v5349
    %v5351 = vlaneseq
    %v5352 = vshrl.u32 %v5351, 7
    %v5353 = vsub.s32 %v5350, %v5352
    %v5354 = vrot.slane %v5340, %v5353
    %v5355 = vcombine.low %v3556, %v3690
    %v5356 = vcombine.high %v3556, %v3690
    %v5358 = vunpack.c.l.s4 1983009808
    %v5359 = vunpack.c.0.s8 %v5358
    %v5360 = vlaneseq
    %v5361 = vshrl.u32 %v5360, 7
    %v5362 = vsub.s32 %v5359, %v5361
    %v5363 = vrot.slane %v5355, %v5362
    %v5365 = vunpack.c.l.s4 1983009808
    %v5366 = vunpack.c.0.s8 %v5365
    %v5367 = vlaneseq
    %v5368 = vshrl.u32 %v5367, 7
    %v5369 = vsub.s32 %v5366, %v5368
    %v5370 = vrot.slane %v5356, %v5369
    %v5371 = vcombine.low %v3757, %v3891
    %v5372 = vcombine.high %v3757, %v3891
    %v5374 = vunpack.c.l.s4 1983009808
    %v5375 = vunpack.c.0.s8 %v5374
    %v5376 = vlaneseq
    %v5377 = vshrl.u32 %v5376, 7
    %v5378 = vsub.s32 %v5375, %v5377
    %v5379 = vrot.slane %v5371, %v5378
    %v5381 = vunpack.c.l.s4 1983009808
    %v5382 = vunpack.c.0.s8 %v5381
    %v5383 = vlaneseq
    %v5384 = vshrl.u32 %v5383, 7
    %v5385 = vsub.s32 %v5382, %v5384
    %v5386 = vrot.slane %v5372, %v5385
    %v5387 = vcombine.low %v3824, %v3958
    %v5388 = vcombine.high %v3824, %v3958
    %v5390 = vunpack.c.l.s4 1983009808
    %v5391 = vunpack.c.0.s8 %v5390
    %v5392 = vlaneseq
    %v5393 = vshrl.u32 %v5392, 7
    %v5394 = vsub.s32 %v5391, %v5393
    %v5395 = vrot.slane %v5387, %v5394
    %v5397 = vunpack.c.l.s4 1983009808
    %v5398 = vunpack.c.0.s8 %v5397
    %v5399 = vlaneseq
    %v5400 = vshrl.u32 %v5399, 7
    %v5401 = vsub.s32 %v5398, %v5400
    %v5402 = vrot.slane %v5388, %v5401
    %v5403 = vcombine.low %v5347, %v5363
    %v5404 = vcombine.high %v5347, %v5363
    %v5406 = vunpack.c.l.s4 1934713408
    %v5407 = vunpack.c.0.s8 %v5406
    %v5408 = vlaneseq
    %v5409 = vshrl.u32 %v5408, 7
    %v5410 = vsub.s32 %v5407, %v5409
    %v5411 = vrot.slane %v5403, %v5410
    %v5413 = vunpack.c.l.s4 1934713408
    %v5414 = vunpack.c.0.s8 %v5413
    %v5415 = vlaneseq
    %v5416 = vshrl.u32 %v5415, 7
    %v5417 = vsub.s32 %v5414, %v5416
    %v5418 = vrot.slane %v5404, %v5417
    %v5419 = vcombine.low %v5354, %v5370
    %v5420 = vcombine.high %v5354, %v5370
    %v5422 = vunpack.c.l.s4 1934713408
    %v5423 = vunpack.c.0.s8 %v5422
    %v5424 = vlaneseq
    %v5425 = vshrl.u32 %v5424, 7
    %v5426 = vsub.s32 %v5423, %v5425
    %v5427 = vrot.slane %v5419, %v5426
    %v5429 = vunpack.c.l.s4 1934713408
    %v5430 = vunpack.c.0.s8 %v5429
    %v5431 = vlaneseq
    %v5432 = vshrl.u32 %v5431, 7
    %v5433 = vsub.s32 %v5430, %v5432
    %v5434 = vrot.slane %v5420, %v5433
    %v5435 = vcombine.low %v5379, %v5395
    %v5436 = vcombine.high %v5379, %v5395
    %v5438 = vunpack.c.l.s4 1934713408
    %v5439 = vunpack.c.0.s8 %v5438
    %v5440 = vlaneseq
    %v5441 = vshrl.u32 %v5440, 7
    %v5442 = vsub.s32 %v5439, %v5441
    %v5443 = vrot.slane %v5435, %v5442
    %v5445 = vunpack.c.l.s4 1934713408
    %v5446 = vunpack.c.0.s8 %v5445
    %v5447 = vlaneseq
    %v5448 = vshrl.u32 %v5447, 7
    %v5449 = vsub.s32 %v5446, %v5448
    %v5450 = vrot.slane %v5436, %v5449
    %v5451 = vcombine.low %v5386, %v5402
    %v5452 = vcombine.high %v5386, %v5402
    %v5454 = vunpack.c.l.s4 1934713408
    %v5455 = vunpack.c.0.s8 %v5454
    %v5456 = vlaneseq
    %v5457 = vshrl.u32 %v5456, 7
    %v5458 = vsub.s32 %v5455, %v5457
    %v5459 = vrot.slane %v5451, %v5458
    %v5461 = vunpack.c.l.s4 1934713408
    %v5462 = vunpack.c.0.s8 %v5461
    %v5463 = vlaneseq
    %v5464 = vshrl.u32 %v5463, 7
    %v5465 = vsub.s32 %v5462, %v5464
    %v5466 = vrot.slane %v5452, %v5465
    %v5467 = vcombine.low %v5411, %v5443
    %v5468 = vcombine.high %v5411, %v5443
    %v5469 = vcombine.low %v5418, %v5450
    %v5470 = vcombine.high %v5418, %v5450
    %v5471 = vcombine.low %v5427, %v5459
    %v5472 = vcombine.high %v5427, %v5459
    %v5473 = vcombine.low %v5434, %v5466
    %v5474 = vcombine.high %v5434, %v5466
    %v5475 = vcombine.low %v3493, %v3627
    %v5476 = vcombine.high %v3493, %v3627
    %v5478 = vunpack.c.l.s4 1983009808
    %v5479 = vunpack.c.0.s8 %v5478
    %v5480 = vlaneseq
    %v5481 = vshrl.u32 %v5480, 7
    %v5482 = vsub.s32 %v5479, %v5481
    %v5483 = vrot.slane %v5475, %v5482
    %v5485 = vunpack.c.l.s4 1983009808
    %v5486 = vunpack.c.0.s8 %v5485
    %v5487 = vlaneseq
    %v5488 = vshrl.u32 %v5487, 7
    %v5489 = vsub.s32 %v5486, %v5488
    %v5490 = vrot.slane %v5476, %v5489
    %v5491 = vcombine.low %v3560, %v3694
    %v5492 = vcombine.high %v3560, %v3694
    %v5494 = vunpack.c.l.s4 1983009808
    %v5495 = vunpack.c.0.s8 %v5494
    %v5496 = vlaneseq
    %v5497 = vshrl.u32 %v5496, 7
    %v5498 = vsub.s32 %v5495, %v5497
    %v5499 = vrot.slane %v5491, %v5498
    %v5501 = vunpack.c.l.s4 1983009808
    %v5502 = vunpack.c.0.s8 %v5501
    %v5503 = vlaneseq
    %v5504 = vshrl.u32 %v5503, 7
    %v5505 = vsub.s32 %v5502, %v5504
    %v5506 = vrot.slane %v5492, %v5505
    %v5507 = vcombine.low %v3761, %v3895
    %v5508 = vcombine.high %v3761, %v3895
    %v5510 = vunpack.c.l.s4 1983009808
    %v5511 = vunpack.c.0.s8 %v5510
    %v5512 = vlaneseq
    %v5513 = vshrl.u32 %v5512, 7
    %v5514 = vsub.s32 %v5511, %v5513
    %v5515 = vrot.slane %v5507, %v5514
    %v5517 = vunpack.c.l.s4 1983009808
    %v5518 = vunpack.c.0.s8 %v5517
    %v5519 = vlaneseq
    %v5520 = vshrl.u32 %v5519, 7
    %v5521 = vsub.s32 %v5518, %v5520
    %v5522 = vrot.slane %v5508, %v5521
    %v5523 = vcombine.low %v3828, %v3962
    %v5524 = vcombine.high %v3828, %v3962
    %v5526 = vunpack.c.l.s4 1983009808
    %v5527 = vunpack.c.0.s8 %v5526
    %v5528 = vlaneseq
    %v5529 = vshrl.u32 %v5528, 7
    %v5530 = vsub.s32 %v5527, %v5529
    %v5531 = vrot.slane %v5523, %v5530
    %v5533 = vunpack.c.l.s4 1983009808
    %v5534 = vunpack.c.0.s8 %v5533
    %v5535 = vlaneseq
    %v5536 = vshrl.u32 %v5535, 7
    %v5537 = vsub.s32 %v5534, %v5536
    %v5538 = vrot.slane %v5524, %v5537
    %v5539 = vcombine.low %v5483, %v5499
    %v5540 = vcombine.high %v5483, %v5499
    %v5542 = vunpack.c.l.s4 1934713408
    %v5543 = vunpack.c.0.s8 %v5542
    %v5544 = vlaneseq
    %v5545 = vshrl.u32 %v5544, 7
    %v5546 = vsub.s32 %v5543, %v5545
    %v5547 = vrot.slane %v5539, %v5546
    %v5549 = vunpack.c.l.s4 1934713408
    %v5550 = vunpack.c.0.s8 %v5549
    %v5551 = vlaneseq
    %v5552 = vshrl.u32 %v5551, 7
    %v5553 = vsub.s32 %v5550, %v5552
    %v5554 = vrot.slane %v5540, %v5553
    %v5555 = vcombine.low %v5490, %v5506
    %v5556 = vcombine.high %v5490, %v5506
    %v5558 = vunpack.c.l.s4 1934713408
    %v5559 = vunpack.c.0.s8 %v5558
    %v5560 = vlaneseq
    %v5561 = vshrl.u32 %v5560, 7
    %v5562 = vsub.s32 %v5559, %v5561
    %v5563 = vrot.slane %v5555, %v5562
    %v5565 = vunpack.c.l.s4 1934713408
    %v5566 = vunpack.c.0.s8 %v5565
    %v5567 = vlaneseq
    %v5568 = vshrl.u32 %v5567, 7
    %v5569 = vsub.s32 %v5566, %v5568
    %v5570 = vrot.slane %v5556, %v5569
    %v5571 = vcombine.low %v5515, %v5531
    %v5572 = vcombine.high %v5515, %v5531
    %v5574 = vunpack.c.l.s4 1934713408
    %v5575 = vunpack.c.0.s8 %v5574
    %v5576 = vlaneseq
    %v5577 = vshrl.u32 %v5576, 7
    %v5578 = vsub.s32 %v5575, %v5577
    %v5579 = vrot.slane %v5571, %v5578
    %v5581 = vunpack.c.l.s4 1934713408
    %v5582 = vunpack.c.0.s8 %v5581
    %v5583 = vlaneseq
    %v5584 = vshrl.u32 %v5583, 7
    %v5585 = vsub.s32 %v5582, %v5584
    %v5586 = vrot.slane %v5572, %v5585
    %v5587 = vcombine.low %v5522, %v5538
    %v5588 = vcombine.high %v5522, %v5538
    %v5590 = vunpack.c.l.s4 1934713408
    %v5591 = vunpack.c.0.s8 %v5590
    %v5592 = vlaneseq
    %v5593 = vshrl.u32 %v5592, 7
    %v5594 = vsub.s32 %v5591, %v5593
    %v5595 = vrot.slane %v5587, %v5594
    %v5597 = vunpack.c.l.s4 1934713408
    %v5598 = vunpack.c.0.s8 %v5597
    %v5599 = vlaneseq
    %v5600 = vshrl.u32 %v5599, 7
    %v5601 = vsub.s32 %v5598, %v5600
    %v5602 = vrot.slane %v5588, %v5601
    %v5603 = vcombine.low %v5547, %v5579
    %v5604 = vcombine.high %v5547, %v5579
    %v5605 = vcombine.low %v5554, %v5586
    %v5606 = vcombine.high %v5554, %v5586
    %v5607 = vcombine.low %v5563, %v5595
    %v5608 = vcombine.high %v5563, %v5595
    %v5609 = vcombine.low %v5570, %v5602
    %v5610 = vcombine.high %v5570, %v5602
    %v5611 = vcombine.low %v3497, %v3631
    %v5612 = vcombine.high %v3497, %v3631
    %v5614 = vunpack.c.l.s4 1983009808
    %v5615 = vunpack.c.0.s8 %v5614
    %v5616 = vlaneseq
    %v5617 = vshrl.u32 %v5616, 7
    %v5618 = vsub.s32 %v5615, %v5617
    %v5619 = vrot.slane %v5611, %v5618
    %v5621 = vunpack.c.l.s4 1983009808
    %v5622 = vunpack.c.0.s8 %v5621
    %v5623 = vlaneseq
    %v5624 = vshrl.u32 %v5623, 7
    %v5625 = vsub.s32 %v5622, %v5624
    %v5626 = vrot.slane %v5612, %v5625
    %v5627 = vcombine.low %v3564, %v3698
    %v5628 = vcombine.high %v3564, %v3698
    %v5630 = vunpack.c.l.s4 1983009808
    %v5631 = vunpack.c.0.s8 %v5630
    %v5632 = vlaneseq
    %v5633 = vshrl.u32 %v5632, 7
    %v5634 = vsub.s32 %v5631, %v5633
    %v5635 = vrot.slane %v5627, %v5634
    %v5637 = vunpack.c.l.s4 1983009808
    %v5638 = vunpack.c.0.s8 %v5637
    %v5639 = vlaneseq
    %v5640 = vshrl.u32 %v5639, 7
    %v5641 = vsub.s32 %v5638, %v5640
    %v5642 = vrot.slane %v5628, %v5641
    %v5643 = vcombine.low %v3765, %v3899
    %v5644 = vcombine.high %v3765, %v3899
    %v5646 = vunpack.c.l.s4 1983009808
    %v5647 = vunpack.c.0.s8 %v5646
    %v5648 = vlaneseq
    %v5649 = vshrl.u32 %v5648, 7
    %v5650 = vsub.s32 %v5647, %v5649
    %v5651 = vrot.slane %v5643, %v5650
    %v5653 = vunpack.c.l.s4 1983009808
    %v5654 = vunpack.c.0.s8 %v5653
    %v5655 = vlaneseq
    %v5656 = vshrl.u32 %v5655, 7
    %v5657 = vsub.s32 %v5654, %v5656
    %v5658 = vrot.slane %v5644, %v5657
    %v5659 = vcombine.low %v3832, %v3966
    %v5660 = vcombine.high %v3832, %v3966
    %v5662 = vunpack.c.l.s4 1983009808
    %v5663 = vunpack.c.0.s8 %v5662
    %v5664 = vlaneseq
    %v5665 = vshrl.u32 %v5664, 7
    %v5666 = vsub.s32 %v5663, %v5665
    %v5667 = vrot.slane %v5659, %v5666
    %v5669 = vunpack.c.l.s4 1983009808
    %v5670 = vunpack.c.0.s8 %v5669
    %v5671 = vlaneseq
    %v5672 = vshrl.u32 %v5671, 7
    %v5673 = vsub.s32 %v5670, %v5672
    %v5674 = vrot.slane %v5660, %v5673
    %v5675 = vcombine.low %v5619, %v5635
    %v5676 = vcombine.high %v5619, %v5635
    %v5678 = vunpack.c.l.s4 1934713408
    %v5679 = vunpack.c.0.s8 %v5678
    %v5680 = vlaneseq
    %v5681 = vshrl.u32 %v5680, 7
    %v5682 = vsub.s32 %v5679, %v5681
    %v5683 = vrot.slane %v5675, %v5682
    %v5685 = vunpack.c.l.s4 1934713408
    %v5686 = vunpack.c.0.s8 %v5685
    %v5687 = vlaneseq
    %v5688 = vshrl.u32 %v5687, 7
    %v5689 = vsub.s32 %v5686, %v5688
    %v5690 = vrot.slane %v5676, %v5689
    %v5691 = vcombine.low %v5626, %v5642
    %v5692 = vcombine.high %v5626, %v5642
    %v5694 = vunpack.c.l.s4 1934713408
    %v5695 = vunpack.c.0.s8 %v5694
    %v5696 = vlaneseq
    %v5697 = vshrl.u32 %v5696, 7
    %v5698 = vsub.s32 %v5695, %v5697
    %v5699 = vrot.slane %v5691, %v5698
    %v5701 = vunpack.c.l.s4 1934713408
    %v5702 = vunpack.c.0.s8 %v5701
    %v5703 = vlaneseq
    %v5704 = vshrl.u32 %v5703, 7
    %v5705 = vsub.s32 %v5702, %v5704
    %v5706 = vrot.slane %v5692, %v5705
    %v5707 = vcombine.low %v5651, %v5667
    %v5708 = vcombine.high %v5651, %v5667
    %v5710 = vunpack.c.l.s4 1934713408
    %v5711 = vunpack.c.0.s8 %v5710
    %v5712 = vlaneseq
    %v5713 = vshrl.u32 %v5712, 7
    %v5714 = vsub.s32 %v5711, %v5713
    %v5715 = vrot.slane %v5707, %v5714
    %v5717 = vunpack.c.l.s4 1934713408
    %v5718 = vunpack.c.0.s8 %v5717
    %v5719 = vlaneseq
    %v5720 = vshrl.u32 %v5719, 7
    %v5721 = vsub.s32 %v5718, %v5720
    %v5722 = vrot.slane %v5708, %v5721
    %v5723 = vcombine.low %v5658, %v5674
    %v5724 = vcombine.high %v5658, %v5674
    %v5726 = vunpack.c.l.s4 1934713408
    %v5727 = vunpack.c.0.s8 %v5726
    %v5728 = vlaneseq
    %v5729 = vshrl.u32 %v5728, 7
    %v5730 = vsub.s32 %v5727, %v5729
    %v5731 = vrot.slane %v5723, %v5730
    %v5733 = vunpack.c.l.s4 1934713408
    %v5734 = vunpack.c.0.s8 %v5733
    %v5735 = vlaneseq
    %v5736 = vshrl.u32 %v5735, 7
    %v5737 = vsub.s32 %v5734, %v5736
    %v5738 = vrot.slane %v5724, %v5737
    %v5739 = vcombine.low %v5683, %v5715
    %v5740 = vcombine.high %v5683, %v5715
    %v5741 = vcombine.low %v5690, %v5722
    %v5742 = vcombine.high %v5690, %v5722
    %v5743 = vcombine.low %v5699, %v5731
    %v5744 = vcombine.high %v5699, %v5731
    %v5745 = vcombine.low %v5706, %v5738
    %v5746 = vcombine.high %v5706, %v5738
    %v5747 = vcombine.low %v3501, %v3635
    %v5748 = vcombine.high %v3501, %v3635
    %v5750 = vunpack.c.l.s4 1983009808
    %v5751 = vunpack.c.0.s8 %v5750
    %v5752 = vlaneseq
    %v5753 = vshrl.u32 %v5752, 7
    %v5754 = vsub.s32 %v5751, %v5753
    %v5755 = vrot.slane %v5747, %v5754
    %v5757 = vunpack.c.l.s4 1983009808
    %v5758 = vunpack.c.0.s8 %v5757
    %v5759 = vlaneseq
    %v5760 = vshrl.u32 %v5759, 7
    %v5761 = vsub.s32 %v5758, %v5760
    %v5762 = vrot.slane %v5748, %v5761
    %v5763 = vcombine.low %v3568, %v3702
    %v5764 = vcombine.high %v3568, %v3702
    %v5766 = vunpack.c.l.s4 1983009808
    %v5767 = vunpack.c.0.s8 %v5766
    %v5768 = vlaneseq
    %v5769 = vshrl.u32 %v5768, 7
    %v5770 = vsub.s32 %v5767, %v5769
    %v5771 = vrot.slane %v5763, %v5770
    %v5773 = vunpack.c.l.s4 1983009808
    %v5774 = vunpack.c.0.s8 %v5773
    %v5775 = vlaneseq
    %v5776 = vshrl.u32 %v5775, 7
    %v5777 = vsub.s32 %v5774, %v5776
    %v5778 = vrot.slane %v5764, %v5777
    %v5779 = vcombine.low %v3769, %v3903
    %v5780 = vcombine.high %v3769, %v3903
    %v5782 = vunpack.c.l.s4 1983009808
    %v5783 = vunpack.c.0.s8 %v5782
    %v5784 = vlaneseq
    %v5785 = vshrl.u32 %v5784, 7
    %v5786 = vsub.s32 %v5783, %v5785
    %v5787 = vrot.slane %v5779, %v5786
    %v5789 = vunpack.c.l.s4 1983009808
    %v5790 = vunpack.c.0.s8 %v5789
    %v5791 = vlaneseq
    %v5792 = vshrl.u32 %v5791, 7
    %v5793 = vsub.s32 %v5790, %v5792
    %v5794 = vrot.slane %v5780, %v5793
    %v5795 = vcombine.low %v3836, %v3970
    %v5796 = vcombine.high %v3836, %v3970
    %v5798 = vunpack.c.l.s4 1983009808
    %v5799 = vunpack.c.0.s8 %v5798
    %v5800 = vlaneseq
    %v5801 = vshrl.u32 %v5800, 7
    %v5802 = vsub.s32 %v5799, %v5801
    %v5803 = vrot.slane %v5795, %v5802
    %v5805 = vunpack.c.l.s4 1983009808
    %v5806 = vunpack.c.0.s8 %v5805
    %v5807 = vlaneseq
    %v5808 = vshrl.u32 %v5807, 7
    %v5809 = vsub.s32 %v5806, %v5808
    %v5810 = vrot.slane %v5796, %v5809
    %v5811 = vcombine.low %v5755, %v5771
    %v5812 = vcombine.high %v5755, %v5771
    %v5814 = vunpack.c.l.s4 1934713408
    %v5815 = vunpack.c.0.s8 %v5814
    %v5816 = vlaneseq
    %v5817 = vshrl.u32 %v5816, 7
    %v5818 = vsub.s32 %v5815, %v5817
    %v5819 = vrot.slane %v5811, %v5818
    %v5821 = vunpack.c.l.s4 1934713408
    %v5822 = vunpack.c.0.s8 %v5821
    %v5823 = vlaneseq
    %v5824 = vshrl.u32 %v5823, 7
    %v5825 = vsub.s32 %v5822, %v5824
    %v5826 = vrot.slane %v5812, %v5825
    %v5827 = vcombine.low %v5762, %v5778
    %v5828 = vcombine.high %v5762, %v5778
    %v5830 = vunpack.c.l.s4 1934713408
    %v5831 = vunpack.c.0.s8 %v5830
    %v5832 = vlaneseq
    %v5833 = vshrl.u32 %v5832, 7
    %v5834 = vsub.s32 %v5831, %v5833
    %v5835 = vrot.slane %v5827, %v5834
    %v5837 = vunpack.c.l.s4 1934713408
    %v5838 = vunpack.c.0.s8 %v5837
    %v5839 = vlaneseq
    %v5840 = vshrl.u32 %v5839, 7
    %v5841 = vsub.s32 %v5838, %v5840
    %v5842 = vrot.slane %v5828, %v5841
    %v5843 = vcombine.low %v5787, %v5803
    %v5844 = vcombine.high %v5787, %v5803
    %v5846 = vunpack.c.l.s4 1934713408
    %v5847 = vunpack.c.0.s8 %v5846
    %v5848 = vlaneseq
    %v5849 = vshrl.u32 %v5848, 7
    %v5850 = vsub.s32 %v5847, %v5849
    %v5851 = vrot.slane %v5843, %v5850
    %v5853 = vunpack.c.l.s4 1934713408
    %v5854 = vunpack.c.0.s8 %v5853
    %v5855 = vlaneseq
    %v5856 = vshrl.u32 %v5855, 7
    %v5857 = vsub.s32 %v5854, %v5856
    %v5858 = vrot.slane %v5844, %v5857
    %v5859 = vcombine.low %v5794, %v5810
    %v5860 = vcombine.high %v5794, %v5810
    %v5862 = vunpack.c.l.s4 1934713408
    %v5863 = vunpack.c.0.s8 %v5862
    %v5864 = vlaneseq
    %v5865 = vshrl.u32 %v5864, 7
    %v5866 = vsub.s32 %v5863, %v5865
    %v5867 = vrot.slane %v5859, %v5866
    %v5869 = vunpack.c.l.s4 1934713408
    %v5870 = vunpack.c.0.s8 %v5869
    %v5871 = vlaneseq
    %v5872 = vshrl.u32 %v5871, 7
    %v5873 = vsub.s32 %v5870, %v5872
    %v5874 = vrot.slane %v5860, %v5873
    %v5875 = vcombine.low %v5819, %v5851
    %v5876 = vcombine.high %v5819, %v5851
    %v5877 = vcombine.low %v5826, %v5858
    %v5878 = vcombine.high %v5826, %v5858
    %v5879 = vcombine.low %v5835, %v5867
    %v5880 = vcombine.high %v5835, %v5867
    %v5881 = vcombine.low %v5842, %v5874
    %v5882 = vcombine.high %v5842, %v5874
    %v5883 = vcombine.low %v3505, %v3639
    %v5884 = vcombine.high %v3505, %v3639
    %v5886 = vunpack.c.l.s4 1983009808
    %v5887 = vunpack.c.0.s8 %v5886
    %v5888 = vlaneseq
    %v5889 = vshrl.u32 %v5888, 7
    %v5890 = vsub.s32 %v5887, %v5889
    %v5891 = vrot.slane %v5883, %v5890
    %v5893 = vunpack.c.l.s4 1983009808
    %v5894 = vunpack.c.0.s8 %v5893
    %v5895 = vlaneseq
    %v5896 = vshrl.u32 %v5895, 7
    %v5897 = vsub.s32 %v5894, %v5896
    %v5898 = vrot.slane %v5884, %v5897
    %v5899 = vcombine.low %v3572, %v3706
    %v5900 = vcombine.high %v3572, %v3706
    %v5902 = vunpack.c.l.s4 1983009808
    %v5903 = vunpack.c.0.s8 %v5902
    %v5904 = vlaneseq
    %v5905 = vshrl.u32 %v5904, 7
    %v5906 = vsub.s32 %v5903, %v5905
    %v5907 = vrot.slane %v5899, %v5906
    %v5909 = vunpack.c.l.s4 1983009808
    %v5910 = vunpack.c.0.s8 %v5909
    %v5911 = vlaneseq
    %v5912 = vshrl.u32 %v5911, 7
    %v5913 = vsub.s32 %v5910, %v5912
    %v5914 = vrot.slane %v5900, %v5913
    %v5915 = vcombine.low %v3773, %v3907
    %v5916 = vcombine.high %v3773, %v3907
    %v5918 = vunpack.c.l.s4 1983009808
    %v5919 = vunpack.c.0.s8 %v5918
    %v5920 = vlaneseq
    %v5921 = vshrl.u32 %v5920, 7
    %v5922 = vsub.s32 %v5919, %v5921
    %v5923 = vrot.slane %v5915, %v5922
    %v5925 = vunpack.c.l.s4 1983009808
    %v5926 = vunpack.c.0.s8 %v5925
    %v5927 = vlaneseq
    %v5928 = vshrl.u32 %v5927, 7
    %v5929 = vsub.s32 %v5926, %v5928
    %v5930 = vrot.slane %v5916, %v5929
    %v5931 = vcombine.low %v3840, %v3974
    %v5932 = vcombine.high %v3840, %v3974
    %v5934 = vunpack.c.l.s4 1983009808
    %v5935 = vunpack.c.0.s8 %v5934
    %v5936 = vlaneseq
    %v5937 = vshrl.u32 %v5936, 7
    %v5938 = vsub.s32 %v5935, %v5937
    %v5939 = vrot.slane %v5931, %v5938
    %v5941 = vunpack.c.l.s4 1983009808
    %v5942 = vunpack.c.0.s8 %v5941
    %v5943 = vlaneseq
    %v5944 = vshrl.u32 %v5943, 7
    %v5945 = vsub.s32 %v5942, %v5944
    %v5946 = vrot.slane %v5932, %v5945
    %v5947 = vcombine.low %v5891, %v5907
    %v5948 = vcombine.high %v5891, %v5907
    %v5950 = vunpack.c.l.s4 1934713408
    %v5951 = vunpack.c.0.s8 %v5950
    %v5952 = vlaneseq
    %v5953 = vshrl.u32 %v5952, 7
    %v5954 = vsub.s32 %v5951, %v5953
    %v5955 = vrot.slane %v5947, %v5954
    %v5957 = vunpack.c.l.s4 1934713408
    %v5958 = vunpack.c.0.s8 %v5957
    %v5959 = vlaneseq
    %v5960 = vshrl.u32 %v5959, 7
    %v5961 = vsub.s32 %v5958, %v5960
    %v5962 = vrot.slane %v5948, %v5961
    %v5963 = vcombine.low %v5898, %v5914
    %v5964 = vcombine.high %v5898, %v5914
    %v5966 = vunpack.c.l.s4 1934713408
    %v5967 = vunpack.c.0.s8 %v5966
    %v5968 = vlaneseq
    %v5969 = vshrl.u32 %v5968, 7
    %v5970 = vsub.s32 %v5967, %v5969
    %v5971 = vrot.slane %v5963, %v5970
    %v5973 = vunpack.c.l.s4 1934713408
    %v5974 = vunpack.c.0.s8 %v5973
    %v5975 = vlaneseq
    %v5976 = vshrl.u32 %v5975, 7
    %v5977 = vsub.s32 %v5974, %v5976
    %v5978 = vrot.slane %v5964, %v5977
    %v5979 = vcombine.low %v5923, %v5939
    %v5980 = vcombine.high %v5923, %v5939
    %v5982 = vunpack.c.l.s4 1934713408
    %v5983 = vunpack.c.0.s8 %v5982
    %v5984 = vlaneseq
    %v5985 = vshrl.u32 %v5984, 7
    %v5986 = vsub.s32 %v5983, %v5985
    %v5987 = vrot.slane %v5979, %v5986
    %v5989 = vunpack.c.l.s4 1934713408
    %v5990 = vunpack.c.0.s8 %v5989
    %v5991 = vlaneseq
    %v5992 = vshrl.u32 %v5991, 7
    %v5993 = vsub.s32 %v5990, %v5992
    %v5994 = vrot.slane %v5980, %v5993
    %v5995 = vcombine.low %v5930, %v5946
    %v5996 = vcombine.high %v5930, %v5946
    %v5998 = vunpack.c.l.s4 1934713408
    %v5999 = vunpack.c.0.s8 %v5998
    %v6000 = vlaneseq
    %v6001 = vshrl.u32 %v6000, 7
    %v6002 = vsub.s32 %v5999, %v6001
    %v6003 = vrot.slane %v5995, %v6002
    %v6005 = vunpack.c.l.s4 1934713408
    %v6006 = vunpack.c.0.s8 %v6005
    %v6007 = vlaneseq
    %v6008 = vshrl.u32 %v6007, 7
    %v6009 = vsub.s32 %v6006, %v6008
    %v6010 = vrot.slane %v5996, %v6009
    %v6011 = vcombine.low %v5955, %v5987
    %v6012 = vcombine.high %v5955, %v5987
    %v6013 = vcombine.low %v5962, %v5994
    %v6014 = vcombine.high %v5962, %v5994
    %v6015 = vcombine.low %v5971, %v6003
    %v6016 = vcombine.high %v5971, %v6003
    %v6017 = vcombine.low %v5978, %v6010
    %v6018 = vcombine.high %v5978, %v6010
    %v6019 = vcombine.low %v3509, %v3643
    %v6020 = vcombine.high %v3509, %v3643
    %v6022 = vunpack.c.l.s4 1983009808
    %v6023 = vunpack.c.0.s8 %v6022
    %v6024 = vlaneseq
    %v6025 = vshrl.u32 %v6024, 7
    %v6026 = vsub.s32 %v6023, %v6025
    %v6027 = vrot.slane %v6019, %v6026
    %v6029 = vunpack.c.l.s4 1983009808
    %v6030 = vunpack.c.0.s8 %v6029
    %v6031 = vlaneseq
    %v6032 = vshrl.u32 %v6031, 7
    %v6033 = vsub.s32 %v6030, %v6032
    %v6034 = vrot.slane %v6020, %v6033
    %v6035 = vcombine.low %v3576, %v3710
    %v6036 = vcombine.high %v3576, %v3710
    %v6038 = vunpack.c.l.s4 1983009808
    %v6039 = vunpack.c.0.s8 %v6038
    %v6040 = vlaneseq
    %v6041 = vshrl.u32 %v6040, 7
    %v6042 = vsub.s32 %v6039, %v6041
    %v6043 = vrot.slane %v6035, %v6042
    %v6045 = vunpack.c.l.s4 1983009808
    %v6046 = vunpack.c.0.s8 %v6045
    %v6047 = vlaneseq
    %v6048 = vshrl.u32 %v6047, 7
    %v6049 = vsub.s32 %v6046, %v6048
    %v6050 = vrot.slane %v6036, %v6049
    %v6051 = vcombine.low %v3777, %v3911
    %v6052 = vcombine.high %v3777, %v3911
    %v6054 = vunpack.c.l.s4 1983009808
    %v6055 = vunpack.c.0.s8 %v6054
    %v6056 = vlaneseq
    %v6057 = vshrl.u32 %v6056, 7
    %v6058 = vsub.s32 %v6055, %v6057
    %v6059 = vrot.slane %v6051, %v6058
    %v6061 = vunpack.c.l.s4 1983009808
    %v6062 = vunpack.c.0.s8 %v6061
    %v6063 = vlaneseq
    %v6064 = vshrl.u32 %v6063, 7
    %v6065 = vsub.s32 %v6062, %v6064
    %v6066 = vrot.slane %v6052, %v6065
    %v6067 = vcombine.low %v3844, %v3978
    %v6068 = vcombine.high %v3844, %v3978
    %v6070 = vunpack.c.l.s4 1983009808
    %v6071 = vunpack.c.0.s8 %v6070
    %v6072 = vlaneseq
    %v6073 = vshrl.u32 %v6072, 7
    %v6074 = vsub.s32 %v6071, %v6073
    %v6075 = vrot.slane %v6067, %v6074
    %v6077 = vunpack.c.l.s4 1983009808
    %v6078 = vunpack.c.0.s8 %v6077
    %v6079 = vlaneseq
    %v6080 = vshrl.u32 %v6079, 7
    %v6081 = vsub.s32 %v6078, %v6080
    %v6082 = vrot.slane %v6068, %v6081
    %v6083 = vcombine.low %v6027, %v6043
    %v6084 = vcombine.high %v6027, %v6043
    %v6086 = vunpack.c.l.s4 1934713408
    %v6087 = vunpack.c.0.s8 %v6086
    %v6088 = vlaneseq
    %v6089 = vshrl.u32 %v6088, 7
    %v6090 = vsub.s32 %v6087, %v6089
    %v6091 = vrot.slane %v6083, %v6090
    %v6093 = vunpack.c.l.s4 1934713408
    %v6094 = vunpack.c.0.s8 %v6093
    %v6095 = vlaneseq
    %v6096 = vshrl.u32 %v6095, 7
    %v6097 = vsub.s32 %v6094, %v6096
    %v6098 = vrot.slane %v6084, %v6097
    %v6099 = vcombine.low %v6034, %v6050
    %v6100 = vcombine.high %v6034, %v6050
    %v6102 = vunpack.c.l.s4 1934713408
    %v6103 = vunpack.c.0.s8 %v6102
    %v6104 = vlaneseq
    %v6105 = vshrl.u32 %v6104, 7
    %v6106 = vsub.s32 %v6103, %v6105
    %v6107 = vrot.slane %v6099, %v6106
    %v6109 = vunpack.c.l.s4 1934713408
    %v6110 = vunpack.c.0.s8 %v6109
    %v6111 = vlaneseq
    %v6112 = vshrl.u32 %v6111, 7
    %v6113 = vsub.s32 %v6110, %v6112
    %v6114 = vrot.slane %v6100, %v6113
    %v6115 = vcombine.low %v6059, %v6075
    %v6116 = vcombine.high %v6059, %v6075
    %v6118 = vunpack.c.l.s4 1934713408
    %v6119 = vunpack.c.0.s8 %v6118
    %v6120 = vlaneseq
    %v6121 = vshrl.u32 %v6120, 7
    %v6122 = vsub.s32 %v6119, %v6121
    %v6123 = vrot.slane %v6115, %v6122
    %v6125 = vunpack.c.l.s4 1934713408
    %v6126 = vunpack.c.0.s8 %v6125
    %v6127 = vlaneseq
    %v6128 = vshrl.u32 %v6127, 7
    %v6129 = vsub.s32 %v6126, %v6128
    %v6130 = vrot.slane %v6116, %v6129
    %v6131 = vcombine.low %v6066, %v6082
    %v6132 = vcombine.high %v6066, %v6082
    %v6134 = vunpack.c.l.s4 1934713408
    %v6135 = vunpack.c.0.s8 %v6134
    %v6136 = vlaneseq
    %v6137 = vshrl.u32 %v6136, 7
    %v6138 = vsub.s32 %v6135, %v6137
    %v6139 = vrot.slane %v6131, %v6138
    %v6141 = vunpack.c.l.s4 1934713408
    %v6142 = vunpack.c.0.s8 %v6141
    %v6143 = vlaneseq
    %v6144 = vshrl.u32 %v6143, 7
    %v6145 = vsub.s32 %v6142, %v6144
    %v6146 = vrot.slane %v6132, %v6145
    %v6147 = vcombine.low %v6091, %v6123
    %v6148 = vcombine.high %v6091, %v6123
    %v6149 = vcombine.low %v6098, %v6130
    %v6150 = vcombine.high %v6098, %v6130
    %v6151 = vcombine.low %v6107, %v6139
    %v6152 = vcombine.high %v6107, %v6139
    %v6153 = vcombine.low %v6114, %v6146
    %v6154 = vcombine.high %v6114, %v6146
    %6155 = vrot.lane.b32.xlu0 %v4108, 2
    %v6156 = vpop.permute.xlu0 %6155
    %6157 = vrot.lane.b32.xlu0 %v4109, 4
    %v6158 = vpop.permute.xlu0 %6157
    %6159 = vrot.lane.b32.xlu0 %v4110, 6
    %v6160 = vpop.permute.xlu0 %6159
    %6161 = vrot.lane.b32.xlu0 %v4111, 8
    %v6162 = vpop.permute.xlu0 %6161
    %6163 = vrot.lane.b32.xlu0 %v4112, 10
    %v6164 = vpop.permute.xlu0 %6163
    %6165 = vrot.lane.b32.xlu0 %v4113, 12
    %v6166 = vpop.permute.xlu0 %6165
    %6167 = vrot.lane.b32.xlu0 %v4114, 14
    %v6168 = vpop.permute.xlu0 %6167
    %6169 = vrot.lane.b32.xlu0 %v4243, 16
    %v6170 = vpop.permute.xlu0 %6169
    %6171 = vrot.lane.b32.xlu0 %v4244, 18
    %v6172 = vpop.permute.xlu0 %6171
    %6173 = vrot.lane.b32.xlu0 %v4245, 20
    %v6174 = vpop.permute.xlu0 %6173
    %6175 = vrot.lane.b32.xlu0 %v4246, 22
    %v6176 = vpop.permute.xlu0 %6175
    %6177 = vrot.lane.b32.xlu0 %v4247, 24
    %v6178 = vpop.permute.xlu0 %6177
    %6179 = vrot.lane.b32.xlu0 %v4248, 26
    %v6180 = vpop.permute.xlu0 %6179
    %6181 = vrot.lane.b32.xlu0 %v4249, 28
    %v6182 = vpop.permute.xlu0 %6181
    %6183 = vrot.lane.b32.xlu0 %v4250, 30
    %v6184 = vpop.permute.xlu0 %6183
    %6185 = vrot.lane.b32.xlu0 %v4379, 32
    %v6186 = vpop.permute.xlu0 %6185
    %6187 = vrot.lane.b32.xlu0 %v4380, 34
    %v6188 = vpop.permute.xlu0 %6187
    %6189 = vrot.lane.b32.xlu0 %v4381, 36
    %v6190 = vpop.permute.xlu0 %6189
    %6191 = vrot.lane.b32.xlu0 %v4382, 38
    %v6192 = vpop.permute.xlu0 %6191
    %6193 = vrot.lane.b32.xlu0 %v4383, 40
    %v6194 = vpop.permute.xlu0 %6193
    %6195 = vrot.lane.b32.xlu0 %v4384, 42
    %v6196 = vpop.permute.xlu0 %6195
    %6197 = vrot.lane.b32.xlu0 %v4385, 44
    %v6198 = vpop.permute.xlu0 %6197
    %6199 = vrot.lane.b32.xlu0 %v4386, 46
    %v6200 = vpop.permute.xlu0 %6199
    %6201 = vrot.lane.b32.xlu0 %v4515, 48
    %v6202 = vpop.permute.xlu0 %6201
    %6203 = vrot.lane.b32.xlu0 %v4516, 50
    %v6204 = vpop.permute.xlu0 %6203
    %6205 = vrot.lane.b32.xlu0 %v4517, 52
    %v6206 = vpop.permute.xlu0 %6205
    %6207 = vrot.lane.b32.xlu0 %v4518, 54
    %v6208 = vpop.permute.xlu0 %6207
    %6209 = vrot.lane.b32.xlu0 %v4519, 56
    %v6210 = vpop.permute.xlu0 %6209
    %6211 = vrot.lane.b32.xlu0 %v4520, 58
    %v6212 = vpop.permute.xlu0 %6211
    %6213 = vrot.lane.b32.xlu0 %v4521, 60
    %v6214 = vpop.permute.xlu0 %6213
    %6215 = vrot.lane.b32.xlu0 %v4522, 62
    %v6216 = vpop.permute.xlu0 %6215
    %6217 = vrot.lane.b32.xlu0 %v4651, 64
    %v6218 = vpop.permute.xlu0 %6217
    %6219 = vrot.lane.b32.xlu0 %v4652, 66
    %v6220 = vpop.permute.xlu0 %6219
    %6221 = vrot.lane.b32.xlu0 %v4653, 68
    %v6222 = vpop.permute.xlu0 %6221
    %6223 = vrot.lane.b32.xlu0 %v4654, 70
    %v6224 = vpop.permute.xlu0 %6223
    %6225 = vrot.lane.b32.xlu0 %v4655, 72
    %v6226 = vpop.permute.xlu0 %6225
    %6227 = vrot.lane.b32.xlu0 %v4656, 74
    %v6228 = vpop.permute.xlu0 %6227
    %6229 = vrot.lane.b32.xlu0 %v4657, 76
    %v6230 = vpop.permute.xlu0 %6229
    %6231 = vrot.lane.b32.xlu0 %v4658, 78
    %v6232 = vpop.permute.xlu0 %6231
    %6233 = vrot.lane.b32.xlu0 %v4787, 80
    %v6234 = vpop.permute.xlu0 %6233
    %6235 = vrot.lane.b32.xlu0 %v4788, 82
    %v6236 = vpop.permute.xlu0 %6235
    %6237 = vrot.lane.b32.xlu0 %v4789, 84
    %v6238 = vpop.permute.xlu0 %6237
    %6239 = vrot.lane.b32.xlu0 %v4790, 86
    %v6240 = vpop.permute.xlu0 %6239
    %6241 = vrot.lane.b32.xlu0 %v4791, 88
    %v6242 = vpop.permute.xlu0 %6241
    %6243 = vrot.lane.b32.xlu0 %v4792, 90
    %v6244 = vpop.permute.xlu0 %6243
    %6245 = vrot.lane.b32.xlu0 %v4793, 92
    %v6246 = vpop.permute.xlu0 %6245
    %6247 = vrot.lane.b32.xlu0 %v4794, 94
    %v6248 = vpop.permute.xlu0 %6247
    %6249 = vrot.lane.b32.xlu0 %v4923, 96
    %v6250 = vpop.permute.xlu0 %6249
    %6251 = vrot.lane.b32.xlu0 %v4924, 98
    %v6252 = vpop.permute.xlu0 %6251
    %6253 = vrot.lane.b32.xlu0 %v4925, 100
    %v6254 = vpop.permute.xlu0 %6253
    %6255 = vrot.lane.b32.xlu0 %v4926, 102
    %v6256 = vpop.permute.xlu0 %6255
    %6257 = vrot.lane.b32.xlu0 %v4927, 104
    %v6258 = vpop.permute.xlu0 %6257
    %6259 = vrot.lane.b32.xlu0 %v4928, 106
    %v6260 = vpop.permute.xlu0 %6259
    %6261 = vrot.lane.b32.xlu0 %v4929, 108
    %v6262 = vpop.permute.xlu0 %6261
    %6263 = vrot.lane.b32.xlu0 %v4930, 110
    %v6264 = vpop.permute.xlu0 %6263
    %6265 = vrot.lane.b32.xlu0 %v5059, 112
    %v6266 = vpop.permute.xlu0 %6265
    %6267 = vrot.lane.b32.xlu0 %v5060, 114
    %v6268 = vpop.permute.xlu0 %6267
    %6269 = vrot.lane.b32.xlu0 %v5061, 116
    %v6270 = vpop.permute.xlu0 %6269
    %6271 = vrot.lane.b32.xlu0 %v5062, 118
    %v6272 = vpop.permute.xlu0 %6271
    %6273 = vrot.lane.b32.xlu0 %v5063, 120
    %v6274 = vpop.permute.xlu0 %6273
    %6275 = vrot.lane.b32.xlu0 %v5064, 122
    %v6276 = vpop.permute.xlu0 %6275
    %6277 = vrot.lane.b32.xlu0 %v5065, 124
    %v6278 = vpop.permute.xlu0 %6277
    %6279 = vrot.lane.b32.xlu0 %v5066, 126
    %v6280 = vpop.permute.xlu0 %6279
    %6281 = vrot.lane.b32.xlu0 %v5196, 2
    %v6282 = vpop.permute.xlu0 %6281
    %6283 = vrot.lane.b32.xlu0 %v5197, 4
    %v6284 = vpop.permute.xlu0 %6283
    %6285 = vrot.lane.b32.xlu0 %v5198, 6
    %v6286 = vpop.permute.xlu0 %6285
    %6287 = vrot.lane.b32.xlu0 %v5199, 8
    %v6288 = vpop.permute.xlu0 %6287
    %6289 = vrot.lane.b32.xlu0 %v5200, 10
    %v6290 = vpop.permute.xlu0 %6289
    %6291 = vrot.lane.b32.xlu0 %v5201, 12
    %v6292 = vpop.permute.xlu0 %6291
    %6293 = vrot.lane.b32.xlu0 %v5202, 14
    %v6294 = vpop.permute.xlu0 %6293
    %6295 = vrot.lane.b32.xlu0 %v5331, 16
    %v6296 = vpop.permute.xlu0 %6295
    %6297 = vrot.lane.b32.xlu0 %v5332, 18
    %v6298 = vpop.permute.xlu0 %6297
    %6299 = vrot.lane.b32.xlu0 %v5333, 20
    %v6300 = vpop.permute.xlu0 %6299
    %6301 = vrot.lane.b32.xlu0 %v5334, 22
    %v6302 = vpop.permute.xlu0 %6301
    %6303 = vrot.lane.b32.xlu0 %v5335, 24
    %v6304 = vpop.permute.xlu0 %6303
    %6305 = vrot.lane.b32.xlu0 %v5336, 26
    %v6306 = vpop.permute.xlu0 %6305
    %6307 = vrot.lane.b32.xlu0 %v5337, 28
    %v6308 = vpop.permute.xlu0 %6307
    %6309 = vrot.lane.b32.xlu0 %v5338, 30
    %v6310 = vpop.permute.xlu0 %6309
    %6311 = vrot.lane.b32.xlu0 %v5467, 32
    %v6312 = vpop.permute.xlu0 %6311
    %6313 = vrot.lane.b32.xlu0 %v5468, 34
    %v6314 = vpop.permute.xlu0 %6313
    %6315 = vrot.lane.b32.xlu0 %v5469, 36
    %v6316 = vpop.permute.xlu0 %6315
    %6317 = vrot.lane.b32.xlu0 %v5470, 38
    %v6318 = vpop.permute.xlu0 %6317
    %6319 = vrot.lane.b32.xlu0 %v5471, 40
    %v6320 = vpop.permute.xlu0 %6319
    %6321 = vrot.lane.b32.xlu0 %v5472, 42
    %v6322 = vpop.permute.xlu0 %6321
    %6323 = vrot.lane.b32.xlu0 %v5473, 44
    %v6324 = vpop.permute.xlu0 %6323
    %6325 = vrot.lane.b32.xlu0 %v5474, 46
    %v6326 = vpop.permute.xlu0 %6325
    %6327 = vrot.lane.b32.xlu0 %v5603, 48
    %v6328 = vpop.permute.xlu0 %6327
    %6329 = vrot.lane.b32.xlu0 %v5604, 50
    %v6330 = vpop.permute.xlu0 %6329
    %6331 = vrot.lane.b32.xlu0 %v5605, 52
    %v6332 = vpop.permute.xlu0 %6331
    %6333 = vrot.lane.b32.xlu0 %v5606, 54
    %v6334 = vpop.permute.xlu0 %6333
    %6335 = vrot.lane.b32.xlu0 %v5607, 56
    %v6336 = vpop.permute.xlu0 %6335
    %6337 = vrot.lane.b32.xlu0 %v5608, 58
    %v6338 = vpop.permute.xlu0 %6337
    %6339 = vrot.lane.b32.xlu0 %v5609, 60
    %v6340 = vpop.permute.xlu0 %6339
    %6341 = vrot.lane.b32.xlu0 %v5610, 62
    %v6342 = vpop.permute.xlu0 %6341
    %6343 = vrot.lane.b32.xlu0 %v5739, 64
    %v6344 = vpop.permute.xlu0 %6343
    %6345 = vrot.lane.b32.xlu0 %v5740, 66
    %v6346 = vpop.permute.xlu0 %6345
    %6347 = vrot.lane.b32.xlu0 %v5741, 68
    %v6348 = vpop.permute.xlu0 %6347
    %6349 = vrot.lane.b32.xlu0 %v5742, 70
    %v6350 = vpop.permute.xlu0 %6349
    %6351 = vrot.lane.b32.xlu0 %v5743, 72
    %v6352 = vpop.permute.xlu0 %6351
    %6353 = vrot.lane.b32.xlu0 %v5744, 74
    %v6354 = vpop.permute.xlu0 %6353
    %6355 = vrot.lane.b32.xlu0 %v5745, 76
    %v6356 = vpop.permute.xlu0 %6355
    %6357 = vrot.lane.b32.xlu0 %v5746, 78
    %v6358 = vpop.permute.xlu0 %6357
    %6359 = vrot.lane.b32.xlu0 %v5875, 80
    %v6360 = vpop.permute.xlu0 %6359
    %6361 = vrot.lane.b32.xlu0 %v5876, 82
    %v6362 = vpop.permute.xlu0 %6361
    %6363 = vrot.lane.b32.xlu0 %v5877, 84
    %v6364 = vpop.permute.xlu0 %6363
    %6365 = vrot.lane.b32.xlu0 %v5878, 86
    %v6366 = vpop.permute.xlu0 %6365
    %6367 = vrot.lane.b32.xlu0 %v5879, 88
    %v6368 = vpop.permute.xlu0 %6367
    %6369 = vrot.lane.b32.xlu0 %v5880, 90
    %v6370 = vpop.permute.xlu0 %6369
    %6371 = vrot.lane.b32.xlu0 %v5881, 92
    %v6372 = vpop.permute.xlu0 %6371
    %6373 = vrot.lane.b32.xlu0 %v5882, 94
    %v6374 = vpop.permute.xlu0 %6373
    %6375 = vrot.lane.b32.xlu0 %v6011, 96
    %v6376 = vpop.permute.xlu0 %6375
    %6377 = vrot.lane.b32.xlu0 %v6012, 98
    %v6378 = vpop.permute.xlu0 %6377
    %6379 = vrot.lane.b32.xlu0 %v6013, 100
    %v6380 = vpop.permute.xlu0 %6379
    %6381 = vrot.lane.b32.xlu0 %v6014, 102
    %v6382 = vpop.permute.xlu0 %6381
    %6383 = vrot.lane.b32.xlu0 %v6015, 104
    %v6384 = vpop.permute.xlu0 %6383
    %6385 = vrot.lane.b32.xlu0 %v6016, 106
    %v6386 = vpop.permute.xlu0 %6385
    %6387 = vrot.lane.b32.xlu0 %v6017, 108
    %v6388 = vpop.permute.xlu0 %6387
    %6389 = vrot.lane.b32.xlu0 %v6018, 110
    %v6390 = vpop.permute.xlu0 %6389
    %6391 = vrot.lane.b32.xlu0 %v6147, 112
    %v6392 = vpop.permute.xlu0 %6391
    %6393 = vrot.lane.b32.xlu0 %v6148, 114
    %v6394 = vpop.permute.xlu0 %6393
    %6395 = vrot.lane.b32.xlu0 %v6149, 116
    %v6396 = vpop.permute.xlu0 %6395
    %6397 = vrot.lane.b32.xlu0 %v6150, 118
    %v6398 = vpop.permute.xlu0 %6397
    %6399 = vrot.lane.b32.xlu0 %v6151, 120
    %v6400 = vpop.permute.xlu0 %6399
    %6401 = vrot.lane.b32.xlu0 %v6152, 122
    %v6402 = vpop.permute.xlu0 %6401
    %6403 = vrot.lane.b32.xlu0 %v6153, 124
    %v6404 = vpop.permute.xlu0 %6403
    %6405 = vrot.lane.b32.xlu0 %v6154, 126
    %v6406 = vpop.permute.xlu0 %6405
    %v6407 = vsel %vm3254, %v4107, %v6156
    %v6408 = vsel %vm3256, %v6407, %v6158
    %v6409 = vsel %vm3258, %v6408, %v6160
    %v6410 = vsel %vm3260, %v6409, %v6162
    %v6411 = vsel %vm3262, %v6410, %v6164
    %v6412 = vsel %vm3264, %v6411, %v6166
    %v6413 = vsel %vm3266, %v6412, %v6168
    %v6414 = vsel %vm3268, %v6413, %v6170
    %v6415 = vsel %vm3270, %v6414, %v6172
    %v6416 = vsel %vm3272, %v6415, %v6174
    %v6417 = vsel %vm3274, %v6416, %v6176
    %v6418 = vsel %vm3276, %v6417, %v6178
    %v6419 = vsel %vm3278, %v6418, %v6180
    %v6420 = vsel %vm3280, %v6419, %v6182
    %v6421 = vsel %vm3282, %v6420, %v6184
    %v6422 = vsel %vm3284, %v6421, %v6186
    %v6423 = vsel %vm3286, %v6422, %v6188
    %v6424 = vsel %vm3288, %v6423, %v6190
    %v6425 = vsel %vm3290, %v6424, %v6192
    %v6426 = vsel %vm3292, %v6425, %v6194
    %v6427 = vsel %vm3294, %v6426, %v6196
    %v6428 = vsel %vm3296, %v6427, %v6198
    %v6429 = vsel %vm3298, %v6428, %v6200
    %v6430 = vsel %vm3300, %v6429, %v6202
    %v6431 = vsel %vm3302, %v6430, %v6204
    %v6432 = vsel %vm3304, %v6431, %v6206
    %v6433 = vsel %vm3306, %v6432, %v6208
    %v6434 = vsel %vm3308, %v6433, %v6210
    %v6435 = vsel %vm3310, %v6434, %v6212
    %v6436 = vsel %vm3312, %v6435, %v6214
    %v6437 = vsel %vm3314, %v6436, %v6216
    %v6438 = vsel %vm3316, %v6437, %v6218
    %v6439 = vsel %vm3318, %v6438, %v6220
    %v6440 = vsel %vm3320, %v6439, %v6222
    %v6441 = vsel %vm3322, %v6440, %v6224
    %v6442 = vsel %vm3324, %v6441, %v6226
    %v6443 = vsel %vm3326, %v6442, %v6228
    %v6444 = vsel %vm3328, %v6443, %v6230
    %v6445 = vsel %vm3330, %v6444, %v6232
    %v6446 = vsel %vm3332, %v6445, %v6234
    %v6447 = vsel %vm3334, %v6446, %v6236
    %v6448 = vsel %vm3336, %v6447, %v6238
    %v6449 = vsel %vm3338, %v6448, %v6240
    %v6450 = vsel %vm3340, %v6449, %v6242
    %v6451 = vsel %vm3342, %v6450, %v6244
    %v6452 = vsel %vm3344, %v6451, %v6246
    %v6453 = vsel %vm3346, %v6452, %v6248
    %v6454 = vsel %vm3348, %v6453, %v6250
    %v6455 = vsel %vm3350, %v6454, %v6252
    %v6456 = vsel %vm3352, %v6455, %v6254
    %v6457 = vsel %vm3354, %v6456, %v6256
    %v6458 = vsel %vm3356, %v6457, %v6258
    %v6459 = vsel %vm3358, %v6458, %v6260
    %v6460 = vsel %vm3360, %v6459, %v6262
    %v6461 = vsel %vm3362, %v6460, %v6264
    %v6462 = vsel %vm3364, %v6461, %v6266
    %v6463 = vsel %vm3366, %v6462, %v6268
    %v6464 = vsel %vm3368, %v6463, %v6270
    %v6465 = vsel %vm3370, %v6464, %v6272
    %v6466 = vsel %vm3372, %v6465, %v6274
    %v6467 = vsel %vm3374, %v6466, %v6276
    %v6468 = vsel %vm3376, %v6467, %v6278
    %v6469 = vsel %vm3378, %v6468, %v6280
    %v6470 = vsel %vm3254, %v5195, %v6282
    %v6471 = vsel %vm3256, %v6470, %v6284
    %v6472 = vsel %vm3258, %v6471, %v6286
    %v6473 = vsel %vm3260, %v6472, %v6288
    %v6474 = vsel %vm3262, %v6473, %v6290
    %v6475 = vsel %vm3264, %v6474, %v6292
    %v6476 = vsel %vm3266, %v6475, %v6294
    %v6477 = vsel %vm3268, %v6476, %v6296
    %v6478 = vsel %vm3270, %v6477, %v6298
    %v6479 = vsel %vm3272, %v6478, %v6300
    %v6480 = vsel %vm3274, %v6479, %v6302
    %v6481 = vsel %vm3276, %v6480, %v6304
    %v6482 = vsel %vm3278, %v6481, %v6306
    %v6483 = vsel %vm3280, %v6482, %v6308
    %v6484 = vsel %vm3282, %v6483, %v6310
    %v6485 = vsel %vm3284, %v6484, %v6312
    %v6486 = vsel %vm3286, %v6485, %v6314
    %v6487 = vsel %vm3288, %v6486, %v6316
    %v6488 = vsel %vm3290, %v6487, %v6318
    %v6489 = vsel %vm3292, %v6488, %v6320
    %v6490 = vsel %vm3294, %v6489, %v6322
    %v6491 = vsel %vm3296, %v6490, %v6324
    %v6492 = vsel %vm3298, %v6491, %v6326
    %v6493 = vsel %vm3300, %v6492, %v6328
    %v6494 = vsel %vm3302, %v6493, %v6330
    %v6495 = vsel %vm3304, %v6494, %v6332
    %v6496 = vsel %vm3306, %v6495, %v6334
    %v6497 = vsel %vm3308, %v6496, %v6336
    %v6498 = vsel %vm3310, %v6497, %v6338
    %v6499 = vsel %vm3312, %v6498, %v6340
    %v6500 = vsel %vm3314, %v6499, %v6342
    %v6501 = vsel %vm3316, %v6500, %v6344
    %v6502 = vsel %vm3318, %v6501, %v6346
    %v6503 = vsel %vm3320, %v6502, %v6348
    %v6504 = vsel %vm3322, %v6503, %v6350
    %v6505 = vsel %vm3324, %v6504, %v6352
    %v6506 = vsel %vm3326, %v6505, %v6354
    %v6507 = vsel %vm3328, %v6506, %v6356
    %v6508 = vsel %vm3330, %v6507, %v6358
    %v6509 = vsel %vm3332, %v6508, %v6360
    %v6510 = vsel %vm3334, %v6509, %v6362
    %v6511 = vsel %vm3336, %v6510, %v6364
    %v6512 = vsel %vm3338, %v6511, %v6366
    %v6513 = vsel %vm3340, %v6512, %v6368
    %v6514 = vsel %vm3342, %v6513, %v6370
    %v6515 = vsel %vm3344, %v6514, %v6372
    %v6516 = vsel %vm3346, %v6515, %v6374
    %v6517 = vsel %vm3348, %v6516, %v6376
    %v6518 = vsel %vm3350, %v6517, %v6378
    %v6519 = vsel %vm3352, %v6518, %v6380
    %v6520 = vsel %vm3354, %v6519, %v6382
    %v6521 = vsel %vm3356, %v6520, %v6384
    %v6522 = vsel %vm3358, %v6521, %v6386
    %v6523 = vsel %vm3360, %v6522, %v6388
    %v6524 = vsel %vm3362, %v6523, %v6390
    %v6525 = vsel %vm3364, %v6524, %v6392
    %v6526 = vsel %vm3366, %v6525, %v6394
    %v6527 = vsel %vm3368, %v6526, %v6396
    %v6528 = vsel %vm3370, %v6527, %v6398
    %v6529 = vsel %vm3372, %v6528, %v6400
    %v6530 = vsel %vm3374, %v6529, %v6402
    %v6531 = vsel %vm3376, %v6530, %v6404
    %v6532 = vsel %vm3378, %v6531, %v6406
    %v6533 = vlaneseq
    %v6534 = vand.u32 %v6533, 127
    %v6535 = vadd.s32 %v6534, 128
    %vm6536 = vcmp.lt.s32.totalorder %v6534, 0
    %v6537 = vsub.s32 0, %v6534
    %v6538 = vsel %vm6536, %v6537, %v6534
    %v6539 = vshrl.u32 %v6538, 8
    %v6540 = vand.u32 %v6538, 255
    %v6541 = vsub.s32 0, %v6540
    %v6542 = vsel %vm6536, %v6541, %v6540
    %vm6543 = vcmp.lt.s32.totalorder %v6535, 0
    %v6544 = vsub.s32 0, %v6535
    %v6545 = vsel %vm6543, %v6544, %v6535
    %v6546 = vshrl.u32 %v6545, 8
    %v6547 = vand.u32 %v6545, 255
    %v6548 = vsub.s32 0, %v6547
    %v6549 = vsel %vm6543, %v6548, %v6547
    %vm6550 = vcmp.ne.s32.totalorder %v6542, 0
    %vm6551 = vcmp.ne.s32.totalorder %v6549, 0
    %vm6552 = vcmp.lt.s32.totalorder %v6542, 0
    %vm6553 = vcmp.lt.s32.totalorder %v6549, 0
    %vm6554 = vmand %vm6552, %vm6550
    %vm6555 = vmand %vm6553, %vm6551
    %v6556 = vadd.s32 %v6542, 256
    %v6557 = vadd.s32 %v6549, 256
    %v6558 = vsel %vm6554, %v6556, %v6542
    %v6559 = vsel %vm6555, %v6557, %v6549
    %vm6560 = vcmp.eq.s32.totalorder %v6469, %v6558
    %vm6561 = vcmp.eq.s32.totalorder %v6532, %v6559
    %v6562 = vsel %vm6560, %v3379, 0.0
    %v6563 = vsel %vm6561, %v3442, 0.0
    %6564 = vst [vmem:[#allocation7] sm:$0xff] %v6562
    %6565 = vst [vmem:[#allocation7 + $0x8] sm:$0xff] %v6563
    // Predicated region
    $region18: #{tpu_custom_call.1} parent=1 // pred_check
      _
    $region19: #{tpu_custom_call.1} parent=1 // pred_check_branch
      %6567 = sbr.rel (0) target = $region21
    $region20: #{tpu_custom_call.1} parent=1 // pred_region
      %s6569 = ssub.s32 256, 256
      %6570 = vsyncadd [#allocation4], %s6569
      %s6572 = sshll.u32 [#allocation7], 4
      %s6573 = int_to_ptr.vmem [resolvable:$true] %s6572
      %6575 = dma.vmem_to_hbm [thread:$0]  %s6573, 256, %s2, [#allocation4]
    $region21: #{tpu_custom_call.1} parent=1 // pred_fallthru
      _
    // Predicated region
    $region22: #{tpu_custom_call.1} parent=1 // pred_check
      _
    $region23: #{tpu_custom_call.1} parent=1 // pred_check_branch
      %6577 = sbr.rel (0) target = $region25
    $region24: #{tpu_custom_call.1} parent=1 // pred_region
      %6578 = dma.done [#allocation4], 256
    $region25: #{tpu_custom_call.1} parent=1 // pred_fallthru
      _
    %6579 = vsyncpa [#allocation3], 1
    %6580 = vsyncpa [#allocation6], 1
    %6581 = vsyncpa [#allocation4], 1

// kernel: tpu_custom_call.1
$region0: #{tpu_custom_call.1}
  #allocation0 [shape = 'u32[]', space=smem, size = 0x4, offset = 0x4, fixed_abs, tag = 'smem constant byte address 0x4 - core index']
  #allocation1 [shape = 'u32[144,128]{1,0:T(1,128)}', space=vmem, size = 0x12000, scoped, tag = 'internal scratch']
  %s0 = inlined_call_operand.hbm [shape: f32[8,64], index: 0, kind: input, shape index: {}]
  %s1 = inlined_call_operand.hbm [shape: s32[8,64], index: 1, kind: input, shape index: {}]
  %s2 = inlined_call_operand.hbm [shape: f32[2,8,64], index: 2, kind: output, shape index: {}]
  %s3 = sld [smem:[#allocation0]]
  $region26: #{tpu_custom_call.1} parent=0
    _
  %s5 = ssub.s32 1, %s3
  %s6 = scalar_select 0, %s5, %s3
  $region1: #{tpu_custom_call.1} parent=0
    #allocation2 [shape = 'u8[4096]{0}', space=vmem, size = 0x1000, scoped, tag = 'input window, operand 0, single buffered']
    #allocation3 [shape = 's32[1]{0}', space=sflag, size = 0x4, scoped, tag = 'scoped memory for tpu_custom_call.1']
    #allocation4 [shape = 's32[1]{0}', space=sflag, size = 0x4, scoped, tag = 'scoped memory for tpu_custom_call.1']
    #allocation5 [shape = 'u8[4096]{0}', space=vmem, size = 0x1000, scoped, tag = 'input window, operand 1, single buffered']
    #allocation6 [shape = 's32[1]{0}', space=sflag, size = 0x4, scoped, tag = 'scoped memory for tpu_custom_call.1']
    #allocation7 [shape = 'u8[8192]{0}', space=vmem, size = 0x2000, scoped, tag = 'output window, operand 0, single buffered']
    %7 = vsyncpa [#allocation3], 0
    %8 = vsyncpa [#allocation6], 0
    %9 = vsyncpa [#allocation4], 0
    // Predicated region
    $region2: #{tpu_custom_call.1} parent=1 // pred_check
      _
    $region3: #{tpu_custom_call.1} parent=1 // pred_check_branch
      %11 = sbr.rel (0) target = $region5
    $region4: #{tpu_custom_call.1} parent=1 // pred_region
      %s13 = ssub.s32 128, 128
      %14 = vsyncadd [#allocation3], %s13
      %s16 = sshll.u32 [#allocation2], 4
      %s17 = int_to_ptr.vmem [resolvable:$true] %s16
      %19 = dma.hbm_to_vmem [thread:$0]  %s0, 128, %s17, [#allocation3]
    $region5: #{tpu_custom_call.1} parent=1 // pred_fallthru
      _
    // Predicated region
    $region6: #{tpu_custom_call.1} parent=1 // pred_check
      _
    $region7: #{tpu_custom_call.1} parent=1 // pred_check_branch
      %21 = sbr.rel (0) target = $region9
    $region8: #{tpu_custom_call.1} parent=1 // pred_region
      %s23 = ssub.s32 128, 128
      %24 = vsyncadd [#allocation6], %s23
      %s26 = sshll.u32 [#allocation5], 4
      %s27 = int_to_ptr.vmem [resolvable:$true] %s26
      %29 = dma.hbm_to_vmem [thread:$0]  %s1, 128, %s27, [#allocation6]
    $region9: #{tpu_custom_call.1} parent=1 // pred_fallthru
      _
    // Predicated region
    $region10: #{tpu_custom_call.1} parent=1 // pred_check
      _
    $region11: #{tpu_custom_call.1} parent=1 // pred_check_branch
      %31 = sbr.rel (0) target = $region13
    $region12: #{tpu_custom_call.1} parent=1 // pred_region
      %32 = dma.done [#allocation3], 128
    $region13: #{tpu_custom_call.1} parent=1 // pred_fallthru
      _
    // Predicated region
    $region14: #{tpu_custom_call.1} parent=1 // pred_check
      _
    $region15: #{tpu_custom_call.1} parent=1 // pred_check_branch
      %34 = sbr.rel (0) target = $region17
    $region16: #{tpu_custom_call.1} parent=1 // pred_region
      %35 = dma.done [#allocation6], 128
    $region17: #{tpu_custom_call.1} parent=1 // pred_fallthru
      _
    %v36 = vld [vmem:[#allocation2] sm:$0xff]
    %v37 = vld [vmem:[#allocation5] sm:$0xff]
    %v38 = vlaneseq
    %v39 = vand.u32 %v38, 127
    %vm40 = vcmp.lt.s32.totalorder %v39, 0
    %v41 = vsub.s32 0, %v39
    %v42 = vsel %vm40, %v41, %v39
    %v43 = vshrl.u32 %v42, 3
    %v44 = vand.u32 %v42, 7
    %v45 = vsub.s32 0, %v44
    %v46 = vsel %vm40, %v45, %v44
    %vm47 = vcmp.ne.s32.totalorder %v46, 0
    %vm48 = vcmp.lt.s32.totalorder %v46, 0
    %vm49 = vmand %vm48, %vm47
    %v50 = vadd.s32 %v46, 8
    %v51 = vsel %vm49, %v50, %v46
    %v52 = vmul.u32 %v51, 2
    %v53 = vsub.s32 %v37, %v52
    %vm54 = vcmp.eq.s32.totalorder %v53, 0
    %v55 = vsel %vm54, %v36, 0.0
    %vm56 = vcmask 523264
    %57 = vst.msk [vmem:[#allocation7] sm:$0xff] %vm56, %v55
    %vm58 = vcmp.eq.s32.totalorder %v53, 1
    %v59 = vsel %vm58, %v36, 0.0
    %s60 = scalar_lea.vmem [#allocation7], 8
    %61 = vst.msk [vmem:[%s60] sm:$0xff] %vm56, %v59
    // Predicated region
    $region18: #{tpu_custom_call.1} parent=1 // pred_check
      _
    $region19: #{tpu_custom_call.1} parent=1 // pred_check_branch
      %63 = sbr.rel (0) target = $region21
    $region20: #{tpu_custom_call.1} parent=1 // pred_region
      %s65 = ssub.s32 256, 256
      %66 = vsyncadd [#allocation4], %s65
      %s67 = sshll.u32 [#allocation7], 4
      %s68 = int_to_ptr.vmem [resolvable:$true] %s67
      %73 = dma.vmem_to_hbm [thread:$0]  %s68, 256, %s2, [#allocation4], 128, 128, 8
    $region21: #{tpu_custom_call.1} parent=1 // pred_fallthru
      _
    // Predicated region
    $region22: #{tpu_custom_call.1} parent=1 // pred_check
      _
    $region23: #{tpu_custom_call.1} parent=1 // pred_check_branch
      %75 = sbr.rel (0) target = $region25
    $region24: #{tpu_custom_call.1} parent=1 // pred_region
      %76 = dma.done [#allocation4], 256
    $region25: #{tpu_custom_call.1} parent=1 // pred_fallthru
      _
    %77 = vsyncpa [#allocation3], 1
    %78 = vsyncpa [#allocation6], 1
    %79 = vsyncpa [#allocation4], 1

</llo_original>
